<compile_context>
chip_gen: v7x
topology: tpu7x:2x2x1
jax: 0.10.0
libtpu: 0.0.40
codegen_flags: <defaults>
</compile_context>

<pallas_src>
import functools
import math

import jax
import jax.numpy as jnp
from jax.experimental import pallas as pl
from jax.experimental.pallas import tpu as pltpu


def _gelu_exact(x):
    # PyTorch nn.GELU() default is the exact erf formulation.
    return 0.5 * x * (1.0 + jax.lax.erf(x * (1.0 / math.sqrt(2.0))))


def _unidire_adj_kernel(adj_ref, w12_ref, b12_ref, wd_ref, out_ref):
    bt, n, seq = adj_ref.shape
    h2 = w12_ref.shape[1]
    h = h2 // 2

    # ---- Fused projection over all Bt*N rows (fills the MXU M dimension). ----
    # (Bt, N, seq) -> (Bt*N, seq) is a layout-preserving leading-dim merge
    # because the wrapper only folds batches when N % 8 == 0.
    x = adj_ref[...].reshape(bt * n, seq)
    proj = _gelu_exact(
        jax.lax.dot_general(x, w12_ref[...], (((1,), (0,)), ((), ())),
                            preferred_element_type=jnp.float32)
        + b12_ref[...])                                   # (Bt*N, 2H) = [R | S]

    # ---- t = [sender | -receiver] via a tiny in-register J (no HBM operand,
    #      no DMA, no extra BlockSpec; J = [[0, -I], [I, 0]]). ----
    row = jax.lax.broadcasted_iota(jnp.int32, (h2, h2), 0)
    col = jax.lax.broadcasted_iota(jnp.int32, (h2, h2), 1)
    jmat = (jnp.where(row == col + h, 1.0, 0.0)
            - jnp.where(col == row + h, 1.0, 0.0)).astype(jnp.float32)
    t = jax.lax.dot_general(proj, jmat, (((1,), (0,)), ((), ())),
                            preferred_element_type=jnp.float32)  # (Bt*N, 2H)

    # ---- Batched antisymmetric product: M = S R^T - R S^T per batch.
    #      Contract dim 2 of BOTH operands -> no operand transpose. ----
    proj_b = proj.reshape(bt, n, h2)
    t_b = t.reshape(bt, n, h2)
    m = jnp.einsum('bik,bjk->bij', t_b, proj_b,
                   preferred_element_type=jnp.float32)    # (Bt, N, N)

    ori = jnp.maximum(m, 0.0)
    # adj_ori^T = relu(M)^T = relu(M^T) = relu(-M) by antisymmetry -> no a.T.
    rev = jnp.maximum(jnp.maximum(-m, 0.0) * wd_ref[...], 0.0)

    # Single stacked output buffer: one writeback stream for both results.
    out_ref[0] = ori
    out_ref[1] = rev


@functools.partial(jax.jit, static_argnames=("block_batch",))
def unidire_adj_forward(adj_apt, w1, b1, w2, b2, weight_dif, *, block_batch=None):
    """adj_apt: (N, seq) or (B, N, seq); weight_dif: (N, N) or (B, N, N)."""
    squeeze = adj_apt.ndim == 2
    if squeeze:
        adj_apt = adj_apt[None]
        weight_dif = weight_dif[None]

    # Explicit f32 parity with the reference (VPU/EUP math stays f32 on v5e).
    adj_apt = adj_apt.astype(jnp.float32)
    weight_dif = weight_dif.astype(jnp.float32)

    B, N, seq = adj_apt.shape
    H = w1.shape[1]
    H2 = 2 * H

    # Host-side fusion of the two projections (static, outside the hot path).
    w12 = jnp.concatenate([w1, w2], axis=1).astype(jnp.float32)          # (seq, 2H)
    b12 = jnp.concatenate([b1.reshape(1, H), b2.reshape(1, H)],
                          axis=1).astype(jnp.float32)                    # (1, 2H)

    # ---- Choose how many batch elements to fold into each grid step. ----
    if block_batch is None:
        if N % 8 == 0:
            # ~256 projection rows per step: one full 256x256 MXU pass on
            # v6e/v7x, two 128-row passes on v5e.
            bt = max(1, min(B, 256 // max(N, 1)))
        else:
            # Folding relies on a tile-aligned (Bt,N,seq)->(Bt*N,seq) reshape.
            bt = 1
        if B > 1:
            # Keep >= 2 balanced grid steps so v7x's 2 TensorCores both work.
            bt = min(bt, pl.cdiv(B, 2))
    else:
        bt = block_batch
    bt = max(1, min(bt, B))

    # Pad the batch to a multiple of bt (padded work is computed and discarded).
    Bp = pl.cdiv(B, bt) * bt
    if Bp != B:
        pad = Bp - B
        adj_apt = jnp.pad(adj_apt, ((0, pad), (0, 0), (0, 0)))
        weight_dif = jnp.pad(weight_dif, ((0, pad), (0, 0), (0, 0)))
    steps = Bp // bt

    # Advisory cost model (resident weights counted once per grid step).
    flops = int(Bp * (2 * N * seq * H2 + 2 * N * H2 * H2 + 2 * N * N * H2))
    transcendentals = int(Bp * N * H2)
    bytes_accessed = int(4 * (Bp * N * seq
                              + steps * (w12.size + b12.size)
                              + Bp * N * N          # weight_dif in
                              + 2 * Bp * N * N))    # stacked outputs
    cost = pl.CostEstimate(flops=flops, transcendentals=transcendentals,
                           bytes_accessed=bytes_accessed)

    out = pl.pallas_call(
        _unidire_adj_kernel,
        grid=(steps,),
        in_specs=[
            pl.BlockSpec((bt, N, seq), lambda i: (i, 0, 0)),   # per-step batches
            pl.BlockSpec((seq, H2), lambda i: (0, 0)),          # resident weights
            pl.BlockSpec((1, H2), lambda i: (0, 0)),            # resident bias
            pl.BlockSpec((bt, N, N), lambda i: (i, 0, 0)),      # per-step weight_dif
        ],
        out_specs=pl.BlockSpec((2, bt, N, N), lambda i: (0, i, 0, 0)),
        out_shape=jax.ShapeDtypeStruct((2, Bp, N, N), jnp.float32),
        compiler_params=pltpu.CompilerParams(
            dimension_semantics=("parallel",)),
        cost_estimate=cost,
    )(adj_apt, w12, b12, weight_dif)

    ori = out[0, :B]
    rev = out[1, :B]
    if squeeze:
        return ori[0], rev[0]
    return ori, rev


def init_params(key, seq, ratio):
    """Deterministic synthetic init mirroring the module's parameter shapes."""
    H = int(seq * ratio)
    k = jax.random.split(key, 8)

    # nn.Parameter's (xavier_normal_, gain=1.04) -- created but unused in forward.
    def xavier_normal(k_, shape, gain):
        fan_in, fan_out = shape[1], shape[0]
        std = gain * math.sqrt(2.0 / (fan_in + fan_out))
        return std * jax.random.normal(k_, shape, jnp.float32)

    m_scale = xavier_normal(k[0], (1, seq), 1.04)   # not used in forward
    re = xavier_normal(k[1], (1, 1), 1.04)          # not used in forward
    se = xavier_normal(k[2], (1, 1), 1.04)          # not used in forward

    # nn.Linear(seq, H): stored transposed as (seq, H) so kernel computes x @ W.
    wb = 1.0 / math.sqrt(seq)
    w1 = jax.random.uniform(k[3], (seq, H), jnp.float32, -wb, wb)
    b1 = jax.random.uniform(k[4], (H,), jnp.float32, -wb, wb)
    w2 = jax.random.uniform(k[5], (seq, H), jnp.float32, -wb, wb)
    b2 = jax.random.uniform(k[6], (H,), jnp.float32, -wb, wb)

    return dict(m_scale=m_scale, re=re, se=se, w1=w1, b1=b1, w2=w2, b2=b2)


def _reference_forward(adj_apt, w1, b1, w2, b2, weight_dif):
    receiver = _gelu_exact(adj_apt @ w1 + b1)
    sender = _gelu_exact(adj_apt @ w2 + b2)
    a = jnp.maximum(sender @ jnp.swapaxes(receiver, -1, -2)
                    - receiver @ jnp.swapaxes(sender, -1, -2), 0.0)
    return a, jnp.maximum(jnp.swapaxes(a, -1, -2) * weight_dif, 0.0)


if __name__ == "__main__":
    seq = 8
    ratio = 0.5
    N = 16   # number of graph nodes
    B = 32   # independent graphs: folds 16 per grid step (256 MXU rows) x 2 steps

    key = jax.random.PRNGKey(0)
    kp, ka, kw = jax.random.split(key, 3)
    params = init_params(kp, seq, ratio)

    adj_apt = jax.random.normal(ka, (B, N, seq), jnp.float32)
    weight_dif = jax.random.normal(kw, (B, N, N), jnp.float32)

    adj_ori, adj_rev = unidire_adj_forward(
        adj_apt, params["w1"], params["b1"], params["w2"], params["b2"],
        weight_dif)
    jax.block_until_ready((adj_ori, adj_rev))

    # Sanity check against a pure-JAX reference of the original formulation.
    ref_ori, ref_rev = _reference_forward(
        adj_apt, params["w1"], params["b1"], params["w2"], params["b2"],
        weight_dif)
    assert jnp.allclose(adj_ori, ref_ori, atol=1e-5, rtol=1e-5)
    assert jnp.allclose(adj_rev, ref_rev, atol=1e-5, rtol=1e-5)

    # Also exercise the un-batched (N, seq) path once.
    o2, r2 = unidire_adj_forward(
        adj_apt[0], params["w1"], params["b1"], params["w2"], params["b2"],
        weight_dif[0])
    jax.block_until_ready((o2, r2))
    assert jnp.allclose(o2, ref_ori[0], atol=1e-5, rtol=1e-5)
    assert jnp.allclose(r2, ref_rev[0], atol=1e-5, rtol=1e-5)

    # And a non-divisible batch to exercise the padding path.
    o3, r3 = unidire_adj_forward(
        adj_apt[:5], params["w1"], params["b1"], params["w2"], params["b2"],
        weight_dif[:5])
    jax.block_until_ready((o3, r3))
    assert jnp.allclose(o3, ref_ori[:5], atol=1e-5, rtol=1e-5)
    assert jnp.allclose(r3, ref_rev[:5], atol=1e-5, rtol=1e-5)

    print("KERNEL_OK")
</pallas_src>

<mosaic_0001>
module attributes {stable_mosaic.version = 11 : i64} {
  func.func @_unidire_adj_kernel(%arg0: i32, %arg1: memref<16x16x8xf32, #tpu.memory_space<vmem>>, %arg2: memref<8x8xf32, #tpu.memory_space<vmem>>, %arg3: memref<1x8xf32, #tpu.memory_space<vmem>>, %arg4: memref<16x16x16xf32, #tpu.memory_space<vmem>>, %arg5: memref<2x16x16x16xf32, #tpu.memory_space<vmem>>) attributes {dimension_semantics = [#tpu.dimension_semantics<parallel>], iteration_bounds = array<i64: 2>, scalar_prefetch = 0 : i64, scratch_operands = 0 : i64, tpu.core_type = #tpu.core_type<tc>, window_params = [{transform_indices = @transform_0, window_bounds = array<i64: 16, 16, 8>}, {pipeline_mode = #tpu.pipeline_mode<synchronous>, transform_indices = @transform_1, window_bounds = array<i64: 8, 8>}, {pipeline_mode = #tpu.pipeline_mode<synchronous>, transform_indices = @transform_2, window_bounds = array<i64: 1, 8>}, {transform_indices = @transform_3, window_bounds = array<i64: 16, 16, 16>}, {transform_indices = @transform_4, window_bounds = array<i64: 2, 16, 16, 16>}]} {
    %c0 = arith.constant 0 : index
    %c0_0 = arith.constant 0 : index
    %c0_1 = arith.constant 0 : index
    %0 = vector.load %arg1[%c0, %c0_0, %c0_1] : memref<16x16x8xf32, #tpu.memory_space<vmem>>, vector<16x16x8xf32>
    %1 = vector.shape_cast %0 : vector<16x16x8xf32> to vector<256x8xf32>
    %c0_2 = arith.constant 0 : index
    %c0_3 = arith.constant 0 : index
    %2 = vector.load %arg2[%c0_2, %c0_3] : memref<8x8xf32, #tpu.memory_space<vmem>>, vector<8x8xf32>
    %cst = arith.constant dense<0.000000e+00> : vector<256x8xf32>
    %3 = tpu.matmul %1, %2, %cst {dimension_numbers = #tpu.dot_dimension_numbers<[1], [0], [0], [1], [0, 0, 1, 1], [], []>} : vector<256x8xf32>, vector<8x8xf32>, vector<256x8xf32> -> vector<256x8xf32>
    %c0_4 = arith.constant 0 : index
    %c0_5 = arith.constant 0 : index
    %4 = vector.load %arg3[%c0_4, %c0_5] : memref<1x8xf32, #tpu.memory_space<vmem>>, vector<1x8xf32>
    %5 = vector.broadcast %4 : vector<1x8xf32> to vector<256x8xf32>
    %6 = arith.addf %3, %5 : vector<256x8xf32>
    %cst_6 = arith.constant 5.000000e-01 : f32
    %7 = vector.broadcast %cst_6 : f32 to vector<256x8xf32>
    %8 = arith.mulf %7, %6 : vector<256x8xf32>
    %cst_7 = arith.constant 0.707106769 : f32
    %9 = vector.broadcast %cst_7 : f32 to vector<256x8xf32>
    %10 = arith.mulf %6, %9 : vector<256x8xf32>
    %11 = math.erf %10 : vector<256x8xf32>
    %cst_8 = arith.constant 1.000000e+00 : f32
    %12 = vector.broadcast %cst_8 : f32 to vector<256x8xf32>
    %13 = arith.addf %12, %11 : vector<256x8xf32>
    %14 = arith.mulf %8, %13 : vector<256x8xf32>
    %15 = tpu.iota {dimensions = array<i32: 0>} : vector<8x8xi32>
    %16 = tpu.iota {dimensions = array<i32: 1>} : vector<8x8xi32>
    %c4_i32 = arith.constant 4 : i32
    %17 = vector.broadcast %c4_i32 : i32 to vector<8x8xi32>
    %18 = arith.addi %16, %17 : vector<8x8xi32>
    %19 = arith.cmpi eq, %15, %18 : vector<8x8xi32>
    %cst_9 = arith.constant 1.000000e+00 : f32
    %cst_10 = arith.constant 0.000000e+00 : f32
    %20 = vector.broadcast %cst_9 : f32 to vector<8x8xf32>
    %21 = vector.broadcast %cst_10 : f32 to vector<8x8xf32>
    %22 = arith.select %19, %20, %21 : vector<8x8xi1>, vector<8x8xf32>
    %c4_i32_11 = arith.constant 4 : i32
    %23 = vector.broadcast %c4_i32_11 : i32 to vector<8x8xi32>
    %24 = arith.addi %15, %23 : vector<8x8xi32>
    %25 = arith.cmpi eq, %16, %24 : vector<8x8xi32>
    %cst_12 = arith.constant 1.000000e+00 : f32
    %cst_13 = arith.constant 0.000000e+00 : f32
    %26 = vector.broadcast %cst_12 : f32 to vector<8x8xf32>
    %27 = vector.broadcast %cst_13 : f32 to vector<8x8xf32>
    %28 = arith.select %25, %26, %27 : vector<8x8xi1>, vector<8x8xf32>
    %29 = arith.subf %22, %28 : vector<8x8xf32>
    %cst_14 = arith.constant dense<0.000000e+00> : vector<256x8xf32>
    %30 = tpu.matmul %14, %29, %cst_14 {dimension_numbers = #tpu.dot_dimension_numbers<[1], [0], [0], [1], [0, 0, 1, 1], [], []>} : vector<256x8xf32>, vector<8x8xf32>, vector<256x8xf32> -> vector<256x8xf32>
    %31 = vector.shape_cast %14 : vector<256x8xf32> to vector<16x16x8xf32>
    %32 = vector.shape_cast %30 : vector<256x8xf32> to vector<16x16x8xf32>
    "tpu.trace_start"() <{level = 10 : i32, message = "bik,bjk->bij"}> : () -> ()
    %cst_15 = arith.constant dense<0.000000e+00> : vector<16x16x16xf32>
    %33 = tpu.matmul %32, %31, %cst_15 {dimension_numbers = #tpu.dot_dimension_numbers<[2], [2], [1], [1], [0, 0, 0, 1, 1, 1], [0], [0]>} : vector<16x16x8xf32>, vector<16x16x8xf32>, vector<16x16x16xf32> -> vector<16x16x16xf32>
    "tpu.trace_stop"() : () -> ()
    %cst_16 = arith.constant 0.000000e+00 : f32
    %34 = vector.broadcast %cst_16 : f32 to vector<16x16x16xf32>
    %35 = arith.maximumf %33, %34 : vector<16x16x16xf32>
    %cst_17 = arith.constant 0.000000e+00 : f32
    %36 = vector.broadcast %cst_17 : f32 to vector<16x16x16xf32>
    %37 = arith.subf %36, %33 : vector<16x16x16xf32>
    %cst_18 = arith.constant 0.000000e+00 : f32
    %38 = vector.broadcast %cst_18 : f32 to vector<16x16x16xf32>
    %39 = arith.maximumf %37, %38 : vector<16x16x16xf32>
    %c0_19 = arith.constant 0 : index
    %c0_20 = arith.constant 0 : index
    %c0_21 = arith.constant 0 : index
    %40 = vector.load %arg4[%c0_19, %c0_20, %c0_21] : memref<16x16x16xf32, #tpu.memory_space<vmem>>, vector<16x16x16xf32>
    %41 = arith.mulf %39, %40 : vector<16x16x16xf32>
    %cst_22 = arith.constant 0.000000e+00 : f32
    %42 = vector.broadcast %cst_22 : f32 to vector<16x16x16xf32>
    %43 = arith.maximumf %41, %42 : vector<16x16x16xf32>
    %c0_23 = arith.constant 0 : index
    %c0_24 = arith.constant 0 : index
    %c0_25 = arith.constant 0 : index
    %c0_26 = arith.constant 0 : index
    %44 = vector.load %arg5[%c0_23, %c0_24, %c0_25, %c0_26] : memref<2x16x16x16xf32, #tpu.memory_space<vmem>>, vector<1x16x16x16xf32>
    %45 = vector.shape_cast %44 : vector<1x16x16x16xf32> to vector<16x16x16xf32>
    %46 = vector.shape_cast %35 : vector<16x16x16xf32> to vector<1x16x16x16xf32>
    tpu.vector_store %arg5[%c0_23, %c0_24, %c0_25, %c0_26], %46 {strides = array<i32>} : memref<2x16x16x16xf32, #tpu.memory_space<vmem>>, vector<1x16x16x16xf32>,
    %c1 = arith.constant 1 : index
    %c0_27 = arith.constant 0 : index
    %c0_28 = arith.constant 0 : index
    %c0_29 = arith.constant 0 : index
    %47 = vector.load %arg5[%c1, %c0_27, %c0_28, %c0_29] : memref<2x16x16x16xf32, #tpu.memory_space<vmem>>, vector<1x16x16x16xf32>
    %48 = vector.shape_cast %47 : vector<1x16x16x16xf32> to vector<16x16x16xf32>
    %49 = vector.shape_cast %43 : vector<16x16x16xf32> to vector<1x16x16x16xf32>
    tpu.vector_store %arg5[%c1, %c0_27, %c0_28, %c0_29], %49 {strides = array<i32>} : memref<2x16x16x16xf32, #tpu.memory_space<vmem>>, vector<1x16x16x16xf32>,
    return
  }
  func.func @transform_0(%arg0: i32) -> (i32, i32, i32) {
    %c0_i32 = arith.constant 0 : i32
    %c0_i32_0 = arith.constant 0 : i32
    %c0_i32_1 = arith.constant 0 : i32
    return %arg0, %c0_i32, %c0_i32_0 : i32, i32, i32
  }
  func.func @transform_1(%arg0: i32) -> (i32, i32) {
    %c0_i32 = arith.constant 0 : i32
    %c0_i32_0 = arith.constant 0 : i32
    %c0_i32_1 = arith.constant 0 : i32
    return %c0_i32, %c0_i32_0 : i32, i32
  }
  func.func @transform_2(%arg0: i32) -> (i32, i32) {
    %c0_i32 = arith.constant 0 : i32
    %c0_i32_0 = arith.constant 0 : i32
    %c0_i32_1 = arith.constant 0 : i32
    return %c0_i32, %c0_i32_0 : i32, i32
  }
  func.func @transform_3(%arg0: i32) -> (i32, i32, i32) {
    %c0_i32 = arith.constant 0 : i32
    %c0_i32_0 = arith.constant 0 : i32
    %c0_i32_1 = arith.constant 0 : i32
    return %arg0, %c0_i32, %c0_i32_0 : i32, i32, i32
  }
  func.func @transform_4(%arg0: i32) -> (i32, i32, i32, i32) {
    %c0_i32 = arith.constant 0 : i32
    %c0_i32_0 = arith.constant 0 : i32
    %c0_i32_1 = arith.constant 0 : i32
    %c0_i32_2 = arith.constant 0 : i32
    return %c0_i32, %arg0, %c0_i32_0, %c0_i32_1 : i32, i32, i32, i32
  }
}

</mosaic_0001>

<llo_original>
// kernel: unidire_adj_forward.1
$region0: #{unidire_adj_forward.1}
  #allocation0 [shape = 'u32[]', space=smem, size = 0x4, offset = 0x4, fixed_abs, tag = 'smem constant byte address 0x4 - core index']
  #allocation1 [shape = 'u32[144,128]{1,0:T(1,128)}', space=vmem, size = 0x12000, scoped, tag = 'internal scratch']
  %s0 = inlined_call_operand.vmem [shape: f32[32,16,8], index: 0, kind: input, shape index: {}]
  %s1 = inlined_call_operand.vmem [shape: f32[8,8], index: 1, kind: input, shape index: {}]
  %s2 = inlined_call_operand.vmem [shape: f32[1,8], index: 2, kind: input, shape index: {}]
  %s3 = inlined_call_operand.vmem [shape: f32[32,16,16], index: 3, kind: input, shape index: {}]
  %s4 = inlined_call_operand.vmem [shape: f32[2,32,16,16], index: 4, kind: output, shape index: {}]
  %s5 = sld [smem:[#allocation0]]
  $region83: #{unidire_adj_forward.1} parent=0
    _
  %s7 = ssub.s32 1, %s5
  %s8 = scalar_select 0, %s7, %s5
  $region1: #{unidire_adj_forward.1} parent=0
    #allocation2 [shape = 'u8[524288]{0}', space=vmem, size = 0x80000, scoped, tag = 'output window, operand 0']
    loop: start=0, step=1, limit=4
    $region2: #{unidire_adj_forward.1} parent=1 // loop_pre_header
      _
    $region3: #{unidire_adj_forward.1} parent=1 // loop_header
      %s10 = sphi 0, %s14
      %p11 = scmp.ge.s32.totalorder %s10, 4
      %s20 = sphi 0, %s22
      %s23 = sphi 0, %s20
      %s24 = sphi 0, %s23
      %s40 = sphi 0, %s24
      %s44 = sphi 0, %s44
      %s46 = sphi 0, %s44
      %s47 = sphi 0, %s46
      %s61 = sphi 0, %s47
      %s65 = sphi 0, %s65
      %s67 = sphi 0, %s65
      %s68 = sphi 0, %s67
      %s82 = sphi 0, %s68
      %s88 = sphi 0, %s90
      %s91 = sphi 0, %s88
      %s92 = sphi 0, %s91
      %s108 = sphi 0, %s92
      %s114 = sphi 0, %s116
      %s117 = sphi 0, %s114
      %s118 = sphi 0, %s117
      %s134 = sphi 0, %s118
    $region4: #{unidire_adj_forward.1} parent=1 // loop_header_branch
      %13 = sbr.rel (%p11) target = $region8
    $region5: #{unidire_adj_forward.1} parent=1 // loop_body
      %s15 = ssub.s32 %s10, 1
      %s16 = ssub.s32 %s10, 2
      %s17 = sadd.s32 %s10, 1
      %s18 = ssub.s32 %s10, %s17
      %p19 = scmp.eq.s32.totalorder %s18, 0
      %s21 = sadd.s32 %s20, 1
      %s22 = scalar_select %p19, %s20, %s21
      %p25 = pneg %p19
      %p26 = scmp.eq.s32.totalorder %s10, 1
      %p27 = por %p25, %p26
      %p28 = scmp.ne.s32.totalorder %s20, %s23
      %p29 = scmp.eq.s32.totalorder %s10, 0
      %p30 = por %p28, %p29
      %p31 = scmp.ne.s32.totalorder %s20, %s23
      %p32 = scmp.eq.s32.totalorder %s15, 1
      %p33 = por %p31, %p32
      %p34 = scmp.ne.s32.totalorder %s23, %s24
      %p35 = scmp.eq.s32.totalorder %s15, 0
      %p36 = por %p34, %p35
      %p37 = scmp.ne.s32.totalorder %s23, %s24
      %p38 = scmp.eq.s32.totalorder %s16, 1
      %p39 = por %p37, %p38
      %p41 = scmp.ne.s32.totalorder %s24, %s40
      %p42 = scmp.eq.s32.totalorder %s16, 0
      %p43 = por %p41, %p42
      %s45 = sadd.s32 %s44, 1
      %p48 = scmp.eq.s32.totalorder %s10, 1
      %p49 = scmp.ne.s32.totalorder %s44, %s46
      %p50 = scmp.eq.s32.totalorder %s10, 0
      %p51 = por %p49, %p50
      %p52 = scmp.ne.s32.totalorder %s44, %s46
      %p53 = scmp.eq.s32.totalorder %s15, 1
      %p54 = por %p52, %p53
      %p55 = scmp.ne.s32.totalorder %s46, %s47
      %p56 = scmp.eq.s32.totalorder %s15, 0
      %p57 = por %p55, %p56
      %p58 = scmp.ne.s32.totalorder %s46, %s47
      %p59 = scmp.eq.s32.totalorder %s16, 1
      %p60 = por %p58, %p59
      %p62 = scmp.ne.s32.totalorder %s47, %s61
      %p63 = scmp.eq.s32.totalorder %s16, 0
      %p64 = por %p62, %p63
      %s66 = sadd.s32 %s65, 1
      %p69 = scmp.eq.s32.totalorder %s10, 1
      %p70 = scmp.ne.s32.totalorder %s65, %s67
      %p71 = scmp.eq.s32.totalorder %s10, 0
      %p72 = por %p70, %p71
      %p73 = scmp.ne.s32.totalorder %s65, %s67
      %p74 = scmp.eq.s32.totalorder %s15, 1
      %p75 = por %p73, %p74
      %p76 = scmp.ne.s32.totalorder %s67, %s68
      %p77 = scmp.eq.s32.totalorder %s15, 0
      %p78 = por %p76, %p77
      %p79 = scmp.ne.s32.totalorder %s67, %s68
      %p80 = scmp.eq.s32.totalorder %s16, 1
      %p81 = por %p79, %p80
      %p83 = scmp.ne.s32.totalorder %s68, %s82
      %p84 = scmp.eq.s32.totalorder %s16, 0
      %p85 = por %p83, %p84
      %s86 = ssub.s32 %s10, %s17
      %p87 = scmp.eq.s32.totalorder %s86, 0
      %s89 = sadd.s32 %s88, 1
      %s90 = scalar_select %p87, %s88, %s89
      %p93 = pneg %p87
      %p94 = scmp.eq.s32.totalorder %s10, 1
      %p95 = por %p93, %p94
      %p96 = scmp.ne.s32.totalorder %s88, %s91
      %p97 = scmp.eq.s32.totalorder %s10, 0
      %p98 = por %p96, %p97
      %p99 = scmp.ne.s32.totalorder %s88, %s91
      %p100 = scmp.eq.s32.totalorder %s15, 1
      %p101 = por %p99, %p100
      %p102 = scmp.ne.s32.totalorder %s91, %s92
      %p103 = scmp.eq.s32.totalorder %s15, 0
      %p104 = por %p102, %p103
      %p105 = scmp.ne.s32.totalorder %s91, %s92
      %p106 = scmp.eq.s32.totalorder %s16, 1
      %p107 = por %p105, %p106
      %p109 = scmp.ne.s32.totalorder %s92, %s108
      %p110 = scmp.eq.s32.totalorder %s16, 0
      %p111 = por %p109, %p110
      %s112 = ssub.s32 %s10, %s17
      %p113 = scmp.eq.s32.totalorder %s112, 0
      %s115 = sadd.s32 %s114, 1
      %s116 = scalar_select %p113, %s114, %s115
      %p119 = pneg %p113
      %p120 = scmp.eq.s32.totalorder %s10, 1
      %p121 = por %p119, %p120
      %p122 = scmp.ne.s32.totalorder %s114, %s117
      %p123 = scmp.eq.s32.totalorder %s10, 0
      %p124 = por %p122, %p123
      %p125 = scmp.ne.s32.totalorder %s114, %s117
      %p126 = scmp.eq.s32.totalorder %s15, 1
      %p127 = por %p125, %p126
      %p128 = scmp.ne.s32.totalorder %s117, %s118
      %p129 = scmp.eq.s32.totalorder %s15, 0
      %p130 = por %p128, %p129
      %p131 = scmp.ne.s32.totalorder %s117, %s118
      %p132 = scmp.eq.s32.totalorder %s16, 1
      %p133 = por %p131, %p132
      %p135 = scmp.ne.s32.totalorder %s118, %s134
      %p136 = scmp.eq.s32.totalorder %s16, 0
      %p137 = por %p135, %p136
      %p138 = scmp.le.s32.totalorder 1, %s10
      %p139 = scmp.lt.s32.totalorder %s10, 3
      %p140 = pnand %p138, %p139
      %p141 = pneg %p140
      // Predicated region
      $region9: #{unidire_adj_forward.1} parent=5 // pred_check
        _
      $region10: #{unidire_adj_forward.1} parent=5 // pred_check_branch
        %143 = sbr.rel (%p140) target = $region12
      $region11: #{unidire_adj_forward.1} parent=5 // pred_region
        %s144 = ssub.s32 %s10, 1
        // Predicated region
        $region13: #{unidire_adj_forward.1} parent=11 // pred_check
          %p145 = pneg %p57
        $region14: #{unidire_adj_forward.1} parent=11 // pred_check_branch
          %147 = sbr.rel (%p145) target = $region16
        $region15: #{unidire_adj_forward.1} parent=11 // pred_region
          _
        $region16: #{unidire_adj_forward.1} parent=11 // pred_fallthru
          _
        // Predicated region
        $region17: #{unidire_adj_forward.1} parent=11 // pred_check
          %p148 = pneg %p78
        $region18: #{unidire_adj_forward.1} parent=11 // pred_check_branch
          %150 = sbr.rel (%p148) target = $region20
        $region19: #{unidire_adj_forward.1} parent=11 // pred_region
          _
        $region20: #{unidire_adj_forward.1} parent=11 // pred_fallthru
          _
      $region12: #{unidire_adj_forward.1} parent=5 // pred_fallthru
        _
      %p151 = scmp.lt.s32.totalorder %s10, 2
      // Predicated region
      $region21: #{unidire_adj_forward.1} parent=5 // pred_check
        %p152 = pneg %p151
      $region22: #{unidire_adj_forward.1} parent=5 // pred_check_branch
        %154 = sbr.rel (%p152) target = $region24
      $region23: #{unidire_adj_forward.1} parent=5 // pred_region
        // Predicated region
        $region25: #{unidire_adj_forward.1} parent=23 // pred_check
          %p155 = pneg %p30
        $region26: #{unidire_adj_forward.1} parent=23 // pred_check_branch
          %157 = sbr.rel (%p155) target = $region28
        $region27: #{unidire_adj_forward.1} parent=23 // pred_region
          %s158 = smul.u32 16, %s10
          %p159 = scmp.lt.s32.totalorder %s158, 31
          %s160 = scalar_select %p159, %s158, 31
          %s161 = smul.addr %s160, 2
          %s162 = smul.addr %s161, 8
          %s163 = scalar_lea.vmem %s0, %s162
          %s164 = smul.u32 16, %s10
        $region28: #{unidire_adj_forward.1} parent=23 // pred_fallthru
          _
        // Predicated region
        $region29: #{unidire_adj_forward.1} parent=23 // pred_check
          %p165 = pneg %p98
        $region30: #{unidire_adj_forward.1} parent=23 // pred_check_branch
          %167 = sbr.rel (%p165) target = $region32
        $region31: #{unidire_adj_forward.1} parent=23 // pred_region
          %s168 = smul.u32 16, %s10
          %p169 = scmp.lt.s32.totalorder %s168, 31
          %s170 = scalar_select %p169, %s168, 31
          %s171 = smul.addr %s170, 2
          %s172 = smul.addr %s171, 8
          %s173 = scalar_lea.vmem %s3, %s172
          %s174 = smul.u32 16, %s10
        $region32: #{unidire_adj_forward.1} parent=23 // pred_fallthru
          _
      $region24: #{unidire_adj_forward.1} parent=5 // pred_fallthru
        _
      %p175 = scmp.le.s32.totalorder 1, %s10
      %p176 = scmp.lt.s32.totalorder %s10, 3
      %p177 = pnand %p175, %p176
      %p178 = pneg %p177
      // Predicated region
      $region33: #{unidire_adj_forward.1} parent=5 // pred_check
        _
      $region34: #{unidire_adj_forward.1} parent=5 // pred_check_branch
        %180 = sbr.rel (%p177) target = $region36
      $region35: #{unidire_adj_forward.1} parent=5 // pred_region
        %s181 = ssub.s32 %s10, 1
        %s182 = smul.u32 16, %s15
        %p183 = scmp.lt.s32.totalorder %s182, 31
        %s184 = scalar_select %p183, %s182, 31
        %s185 = smul.addr %s184, 2
        %s186 = smul.addr %s185, 8
        %s187 = scalar_lea.vmem %s0, %s186
        %p188 = pneg %p36
        %p189 = pneg %p33
        %p190 = pneg %p57
        %p191 = pneg %p54
        %p192 = pneg %p78
        %p193 = pneg %p75
        %s194 = smul.u32 16, %s15
        %p195 = scmp.lt.s32.totalorder %s194, 31
        %s196 = scalar_select %p195, %s194, 31
        %s197 = smul.addr %s196, 2
        %s198 = smul.addr %s197, 8
        %s199 = scalar_lea.vmem %s3, %s198
        %p200 = pneg %p104
        %p201 = pneg %p101
        %p202 = pneg %p130
        %p203 = pneg %p127
        %s204 = sand.u32 %s117, 1
        %s205 = sand.u32 %s117, 1
        %s206 = smul.addr %s205, 512
        %s207 = scalar_lea.vmem [#allocation2], %s206
        %s208 = smul.u32 16, %s15
        %p209 = scmp.lt.s32.totalorder %s208, 31
        %s210 = scalar_select %p209, %s208, 31
        %s211 = smul.addr %s210, 2
        %s212 = smul.addr %s211, 8
        %s213 = scalar_lea.vmem %s0, %s212
        %s214 = smul.u32 16, %s15
        %s215 = smul.u32 16, %s15
        %p216 = scmp.lt.s32.totalorder %s215, 31
        %s217 = scalar_select %p216, %s215, 31
        %s218 = smul.addr %s217, 2
        %s219 = smul.addr %s218, 8
        %s220 = scalar_lea.vmem %s3, %s219
        %s221 = smul.u32 16, %s15
        %s222 = smul.u32 16, %s15
        %v223 = vld [vmem:[%s213] sm:$0xff]
        %v224 = vld [vmem:[%s213 + $0x8] sm:$0xff]
        %v225 = vld [vmem:[%s213 + $0x10] sm:$0xff]
        %v226 = vld [vmem:[%s213 + $0x18] sm:$0xff]
        %v227 = vld [vmem:[%s213 + $0x20] sm:$0xff]
        %v228 = vld [vmem:[%s213 + $0x28] sm:$0xff]
        %v229 = vld [vmem:[%s213 + $0x30] sm:$0xff]
        %v230 = vld [vmem:[%s213 + $0x38] sm:$0xff]
        %v231 = vld [vmem:[%s213 + $0x40] sm:$0xff]
        %v232 = vld [vmem:[%s213 + $0x48] sm:$0xff]
        %v233 = vld [vmem:[%s213 + $0x50] sm:$0xff]
        %v234 = vld [vmem:[%s213 + $0x58] sm:$0xff]
        %v235 = vld [vmem:[%s213 + $0x60] sm:$0xff]
        %v236 = vld [vmem:[%s213 + $0x68] sm:$0xff]
        %v237 = vld [vmem:[%s213 + $0x70] sm:$0xff]
        %v238 = vld [vmem:[%s213 + $0x78] sm:$0xff]
        %v239 = vld [vmem:[%s213 + $0x80] sm:$0xff]
        %v240 = vld [vmem:[%s213 + $0x88] sm:$0xff]
        %v241 = vld [vmem:[%s213 + $0x90] sm:$0xff]
        %v242 = vld [vmem:[%s213 + $0x98] sm:$0xff]
        %v243 = vld [vmem:[%s213 + $0xa0] sm:$0xff]
        %v244 = vld [vmem:[%s213 + $0xa8] sm:$0xff]
        %v245 = vld [vmem:[%s213 + $0xb0] sm:$0xff]
        %v246 = vld [vmem:[%s213 + $0xb8] sm:$0xff]
        %v247 = vld [vmem:[%s213 + $0xc0] sm:$0xff]
        %v248 = vld [vmem:[%s213 + $0xc8] sm:$0xff]
        %v249 = vld [vmem:[%s213 + $0xd0] sm:$0xff]
        %v250 = vld [vmem:[%s213 + $0xd8] sm:$0xff]
        %v251 = vld [vmem:[%s213 + $0xe0] sm:$0xff]
        %v252 = vld [vmem:[%s213 + $0xe8] sm:$0xff]
        %v253 = vld [vmem:[%s213 + $0xf0] sm:$0xff]
        %v254 = vld [vmem:[%s213 + $0xf8] sm:$0xff]
        %v255 = vld [vmem:[%s1] sm:$0xff]
        %v256 = vld [vmem:[%s2] sm:$0x1]
        %v258 = vlaneseq
        %v259 = vshrl.u32 %v258, 7
        %v260 = vsub.s32 0, %v259
        %v261 = vrot.slane %v256, %v260
        %vm263 = vcmask 64512
        %v265 = vsel %vm263, %v223, 0
        %v268 = vsel %vm263, %v224, 0
        %v271 = vsel %vm263, %v225, 0
        %v274 = vsel %vm263, %v226, 0
        %v277 = vsel %vm263, %v227, 0
        %v280 = vsel %vm263, %v228, 0
        %v283 = vsel %vm263, %v229, 0
        %v286 = vsel %vm263, %v230, 0
        %v289 = vsel %vm263, %v231, 0
        %v292 = vsel %vm263, %v232, 0
        %v295 = vsel %vm263, %v233, 0
        %v298 = vsel %vm263, %v234, 0
        %v301 = vsel %vm263, %v235, 0
        %v304 = vsel %vm263, %v236, 0
        %v307 = vsel %vm263, %v237, 0
        %v310 = vsel %vm263, %v238, 0
        %v313 = vsel %vm263, %v239, 0
        %v316 = vsel %vm263, %v240, 0
        %v319 = vsel %vm263, %v241, 0
        %v322 = vsel %vm263, %v242, 0
        %v325 = vsel %vm263, %v243, 0
        %v328 = vsel %vm263, %v244, 0
        %v331 = vsel %vm263, %v245, 0
        %v334 = vsel %vm263, %v246, 0
        %v337 = vsel %vm263, %v247, 0
        %v340 = vsel %vm263, %v248, 0
        %v343 = vsel %vm263, %v249, 0
        %v346 = vsel %vm263, %v250, 0
        %v349 = vsel %vm263, %v251, 0
        %v352 = vsel %vm263, %v252, 0
        %v355 = vsel %vm263, %v253, 0
        %v358 = vsel %vm263, %v254, 0
        %360 = vmatprep.subr.mxu0 0.0
        %361 = vmatpush1.msra.mxu0 %v255
        %362 = vmatprep.subr.mxu0 0.0
        %363 = vmatpush1.msra.mxu0 0.0
        %364 = vmatprep.subr.mxu0 0.0
        %365 = vmatpush1.msra.mxu0 0.0
        %366 = vmatprep.subr.mxu0 0.0
        %367 = vmatpush1.msra.mxu0 0.0
        %368 = vmatprep.subr.mxu0 0.0
        %369 = vmatpush1.msra.mxu0 0.0
        %370 = vmatprep.subr.mxu0 0.0
        %371 = vmatpush1.msra.mxu0 0.0
        %372 = vmatprep.subr.mxu0 0.0
        %373 = vmatpush1.msra.mxu0 0.0
        %374 = vmatprep.subr.mxu0 0.0
        %375 = vmatpush1.msra.mxu0 0.0
        %376 = vmatprep.subr.mxu0 0.0
        %377 = vmatpush1.msra.mxu0 0.0
        %378 = vmatprep.subr.mxu0 0.0
        %379 = vmatpush1.msra.mxu0 0.0
        %380 = vmatprep.subr.mxu0 0.0
        %381 = vmatpush1.msra.mxu0 0.0
        %382 = vmatprep.subr.mxu0 0.0
        %383 = vmatpush1.msra.mxu0 0.0
        %384 = vmatprep.subr.mxu0 0.0
        %385 = vmatpush1.msra.mxu0 0.0
        %386 = vmatprep.subr.mxu0 0.0
        %387 = vmatpush1.msra.mxu0 0.0
        %388 = vmatprep.subr.mxu0 0.0
        %389 = vmatpush1.msra.mxu0 0.0
        %390 = vmatprep.subr.mxu0 0.0
        %391 = vmatpush1.msra.mxu0 0.0
        %392 = vmatprep.subr.mxu0 0.0
        %393 = vmatpush1.msra.mxu0 0.0
        %394 = vmatprep.subr.mxu0 0.0
        %395 = vmatpush1.msra.mxu0 0.0
        %396 = vmatprep.subr.mxu0 0.0
        %397 = vmatpush1.msra.mxu0 0.0
        %398 = vmatprep.subr.mxu0 0.0
        %399 = vmatpush1.msra.mxu0 0.0
        %400 = vmatprep.subr.mxu0 0.0
        %401 = vmatpush1.msra.mxu0 0.0
        %402 = vmatprep.subr.mxu0 0.0
        %403 = vmatpush1.msra.mxu0 0.0
        %404 = vmatprep.subr.mxu0 0.0
        %405 = vmatpush1.msra.mxu0 0.0
        %406 = vmatprep.subr.mxu0 0.0
        %407 = vmatpush1.msra.mxu0 0.0
        %408 = vmatprep.subr.mxu0 0.0
        %409 = vmatpush1.msra.mxu0 0.0
        %410 = vmatprep.subr.mxu0 0.0
        %411 = vmatpush1.msra.mxu0 0.0
        %412 = vmatprep.subr.mxu0 0.0
        %413 = vmatpush1.msra.mxu0 0.0
        %414 = vmatprep.subr.mxu0 0.0
        %415 = vmatpush1.msra.mxu0 0.0
        %416 = vmatprep.subr.mxu0 0.0
        %417 = vmatpush1.msra.mxu0 0.0
        %418 = vmatprep.subr.mxu0 0.0
        %419 = vmatpush1.msra.mxu0 0.0
        %420 = vmatprep.subr.mxu0 0.0
        %421 = vmatpush1.msra.mxu0 0.0
        %422 = vmatprep.subr.mxu0 0.0
        %423 = vmatpush1.msra.mxu0 0.0
        %424 = vmatprep.mubr.f32.mxu0 0.0
        %425 = vmatmul.mubr.f32.gmra.mrb[0].mxu0 %v265
        %v426 = vpop.f32.mrb[0].mxu0
        %v427 = vadd.f32 %v261, %v426
        %v428 = vpop.f32.mrb[0].mxu0
        %429 = vmatprep.mubr.f32.mxu0 0.0
        %430 = vmatmul.mubr.f32.gmra.mrb[0].mxu0 %v268
        %v431 = vpop.f32.mrb[0].mxu0
        %v432 = vadd.f32 %v261, %v431
        %v433 = vpop.f32.mrb[0].mxu0
        %434 = vmatprep.mubr.f32.mxu0 0.0
        %435 = vmatmul.mubr.f32.gmra.mrb[0].mxu0 %v271
        %v436 = vpop.f32.mrb[0].mxu0
        %v437 = vadd.f32 %v261, %v436
        %v438 = vpop.f32.mrb[0].mxu0
        %439 = vmatprep.mubr.f32.mxu0 0.0
        %440 = vmatmul.mubr.f32.gmra.mrb[0].mxu0 %v274
        %v441 = vpop.f32.mrb[0].mxu0
        %v442 = vadd.f32 %v261, %v441
        %v443 = vpop.f32.mrb[0].mxu0
        %444 = vmatprep.mubr.f32.mxu0 0.0
        %445 = vmatmul.mubr.f32.gmra.mrb[0].mxu0 %v277
        %v446 = vpop.f32.mrb[0].mxu0
        %v447 = vadd.f32 %v261, %v446
        %v448 = vpop.f32.mrb[0].mxu0
        %449 = vmatprep.mubr.f32.mxu0 0.0
        %450 = vmatmul.mubr.f32.gmra.mrb[0].mxu0 %v280
        %v451 = vpop.f32.mrb[0].mxu0
        %v452 = vadd.f32 %v261, %v451
        %v453 = vpop.f32.mrb[0].mxu0
        %454 = vmatprep.mubr.f32.mxu0 0.0
        %455 = vmatmul.mubr.f32.gmra.mrb[0].mxu0 %v283
        %v456 = vpop.f32.mrb[0].mxu0
        %v457 = vadd.f32 %v261, %v456
        %v458 = vpop.f32.mrb[0].mxu0
        %459 = vmatprep.mubr.f32.mxu0 0.0
        %460 = vmatmul.mubr.f32.gmra.mrb[0].mxu0 %v286
        %v461 = vpop.f32.mrb[0].mxu0
        %v462 = vadd.f32 %v261, %v461
        %v463 = vpop.f32.mrb[0].mxu0
        %464 = vmatprep.mubr.f32.mxu0 0.0
        %465 = vmatmul.mubr.f32.gmra.mrb[0].mxu0 %v289
        %v466 = vpop.f32.mrb[0].mxu0
        %v467 = vadd.f32 %v261, %v466
        %v468 = vpop.f32.mrb[0].mxu0
        %469 = vmatprep.mubr.f32.mxu0 0.0
        %470 = vmatmul.mubr.f32.gmra.mrb[0].mxu0 %v292
        %v471 = vpop.f32.mrb[0].mxu0
        %v472 = vadd.f32 %v261, %v471
        %v473 = vpop.f32.mrb[0].mxu0
        %474 = vmatprep.mubr.f32.mxu0 0.0
        %475 = vmatmul.mubr.f32.gmra.mrb[0].mxu0 %v295
        %v476 = vpop.f32.mrb[0].mxu0
        %v477 = vadd.f32 %v261, %v476
        %v478 = vpop.f32.mrb[0].mxu0
        %479 = vmatprep.mubr.f32.mxu0 0.0
        %480 = vmatmul.mubr.f32.gmra.mrb[0].mxu0 %v298
        %v481 = vpop.f32.mrb[0].mxu0
        %v482 = vadd.f32 %v261, %v481
        %v483 = vpop.f32.mrb[0].mxu0
        %484 = vmatprep.mubr.f32.mxu0 0.0
        %485 = vmatmul.mubr.f32.gmra.mrb[0].mxu0 %v301
        %v486 = vpop.f32.mrb[0].mxu0
        %v487 = vadd.f32 %v261, %v486
        %v488 = vpop.f32.mrb[0].mxu0
        %489 = vmatprep.mubr.f32.mxu0 0.0
        %490 = vmatmul.mubr.f32.gmra.mrb[0].mxu0 %v304
        %v491 = vpop.f32.mrb[0].mxu0
        %v492 = vadd.f32 %v261, %v491
        %v493 = vpop.f32.mrb[0].mxu0
        %494 = vmatprep.mubr.f32.mxu0 0.0
        %495 = vmatmul.mubr.f32.gmra.mrb[0].mxu0 %v307
        %v496 = vpop.f32.mrb[0].mxu0
        %v497 = vadd.f32 %v261, %v496
        %v498 = vpop.f32.mrb[0].mxu0
        %499 = vmatprep.mubr.f32.mxu0 0.0
        %500 = vmatmul.mubr.f32.gmra.mrb[0].mxu0 %v310
        %v501 = vpop.f32.mrb[0].mxu0
        %v502 = vadd.f32 %v261, %v501
        %v503 = vpop.f32.mrb[0].mxu0
        %504 = vmatprep.mubr.f32.mxu0 0.0
        %505 = vmatmul.mubr.f32.gmra.mrb[0].mxu0 %v313
        %v506 = vpop.f32.mrb[0].mxu0
        %v507 = vadd.f32 %v261, %v506
        %v508 = vpop.f32.mrb[0].mxu0
        %509 = vmatprep.mubr.f32.mxu0 0.0
        %510 = vmatmul.mubr.f32.gmra.mrb[0].mxu0 %v316
        %v511 = vpop.f32.mrb[0].mxu0
        %v512 = vadd.f32 %v261, %v511
        %v513 = vpop.f32.mrb[0].mxu0
        %514 = vmatprep.mubr.f32.mxu0 0.0
        %515 = vmatmul.mubr.f32.gmra.mrb[0].mxu0 %v319
        %v516 = vpop.f32.mrb[0].mxu0
        %v517 = vadd.f32 %v261, %v516
        %v518 = vpop.f32.mrb[0].mxu0
        %519 = vmatprep.mubr.f32.mxu0 0.0
        %520 = vmatmul.mubr.f32.gmra.mrb[0].mxu0 %v322
        %v521 = vpop.f32.mrb[0].mxu0
        %v522 = vadd.f32 %v261, %v521
        %v523 = vpop.f32.mrb[0].mxu0
        %524 = vmatprep.mubr.f32.mxu0 0.0
        %525 = vmatmul.mubr.f32.gmra.mrb[0].mxu0 %v325
        %v526 = vpop.f32.mrb[0].mxu0
        %v527 = vadd.f32 %v261, %v526
        %v528 = vpop.f32.mrb[0].mxu0
        %529 = vmatprep.mubr.f32.mxu0 0.0
        %530 = vmatmul.mubr.f32.gmra.mrb[0].mxu0 %v328
        %v531 = vpop.f32.mrb[0].mxu0
        %v532 = vadd.f32 %v261, %v531
        %v533 = vpop.f32.mrb[0].mxu0
        %534 = vmatprep.mubr.f32.mxu0 0.0
        %535 = vmatmul.mubr.f32.gmra.mrb[0].mxu0 %v331
        %v536 = vpop.f32.mrb[0].mxu0
        %v537 = vadd.f32 %v261, %v536
        %v538 = vpop.f32.mrb[0].mxu0
        %539 = vmatprep.mubr.f32.mxu0 0.0
        %540 = vmatmul.mubr.f32.gmra.mrb[0].mxu0 %v334
        %v541 = vpop.f32.mrb[0].mxu0
        %v542 = vadd.f32 %v261, %v541
        %v543 = vpop.f32.mrb[0].mxu0
        %544 = vmatprep.mubr.f32.mxu0 0.0
        %545 = vmatmul.mubr.f32.gmra.mrb[0].mxu0 %v337
        %v546 = vpop.f32.mrb[0].mxu0
        %v547 = vadd.f32 %v261, %v546
        %v548 = vpop.f32.mrb[0].mxu0
        %549 = vmatprep.mubr.f32.mxu0 0.0
        %550 = vmatmul.mubr.f32.gmra.mrb[0].mxu0 %v340
        %v551 = vpop.f32.mrb[0].mxu0
        %v552 = vadd.f32 %v261, %v551
        %v553 = vpop.f32.mrb[0].mxu0
        %554 = vmatprep.mubr.f32.mxu0 0.0
        %555 = vmatmul.mubr.f32.gmra.mrb[0].mxu0 %v343
        %v556 = vpop.f32.mrb[0].mxu0
        %v557 = vadd.f32 %v261, %v556
        %v558 = vpop.f32.mrb[0].mxu0
        %559 = vmatprep.mubr.f32.mxu0 0.0
        %560 = vmatmul.mubr.f32.gmra.mrb[0].mxu0 %v346
        %v561 = vpop.f32.mrb[0].mxu0
        %v562 = vadd.f32 %v261, %v561
        %v563 = vpop.f32.mrb[0].mxu0
        %564 = vmatprep.mubr.f32.mxu0 0.0
        %565 = vmatmul.mubr.f32.gmra.mrb[0].mxu0 %v349
        %v566 = vpop.f32.mrb[0].mxu0
        %v567 = vadd.f32 %v261, %v566
        %v568 = vpop.f32.mrb[0].mxu0
        %569 = vmatprep.mubr.f32.mxu0 0.0
        %570 = vmatmul.mubr.f32.gmra.mrb[0].mxu0 %v352
        %v571 = vpop.f32.mrb[0].mxu0
        %v572 = vadd.f32 %v261, %v571
        %v573 = vpop.f32.mrb[0].mxu0
        %574 = vmatprep.mubr.f32.mxu0 0.0
        %575 = vmatmul.mubr.f32.gmra.mrb[0].mxu0 %v355
        %v576 = vpop.f32.mrb[0].mxu0
        %v577 = vadd.f32 %v261, %v576
        %v578 = vpop.f32.mrb[0].mxu0
        %579 = vmatprep.mubr.f32.mxu0 0.0
        %580 = vmatmul.mubr.f32.gmra.mrb[0].mxu0 %v358
        %v581 = vpop.f32.mrb[0].mxu0
        %v582 = vadd.f32 %v261, %v581
        %v583 = vpop.f32.mrb[0].mxu0
        %584 = vdwg.mxu0
        %v585 = vmul.f32 %v427, 0.5
        %v586 = vmul.f32 %v432, 0.5
        %v587 = vmul.f32 %v437, 0.5
        %v588 = vmul.f32 %v442, 0.5
        %v589 = vmul.f32 %v447, 0.5
        %v590 = vmul.f32 %v452, 0.5
        %v591 = vmul.f32 %v457, 0.5
        %v592 = vmul.f32 %v462, 0.5
        %v593 = vmul.f32 %v467, 0.5
        %v594 = vmul.f32 %v472, 0.5
        %v595 = vmul.f32 %v477, 0.5
        %v596 = vmul.f32 %v482, 0.5
        %v597 = vmul.f32 %v487, 0.5
        %v598 = vmul.f32 %v492, 0.5
        %v599 = vmul.f32 %v497, 0.5
        %v600 = vmul.f32 %v502, 0.5
        %v601 = vmul.f32 %v507, 0.5
        %v602 = vmul.f32 %v512, 0.5
        %v603 = vmul.f32 %v517, 0.5
        %v604 = vmul.f32 %v522, 0.5
        %v605 = vmul.f32 %v527, 0.5
        %v606 = vmul.f32 %v532, 0.5
        %v607 = vmul.f32 %v537, 0.5
        %v608 = vmul.f32 %v542, 0.5
        %v609 = vmul.f32 %v547, 0.5
        %v610 = vmul.f32 %v552, 0.5
        %v611 = vmul.f32 %v557, 0.5
        %v612 = vmul.f32 %v562, 0.5
        %v613 = vmul.f32 %v567, 0.5
        %v614 = vmul.f32 %v572, 0.5
        %v615 = vmul.f32 %v577, 0.5
        %v616 = vmul.f32 %v582, 0.5
        %v617 = vmul.f32 %v427, 0.70710677
        %v618 = vmul.f32 %v432, 0.70710677
        %v619 = vmul.f32 %v437, 0.70710677
        %v620 = vmul.f32 %v442, 0.70710677
        %v621 = vmul.f32 %v447, 0.70710677
        %v622 = vmul.f32 %v452, 0.70710677
        %v623 = vmul.f32 %v457, 0.70710677
        %v624 = vmul.f32 %v462, 0.70710677
        %v625 = vmul.f32 %v467, 0.70710677
        %v626 = vmul.f32 %v472, 0.70710677
        %v627 = vmul.f32 %v477, 0.70710677
        %v628 = vmul.f32 %v482, 0.70710677
        %v629 = vmul.f32 %v487, 0.70710677
        %v630 = vmul.f32 %v492, 0.70710677
        %v631 = vmul.f32 %v497, 0.70710677
        %v632 = vmul.f32 %v502, 0.70710677
        %v633 = vmul.f32 %v507, 0.70710677
        %v634 = vmul.f32 %v512, 0.70710677
        %v635 = vmul.f32 %v517, 0.70710677
        %v636 = vmul.f32 %v522, 0.70710677
        %v637 = vmul.f32 %v527, 0.70710677
        %v638 = vmul.f32 %v532, 0.70710677
        %v639 = vmul.f32 %v537, 0.70710677
        %v640 = vmul.f32 %v542, 0.70710677
        %v641 = vmul.f32 %v547, 0.70710677
        %v642 = vmul.f32 %v552, 0.70710677
        %v643 = vmul.f32 %v557, 0.70710677
        %v644 = vmul.f32 %v562, 0.70710677
        %v645 = vmul.f32 %v567, 0.70710677
        %v646 = vmul.f32 %v572, 0.70710677
        %v647 = vmul.f32 %v577, 0.70710677
        %v648 = vmul.f32 %v582, 0.70710677
        %v649 = verf.f32.pop %v617
        %v650 = verf.f32.pop %v618
        %v651 = verf.f32.pop %v619
        %v652 = verf.f32.pop %v620
        %v653 = verf.f32.pop %v621
        %v654 = verf.f32.pop %v622
        %v655 = verf.f32.pop %v623
        %v656 = verf.f32.pop %v624
        %v657 = verf.f32.pop %v625
        %v658 = verf.f32.pop %v626
        %v659 = verf.f32.pop %v627
        %v660 = verf.f32.pop %v628
        %v661 = verf.f32.pop %v629
        %v662 = verf.f32.pop %v630
        %v663 = verf.f32.pop %v631
        %v664 = verf.f32.pop %v632
        %v665 = verf.f32.pop %v633
        %v666 = verf.f32.pop %v634
        %v667 = verf.f32.pop %v635
        %v668 = verf.f32.pop %v636
        %v669 = verf.f32.pop %v637
        %v670 = verf.f32.pop %v638
        %v671 = verf.f32.pop %v639
        %v672 = verf.f32.pop %v640
        %v673 = verf.f32.pop %v641
        %v674 = verf.f32.pop %v642
        %v675 = verf.f32.pop %v643
        %v676 = verf.f32.pop %v644
        %v677 = verf.f32.pop %v645
        %v678 = verf.f32.pop %v646
        %v679 = verf.f32.pop %v647
        %v680 = verf.f32.pop %v648
        %v681 = vadd.f32 %v649, 1.0
        %v682 = vadd.f32 %v650, 1.0
        %v683 = vadd.f32 %v651, 1.0
        %v684 = vadd.f32 %v652, 1.0
        %v685 = vadd.f32 %v653, 1.0
        %v686 = vadd.f32 %v654, 1.0
        %v687 = vadd.f32 %v655, 1.0
        %v688 = vadd.f32 %v656, 1.0
        %v689 = vadd.f32 %v657, 1.0
        %v690 = vadd.f32 %v658, 1.0
        %v691 = vadd.f32 %v659, 1.0
        %v692 = vadd.f32 %v660, 1.0
        %v693 = vadd.f32 %v661, 1.0
        %v694 = vadd.f32 %v662, 1.0
        %v695 = vadd.f32 %v663, 1.0
        %v696 = vadd.f32 %v664, 1.0
        %v697 = vadd.f32 %v665, 1.0
        %v698 = vadd.f32 %v666, 1.0
        %v699 = vadd.f32 %v667, 1.0
        %v700 = vadd.f32 %v668, 1.0
        %v701 = vadd.f32 %v669, 1.0
        %v702 = vadd.f32 %v670, 1.0
        %v703 = vadd.f32 %v671, 1.0
        %v704 = vadd.f32 %v672, 1.0
        %v705 = vadd.f32 %v673, 1.0
        %v706 = vadd.f32 %v674, 1.0
        %v707 = vadd.f32 %v675, 1.0
        %v708 = vadd.f32 %v676, 1.0
        %v709 = vadd.f32 %v677, 1.0
        %v710 = vadd.f32 %v678, 1.0
        %v711 = vadd.f32 %v679, 1.0
        %v712 = vadd.f32 %v680, 1.0
        %v713 = vmul.f32 %v585, %v681
        %v714 = vmul.f32 %v586, %v682
        %v715 = vmul.f32 %v587, %v683
        %v716 = vmul.f32 %v588, %v684
        %v717 = vmul.f32 %v589, %v685
        %v718 = vmul.f32 %v590, %v686
        %v719 = vmul.f32 %v591, %v687
        %v720 = vmul.f32 %v592, %v688
        %v721 = vmul.f32 %v593, %v689
        %v722 = vmul.f32 %v594, %v690
        %v723 = vmul.f32 %v595, %v691
        %v724 = vmul.f32 %v596, %v692
        %v725 = vmul.f32 %v597, %v693
        %v726 = vmul.f32 %v598, %v694
        %v727 = vmul.f32 %v599, %v695
        %v728 = vmul.f32 %v600, %v696
        %v729 = vmul.f32 %v601, %v697
        %v730 = vmul.f32 %v602, %v698
        %v731 = vmul.f32 %v603, %v699
        %v732 = vmul.f32 %v604, %v700
        %v733 = vmul.f32 %v605, %v701
        %v734 = vmul.f32 %v606, %v702
        %v735 = vmul.f32 %v607, %v703
        %v736 = vmul.f32 %v608, %v704
        %v737 = vmul.f32 %v609, %v705
        %v738 = vmul.f32 %v610, %v706
        %v739 = vmul.f32 %v611, %v707
        %v740 = vmul.f32 %v612, %v708
        %v741 = vmul.f32 %v613, %v709
        %v742 = vmul.f32 %v614, %v710
        %v743 = vmul.f32 %v615, %v711
        %v744 = vmul.f32 %v616, %v712
        %v745 = vlaneseq
        %v746 = vshrl.u32 %v745, 7
        %v747 = vlaneseq
        %v748 = vand.u32 %v747, 127
        %v749 = vadd.s32 %v748, 4
        %vm750 = vcmp.eq.s32.totalorder %v746, %v749
        %v751 = vsel %vm750, 1.0, 0.0
        %v752 = vadd.s32 %v746, 4
        %vm753 = vcmp.eq.s32.totalorder %v748, %v752
        %v754 = vsel %vm753, 1.0, 0.0
        %v755 = vsub.f32 %v751, %v754
        %v757 = vsel %vm263, %v713, 0
        %v760 = vsel %vm263, %v714, 0
        %v763 = vsel %vm263, %v715, 0
        %v766 = vsel %vm263, %v716, 0
        %v769 = vsel %vm263, %v717, 0
        %v772 = vsel %vm263, %v718, 0
        %v775 = vsel %vm263, %v719, 0
        %v778 = vsel %vm263, %v720, 0
        %v781 = vsel %vm263, %v721, 0
        %v784 = vsel %vm263, %v722, 0
        %v787 = vsel %vm263, %v723, 0
        %v790 = vsel %vm263, %v724, 0
        %v793 = vsel %vm263, %v725, 0
        %v796 = vsel %vm263, %v726, 0
        %v799 = vsel %vm263, %v727, 0
        %v802 = vsel %vm263, %v728, 0
        %v805 = vsel %vm263, %v729, 0
        %v808 = vsel %vm263, %v730, 0
        %v811 = vsel %vm263, %v731, 0
        %v814 = vsel %vm263, %v732, 0
        %v817 = vsel %vm263, %v733, 0
        %v820 = vsel %vm263, %v734, 0
        %v823 = vsel %vm263, %v735, 0
        %v826 = vsel %vm263, %v736, 0
        %v829 = vsel %vm263, %v737, 0
        %v832 = vsel %vm263, %v738, 0
        %v835 = vsel %vm263, %v739, 0
        %v838 = vsel %vm263, %v740, 0
        %v841 = vsel %vm263, %v741, 0
        %v844 = vsel %vm263, %v742, 0
        %v847 = vsel %vm263, %v743, 0
        %v850 = vsel %vm263, %v744, 0
        %852 = vmatprep.subr.mxu0 0.0
        %853 = vmatpush1.msra.mxu0 %v755
        %854 = vmatprep.subr.mxu0 0.0
        %855 = vmatpush1.msra.mxu0 0.0
        %856 = vmatprep.subr.mxu0 0.0
        %857 = vmatpush1.msra.mxu0 0.0
        %858 = vmatprep.subr.mxu0 0.0
        %859 = vmatpush1.msra.mxu0 0.0
        %860 = vmatprep.subr.mxu0 0.0
        %861 = vmatpush1.msra.mxu0 0.0
        %862 = vmatprep.subr.mxu0 0.0
        %863 = vmatpush1.msra.mxu0 0.0
        %864 = vmatprep.subr.mxu0 0.0
        %865 = vmatpush1.msra.mxu0 0.0
        %866 = vmatprep.subr.mxu0 0.0
        %867 = vmatpush1.msra.mxu0 0.0
        %868 = vmatprep.subr.mxu0 0.0
        %869 = vmatpush1.msra.mxu0 0.0
        %870 = vmatprep.subr.mxu0 0.0
        %871 = vmatpush1.msra.mxu0 0.0
        %872 = vmatprep.subr.mxu0 0.0
        %873 = vmatpush1.msra.mxu0 0.0
        %874 = vmatprep.subr.mxu0 0.0
        %875 = vmatpush1.msra.mxu0 0.0
        %876 = vmatprep.subr.mxu0 0.0
        %877 = vmatpush1.msra.mxu0 0.0
        %878 = vmatprep.subr.mxu0 0.0
        %879 = vmatpush1.msra.mxu0 0.0
        %880 = vmatprep.subr.mxu0 0.0
        %881 = vmatpush1.msra.mxu0 0.0
        %882 = vmatprep.subr.mxu0 0.0
        %883 = vmatpush1.msra.mxu0 0.0
        %884 = vmatprep.subr.mxu0 0.0
        %885 = vmatpush1.msra.mxu0 0.0
        %886 = vmatprep.subr.mxu0 0.0
        %887 = vmatpush1.msra.mxu0 0.0
        %888 = vmatprep.subr.mxu0 0.0
        %889 = vmatpush1.msra.mxu0 0.0
        %890 = vmatprep.subr.mxu0 0.0
        %891 = vmatpush1.msra.mxu0 0.0
        %892 = vmatprep.subr.mxu0 0.0
        %893 = vmatpush1.msra.mxu0 0.0
        %894 = vmatprep.subr.mxu0 0.0
        %895 = vmatpush1.msra.mxu0 0.0
        %896 = vmatprep.subr.mxu0 0.0
        %897 = vmatpush1.msra.mxu0 0.0
        %898 = vmatprep.subr.mxu0 0.0
        %899 = vmatpush1.msra.mxu0 0.0
        %900 = vmatprep.subr.mxu0 0.0
        %901 = vmatpush1.msra.mxu0 0.0
        %902 = vmatprep.subr.mxu0 0.0
        %903 = vmatpush1.msra.mxu0 0.0
        %904 = vmatprep.subr.mxu0 0.0
        %905 = vmatpush1.msra.mxu0 0.0
        %906 = vmatprep.subr.mxu0 0.0
        %907 = vmatpush1.msra.mxu0 0.0
        %908 = vmatprep.subr.mxu0 0.0
        %909 = vmatpush1.msra.mxu0 0.0
        %910 = vmatprep.subr.mxu0 0.0
        %911 = vmatpush1.msra.mxu0 0.0
        %912 = vmatprep.subr.mxu0 0.0
        %913 = vmatpush1.msra.mxu0 0.0
        %914 = vmatprep.subr.mxu0 0.0
        %915 = vmatpush1.msra.mxu0 0.0
        %916 = vmatprep.mubr.f32.mxu0 0.0
        %917 = vmatmul.mubr.f32.gmra.mrb[0].mxu0 %v757
        %v918 = vpop.f32.mrb[0].mxu0
        %v919 = vadd.f32 0.0, %v918
        %v920 = vpop.f32.mrb[0].mxu0
        %921 = vmatprep.mubr.f32.mxu0 0.0
        %922 = vmatmul.mubr.f32.gmra.mrb[0].mxu0 %v760
        %v923 = vpop.f32.mrb[0].mxu0
        %v924 = vadd.f32 0.0, %v923
        %v925 = vpop.f32.mrb[0].mxu0
        %926 = vmatprep.mubr.f32.mxu0 0.0
        %927 = vmatmul.mubr.f32.gmra.mrb[0].mxu0 %v763
        %v928 = vpop.f32.mrb[0].mxu0
        %v929 = vadd.f32 0.0, %v928
        %v930 = vpop.f32.mrb[0].mxu0
        %931 = vmatprep.mubr.f32.mxu0 0.0
        %932 = vmatmul.mubr.f32.gmra.mrb[0].mxu0 %v766
        %v933 = vpop.f32.mrb[0].mxu0
        %v934 = vadd.f32 0.0, %v933
        %v935 = vpop.f32.mrb[0].mxu0
        %936 = vmatprep.mubr.f32.mxu0 0.0
        %937 = vmatmul.mubr.f32.gmra.mrb[0].mxu0 %v769
        %v938 = vpop.f32.mrb[0].mxu0
        %v939 = vadd.f32 0.0, %v938
        %v940 = vpop.f32.mrb[0].mxu0
        %941 = vmatprep.mubr.f32.mxu0 0.0
        %942 = vmatmul.mubr.f32.gmra.mrb[0].mxu0 %v772
        %v943 = vpop.f32.mrb[0].mxu0
        %v944 = vadd.f32 0.0, %v943
        %v945 = vpop.f32.mrb[0].mxu0
        %946 = vmatprep.mubr.f32.mxu0 0.0
        %947 = vmatmul.mubr.f32.gmra.mrb[0].mxu0 %v775
        %v948 = vpop.f32.mrb[0].mxu0
        %v949 = vadd.f32 0.0, %v948
        %v950 = vpop.f32.mrb[0].mxu0
        %951 = vmatprep.mubr.f32.mxu0 0.0
        %952 = vmatmul.mubr.f32.gmra.mrb[0].mxu0 %v778
        %v953 = vpop.f32.mrb[0].mxu0
        %v954 = vadd.f32 0.0, %v953
        %v955 = vpop.f32.mrb[0].mxu0
        %956 = vmatprep.mubr.f32.mxu0 0.0
        %957 = vmatmul.mubr.f32.gmra.mrb[0].mxu0 %v781
        %v958 = vpop.f32.mrb[0].mxu0
        %v959 = vadd.f32 0.0, %v958
        %v960 = vpop.f32.mrb[0].mxu0
        %961 = vmatprep.mubr.f32.mxu0 0.0
        %962 = vmatmul.mubr.f32.gmra.mrb[0].mxu0 %v784
        %v963 = vpop.f32.mrb[0].mxu0
        %v964 = vadd.f32 0.0, %v963
        %v965 = vpop.f32.mrb[0].mxu0
        %966 = vmatprep.mubr.f32.mxu0 0.0
        %967 = vmatmul.mubr.f32.gmra.mrb[0].mxu0 %v787
        %v968 = vpop.f32.mrb[0].mxu0
        %v969 = vadd.f32 0.0, %v968
        %v970 = vpop.f32.mrb[0].mxu0
        %971 = vmatprep.mubr.f32.mxu0 0.0
        %972 = vmatmul.mubr.f32.gmra.mrb[0].mxu0 %v790
        %v973 = vpop.f32.mrb[0].mxu0
        %v974 = vadd.f32 0.0, %v973
        %v975 = vpop.f32.mrb[0].mxu0
        %976 = vmatprep.mubr.f32.mxu0 0.0
        %977 = vmatmul.mubr.f32.gmra.mrb[0].mxu0 %v793
        %v978 = vpop.f32.mrb[0].mxu0
        %v979 = vadd.f32 0.0, %v978
        %v980 = vpop.f32.mrb[0].mxu0
        %981 = vmatprep.mubr.f32.mxu0 0.0
        %982 = vmatmul.mubr.f32.gmra.mrb[0].mxu0 %v796
        %v983 = vpop.f32.mrb[0].mxu0
        %v984 = vadd.f32 0.0, %v983
        %v985 = vpop.f32.mrb[0].mxu0
        %986 = vmatprep.mubr.f32.mxu0 0.0
        %987 = vmatmul.mubr.f32.gmra.mrb[0].mxu0 %v799
        %v988 = vpop.f32.mrb[0].mxu0
        %v989 = vadd.f32 0.0, %v988
        %v990 = vpop.f32.mrb[0].mxu0
        %991 = vmatprep.mubr.f32.mxu0 0.0
        %992 = vmatmul.mubr.f32.gmra.mrb[0].mxu0 %v802
        %v993 = vpop.f32.mrb[0].mxu0
        %v994 = vadd.f32 0.0, %v993
        %v995 = vpop.f32.mrb[0].mxu0
        %996 = vmatprep.mubr.f32.mxu0 0.0
        %997 = vmatmul.mubr.f32.gmra.mrb[0].mxu0 %v805
        %v998 = vpop.f32.mrb[0].mxu0
        %v999 = vadd.f32 0.0, %v998
        %v1000 = vpop.f32.mrb[0].mxu0
        %1001 = vmatprep.mubr.f32.mxu0 0.0
        %1002 = vmatmul.mubr.f32.gmra.mrb[0].mxu0 %v808
        %v1003 = vpop.f32.mrb[0].mxu0
        %v1004 = vadd.f32 0.0, %v1003
        %v1005 = vpop.f32.mrb[0].mxu0
        %1006 = vmatprep.mubr.f32.mxu0 0.0
        %1007 = vmatmul.mubr.f32.gmra.mrb[0].mxu0 %v811
        %v1008 = vpop.f32.mrb[0].mxu0
        %v1009 = vadd.f32 0.0, %v1008
        %v1010 = vpop.f32.mrb[0].mxu0
        %1011 = vmatprep.mubr.f32.mxu0 0.0
        %1012 = vmatmul.mubr.f32.gmra.mrb[0].mxu0 %v814
        %v1013 = vpop.f32.mrb[0].mxu0
        %v1014 = vadd.f32 0.0, %v1013
        %v1015 = vpop.f32.mrb[0].mxu0
        %1016 = vmatprep.mubr.f32.mxu0 0.0
        %1017 = vmatmul.mubr.f32.gmra.mrb[0].mxu0 %v817
        %v1018 = vpop.f32.mrb[0].mxu0
        %v1019 = vadd.f32 0.0, %v1018
        %v1020 = vpop.f32.mrb[0].mxu0
        %1021 = vmatprep.mubr.f32.mxu0 0.0
        %1022 = vmatmul.mubr.f32.gmra.mrb[0].mxu0 %v820
        %v1023 = vpop.f32.mrb[0].mxu0
        %v1024 = vadd.f32 0.0, %v1023
        %v1025 = vpop.f32.mrb[0].mxu0
        %1026 = vmatprep.mubr.f32.mxu0 0.0
        %1027 = vmatmul.mubr.f32.gmra.mrb[0].mxu0 %v823
        %v1028 = vpop.f32.mrb[0].mxu0
        %v1029 = vadd.f32 0.0, %v1028
        %v1030 = vpop.f32.mrb[0].mxu0
        %1031 = vmatprep.mubr.f32.mxu0 0.0
        %1032 = vmatmul.mubr.f32.gmra.mrb[0].mxu0 %v826
        %v1033 = vpop.f32.mrb[0].mxu0
        %v1034 = vadd.f32 0.0, %v1033
        %v1035 = vpop.f32.mrb[0].mxu0
        %1036 = vmatprep.mubr.f32.mxu0 0.0
        %1037 = vmatmul.mubr.f32.gmra.mrb[0].mxu0 %v829
        %v1038 = vpop.f32.mrb[0].mxu0
        %v1039 = vadd.f32 0.0, %v1038
        %v1040 = vpop.f32.mrb[0].mxu0
        %1041 = vmatprep.mubr.f32.mxu0 0.0
        %1042 = vmatmul.mubr.f32.gmra.mrb[0].mxu0 %v832
        %v1043 = vpop.f32.mrb[0].mxu0
        %v1044 = vadd.f32 0.0, %v1043
        %v1045 = vpop.f32.mrb[0].mxu0
        %1046 = vmatprep.mubr.f32.mxu0 0.0
        %1047 = vmatmul.mubr.f32.gmra.mrb[0].mxu0 %v835
        %v1048 = vpop.f32.mrb[0].mxu0
        %v1049 = vadd.f32 0.0, %v1048
        %v1050 = vpop.f32.mrb[0].mxu0
        %1051 = vmatprep.mubr.f32.mxu0 0.0
        %1052 = vmatmul.mubr.f32.gmra.mrb[0].mxu0 %v838
        %v1053 = vpop.f32.mrb[0].mxu0
        %v1054 = vadd.f32 0.0, %v1053
        %v1055 = vpop.f32.mrb[0].mxu0
        %1056 = vmatprep.mubr.f32.mxu0 0.0
        %1057 = vmatmul.mubr.f32.gmra.mrb[0].mxu0 %v841
        %v1058 = vpop.f32.mrb[0].mxu0
        %v1059 = vadd.f32 0.0, %v1058
        %v1060 = vpop.f32.mrb[0].mxu0
        %1061 = vmatprep.mubr.f32.mxu0 0.0
        %1062 = vmatmul.mubr.f32.gmra.mrb[0].mxu0 %v844
        %v1063 = vpop.f32.mrb[0].mxu0
        %v1064 = vadd.f32 0.0, %v1063
        %v1065 = vpop.f32.mrb[0].mxu0
        %1066 = vmatprep.mubr.f32.mxu0 0.0
        %1067 = vmatmul.mubr.f32.gmra.mrb[0].mxu0 %v847
        %v1068 = vpop.f32.mrb[0].mxu0
        %v1069 = vadd.f32 0.0, %v1068
        %v1070 = vpop.f32.mrb[0].mxu0
        %1071 = vmatprep.mubr.f32.mxu0 0.0
        %1072 = vmatmul.mubr.f32.gmra.mrb[0].mxu0 %v850
        %v1073 = vpop.f32.mrb[0].mxu0
        %v1074 = vadd.f32 0.0, %v1073
        %v1075 = vpop.f32.mrb[0].mxu0
        %1076 = vdwg.mxu0
        %v1078 = vsel %vm263, %v919, 0
        %v1081 = vsel %vm263, %v924, 0
        %1083 = vmatprep.subr.mxu0 0.0
        %1084 = vmatpush1.xpose.msra.mxu0 %v757
        %1085 = vmatprep.subr.mxu0 0.0
        %1086 = vmatpush1.xpose.msra.mxu0 %v760
        %1087 = vmatprep.subr.mxu0 0.0
        %1088 = vmatpush1.xpose.msra.mxu0 0.0
        %1089 = vmatprep.subr.mxu0 0.0
        %1090 = vmatpush1.xpose.msra.mxu0 0.0
        %1091 = vmatprep.subr.mxu0 0.0
        %1092 = vmatpush1.xpose.msra.mxu0 0.0
        %1093 = vmatprep.subr.mxu0 0.0
        %1094 = vmatpush1.xpose.msra.mxu0 0.0
        %1095 = vmatprep.subr.mxu0 0.0
        %1096 = vmatpush1.xpose.msra.mxu0 0.0
        %1097 = vmatprep.subr.mxu0 0.0
        %1098 = vmatpush1.xpose.msra.mxu0 0.0
        %1099 = vmatprep.subr.mxu0 0.0
        %1100 = vmatpush1.xpose.msra.mxu0 0.0
        %1101 = vmatprep.subr.mxu0 0.0
        %1102 = vmatpush1.xpose.msra.mxu0 0.0
        %1103 = vmatprep.subr.mxu0 0.0
        %1104 = vmatpush1.xpose.msra.mxu0 0.0
        %1105 = vmatprep.subr.mxu0 0.0
        %1106 = vmatpush1.xpose.msra.mxu0 0.0
        %1107 = vmatprep.subr.mxu0 0.0
        %1108 = vmatpush1.xpose.msra.mxu0 0.0
        %1109 = vmatprep.subr.mxu0 0.0
        %1110 = vmatpush1.xpose.msra.mxu0 0.0
        %1111 = vmatprep.subr.mxu0 0.0
        %1112 = vmatpush1.xpose.msra.mxu0 0.0
        %1113 = vmatprep.subr.mxu0 0.0
        %1114 = vmatpush1.xpose.msra.mxu0 0.0
        %1115 = vmatprep.subr.mxu0 0.0
        %1116 = vmatpush1.xpose.msra.mxu0 0.0
        %1117 = vmatprep.subr.mxu0 0.0
        %1118 = vmatpush1.xpose.msra.mxu0 0.0
        %1119 = vmatprep.subr.mxu0 0.0
        %1120 = vmatpush1.xpose.msra.mxu0 0.0
        %1121 = vmatprep.subr.mxu0 0.0
        %1122 = vmatpush1.xpose.msra.mxu0 0.0
        %1123 = vmatprep.subr.mxu0 0.0
        %1124 = vmatpush1.xpose.msra.mxu0 0.0
        %1125 = vmatprep.subr.mxu0 0.0
        %1126 = vmatpush1.xpose.msra.mxu0 0.0
        %1127 = vmatprep.subr.mxu0 0.0
        %1128 = vmatpush1.xpose.msra.mxu0 0.0
        %1129 = vmatprep.subr.mxu0 0.0
        %1130 = vmatpush1.xpose.msra.mxu0 0.0
        %1131 = vmatprep.subr.mxu0 0.0
        %1132 = vmatpush1.xpose.msra.mxu0 0.0
        %1133 = vmatprep.subr.mxu0 0.0
        %1134 = vmatpush1.xpose.msra.mxu0 0.0
        %1135 = vmatprep.subr.mxu0 0.0
        %1136 = vmatpush1.xpose.msra.mxu0 0.0
        %1137 = vmatprep.subr.mxu0 0.0
        %1138 = vmatpush1.xpose.msra.mxu0 0.0
        %1139 = vmatprep.subr.mxu0 0.0
        %1140 = vmatpush1.xpose.msra.mxu0 0.0
        %1141 = vmatprep.subr.mxu0 0.0
        %1142 = vmatpush1.xpose.msra.mxu0 0.0
        %1143 = vmatprep.subr.mxu0 0.0
        %1144 = vmatpush1.xpose.msra.mxu0 0.0
        %1145 = vmatprep.subr.mxu0 0.0
        %1146 = vmatpush1.xpose.msra.mxu0 0.0
        %1147 = vmatprep.mubr.f32.mxu0 0.0
        %1148 = vmatmul.mubr.f32.gmra.mrb[0].mxu0 %v1078
        %v1149 = vpop.f32.mrb[0].mxu0
        %v1150 = vadd.f32 0.0, %v1149
        %v1151 = vpop.f32.mrb[0].mxu0
        %1152 = vmatprep.mubr.f32.mxu0 0.0
        %1153 = vmatmul.mubr.f32.gmra.mrb[0].mxu0 %v1081
        %v1154 = vpop.f32.mrb[0].mxu0
        %v1155 = vadd.f32 0.0, %v1154
        %v1156 = vpop.f32.mrb[0].mxu0
        %1157 = vdwg.mxu0
        %v1159 = vsel %vm263, %v929, 0
        %v1162 = vsel %vm263, %v934, 0
        %1164 = vmatprep.subr.mxu0 0.0
        %1165 = vmatpush1.xpose.msra.mxu0 %v763
        %1166 = vmatprep.subr.mxu0 0.0
        %1167 = vmatpush1.xpose.msra.mxu0 %v766
        %1168 = vmatprep.subr.mxu0 0.0
        %1169 = vmatpush1.xpose.msra.mxu0 0.0
        %1170 = vmatprep.subr.mxu0 0.0
        %1171 = vmatpush1.xpose.msra.mxu0 0.0
        %1172 = vmatprep.subr.mxu0 0.0
        %1173 = vmatpush1.xpose.msra.mxu0 0.0
        %1174 = vmatprep.subr.mxu0 0.0
        %1175 = vmatpush1.xpose.msra.mxu0 0.0
        %1176 = vmatprep.subr.mxu0 0.0
        %1177 = vmatpush1.xpose.msra.mxu0 0.0
        %1178 = vmatprep.subr.mxu0 0.0
        %1179 = vmatpush1.xpose.msra.mxu0 0.0
        %1180 = vmatprep.subr.mxu0 0.0
        %1181 = vmatpush1.xpose.msra.mxu0 0.0
        %1182 = vmatprep.subr.mxu0 0.0
        %1183 = vmatpush1.xpose.msra.mxu0 0.0
        %1184 = vmatprep.subr.mxu0 0.0
        %1185 = vmatpush1.xpose.msra.mxu0 0.0
        %1186 = vmatprep.subr.mxu0 0.0
        %1187 = vmatpush1.xpose.msra.mxu0 0.0
        %1188 = vmatprep.subr.mxu0 0.0
        %1189 = vmatpush1.xpose.msra.mxu0 0.0
        %1190 = vmatprep.subr.mxu0 0.0
        %1191 = vmatpush1.xpose.msra.mxu0 0.0
        %1192 = vmatprep.subr.mxu0 0.0
        %1193 = vmatpush1.xpose.msra.mxu0 0.0
        %1194 = vmatprep.subr.mxu0 0.0
        %1195 = vmatpush1.xpose.msra.mxu0 0.0
        %1196 = vmatprep.subr.mxu0 0.0
        %1197 = vmatpush1.xpose.msra.mxu0 0.0
        %1198 = vmatprep.subr.mxu0 0.0
        %1199 = vmatpush1.xpose.msra.mxu0 0.0
        %1200 = vmatprep.subr.mxu0 0.0
        %1201 = vmatpush1.xpose.msra.mxu0 0.0
        %1202 = vmatprep.subr.mxu0 0.0
        %1203 = vmatpush1.xpose.msra.mxu0 0.0
        %1204 = vmatprep.subr.mxu0 0.0
        %1205 = vmatpush1.xpose.msra.mxu0 0.0
        %1206 = vmatprep.subr.mxu0 0.0
        %1207 = vmatpush1.xpose.msra.mxu0 0.0
        %1208 = vmatprep.subr.mxu0 0.0
        %1209 = vmatpush1.xpose.msra.mxu0 0.0
        %1210 = vmatprep.subr.mxu0 0.0
        %1211 = vmatpush1.xpose.msra.mxu0 0.0
        %1212 = vmatprep.subr.mxu0 0.0
        %1213 = vmatpush1.xpose.msra.mxu0 0.0
        %1214 = vmatprep.subr.mxu0 0.0
        %1215 = vmatpush1.xpose.msra.mxu0 0.0
        %1216 = vmatprep.subr.mxu0 0.0
        %1217 = vmatpush1.xpose.msra.mxu0 0.0
        %1218 = vmatprep.subr.mxu0 0.0
        %1219 = vmatpush1.xpose.msra.mxu0 0.0
        %1220 = vmatprep.subr.mxu0 0.0
        %1221 = vmatpush1.xpose.msra.mxu0 0.0
        %1222 = vmatprep.subr.mxu0 0.0
        %1223 = vmatpush1.xpose.msra.mxu0 0.0
        %1224 = vmatprep.subr.mxu0 0.0
        %1225 = vmatpush1.xpose.msra.mxu0 0.0
        %1226 = vmatprep.subr.mxu0 0.0
        %1227 = vmatpush1.xpose.msra.mxu0 0.0
        %1228 = vmatprep.mubr.f32.mxu0 0.0
        %1229 = vmatmul.mubr.f32.gmra.mrb[0].mxu0 %v1159
        %v1230 = vpop.f32.mrb[0].mxu0
        %v1231 = vadd.f32 0.0, %v1230
        %v1232 = vpop.f32.mrb[0].mxu0
        %1233 = vmatprep.mubr.f32.mxu0 0.0
        %1234 = vmatmul.mubr.f32.gmra.mrb[0].mxu0 %v1162
        %v1235 = vpop.f32.mrb[0].mxu0
        %v1236 = vadd.f32 0.0, %v1235
        %v1237 = vpop.f32.mrb[0].mxu0
        %1238 = vdwg.mxu0
        %v1240 = vsel %vm263, %v939, 0
        %v1243 = vsel %vm263, %v944, 0
        %1245 = vmatprep.subr.mxu0 0.0
        %1246 = vmatpush1.xpose.msra.mxu0 %v769
        %1247 = vmatprep.subr.mxu0 0.0
        %1248 = vmatpush1.xpose.msra.mxu0 %v772
        %1249 = vmatprep.subr.mxu0 0.0
        %1250 = vmatpush1.xpose.msra.mxu0 0.0
        %1251 = vmatprep.subr.mxu0 0.0
        %1252 = vmatpush1.xpose.msra.mxu0 0.0
        %1253 = vmatprep.subr.mxu0 0.0
        %1254 = vmatpush1.xpose.msra.mxu0 0.0
        %1255 = vmatprep.subr.mxu0 0.0
        %1256 = vmatpush1.xpose.msra.mxu0 0.0
        %1257 = vmatprep.subr.mxu0 0.0
        %1258 = vmatpush1.xpose.msra.mxu0 0.0
        %1259 = vmatprep.subr.mxu0 0.0
        %1260 = vmatpush1.xpose.msra.mxu0 0.0
        %1261 = vmatprep.subr.mxu0 0.0
        %1262 = vmatpush1.xpose.msra.mxu0 0.0
        %1263 = vmatprep.subr.mxu0 0.0
        %1264 = vmatpush1.xpose.msra.mxu0 0.0
        %1265 = vmatprep.subr.mxu0 0.0
        %1266 = vmatpush1.xpose.msra.mxu0 0.0
        %1267 = vmatprep.subr.mxu0 0.0
        %1268 = vmatpush1.xpose.msra.mxu0 0.0
        %1269 = vmatprep.subr.mxu0 0.0
        %1270 = vmatpush1.xpose.msra.mxu0 0.0
        %1271 = vmatprep.subr.mxu0 0.0
        %1272 = vmatpush1.xpose.msra.mxu0 0.0
        %1273 = vmatprep.subr.mxu0 0.0
        %1274 = vmatpush1.xpose.msra.mxu0 0.0
        %1275 = vmatprep.subr.mxu0 0.0
        %1276 = vmatpush1.xpose.msra.mxu0 0.0
        %1277 = vmatprep.subr.mxu0 0.0
        %1278 = vmatpush1.xpose.msra.mxu0 0.0
        %1279 = vmatprep.subr.mxu0 0.0
        %1280 = vmatpush1.xpose.msra.mxu0 0.0
        %1281 = vmatprep.subr.mxu0 0.0
        %1282 = vmatpush1.xpose.msra.mxu0 0.0
        %1283 = vmatprep.subr.mxu0 0.0
        %1284 = vmatpush1.xpose.msra.mxu0 0.0
        %1285 = vmatprep.subr.mxu0 0.0
        %1286 = vmatpush1.xpose.msra.mxu0 0.0
        %1287 = vmatprep.subr.mxu0 0.0
        %1288 = vmatpush1.xpose.msra.mxu0 0.0
        %1289 = vmatprep.subr.mxu0 0.0
        %1290 = vmatpush1.xpose.msra.mxu0 0.0
        %1291 = vmatprep.subr.mxu0 0.0
        %1292 = vmatpush1.xpose.msra.mxu0 0.0
        %1293 = vmatprep.subr.mxu0 0.0
        %1294 = vmatpush1.xpose.msra.mxu0 0.0
        %1295 = vmatprep.subr.mxu0 0.0
        %1296 = vmatpush1.xpose.msra.mxu0 0.0
        %1297 = vmatprep.subr.mxu0 0.0
        %1298 = vmatpush1.xpose.msra.mxu0 0.0
        %1299 = vmatprep.subr.mxu0 0.0
        %1300 = vmatpush1.xpose.msra.mxu0 0.0
        %1301 = vmatprep.subr.mxu0 0.0
        %1302 = vmatpush1.xpose.msra.mxu0 0.0
        %1303 = vmatprep.subr.mxu0 0.0
        %1304 = vmatpush1.xpose.msra.mxu0 0.0
        %1305 = vmatprep.subr.mxu0 0.0
        %1306 = vmatpush1.xpose.msra.mxu0 0.0
        %1307 = vmatprep.subr.mxu0 0.0
        %1308 = vmatpush1.xpose.msra.mxu0 0.0
        %1309 = vmatprep.mubr.f32.mxu0 0.0
        %1310 = vmatmul.mubr.f32.gmra.mrb[0].mxu0 %v1240
        %v1311 = vpop.f32.mrb[0].mxu0
        %v1312 = vadd.f32 0.0, %v1311
        %v1313 = vpop.f32.mrb[0].mxu0
        %1314 = vmatprep.mubr.f32.mxu0 0.0
        %1315 = vmatmul.mubr.f32.gmra.mrb[0].mxu0 %v1243
        %v1316 = vpop.f32.mrb[0].mxu0
        %v1317 = vadd.f32 0.0, %v1316
        %v1318 = vpop.f32.mrb[0].mxu0
        %1319 = vdwg.mxu0
        %v1321 = vsel %vm263, %v949, 0
        %v1324 = vsel %vm263, %v954, 0
        %1326 = vmatprep.subr.mxu0 0.0
        %1327 = vmatpush1.xpose.msra.mxu0 %v775
        %1328 = vmatprep.subr.mxu0 0.0
        %1329 = vmatpush1.xpose.msra.mxu0 %v778
        %1330 = vmatprep.subr.mxu0 0.0
        %1331 = vmatpush1.xpose.msra.mxu0 0.0
        %1332 = vmatprep.subr.mxu0 0.0
        %1333 = vmatpush1.xpose.msra.mxu0 0.0
        %1334 = vmatprep.subr.mxu0 0.0
        %1335 = vmatpush1.xpose.msra.mxu0 0.0
        %1336 = vmatprep.subr.mxu0 0.0
        %1337 = vmatpush1.xpose.msra.mxu0 0.0
        %1338 = vmatprep.subr.mxu0 0.0
        %1339 = vmatpush1.xpose.msra.mxu0 0.0
        %1340 = vmatprep.subr.mxu0 0.0
        %1341 = vmatpush1.xpose.msra.mxu0 0.0
        %1342 = vmatprep.subr.mxu0 0.0
        %1343 = vmatpush1.xpose.msra.mxu0 0.0
        %1344 = vmatprep.subr.mxu0 0.0
        %1345 = vmatpush1.xpose.msra.mxu0 0.0
        %1346 = vmatprep.subr.mxu0 0.0
        %1347 = vmatpush1.xpose.msra.mxu0 0.0
        %1348 = vmatprep.subr.mxu0 0.0
        %1349 = vmatpush1.xpose.msra.mxu0 0.0
        %1350 = vmatprep.subr.mxu0 0.0
        %1351 = vmatpush1.xpose.msra.mxu0 0.0
        %1352 = vmatprep.subr.mxu0 0.0
        %1353 = vmatpush1.xpose.msra.mxu0 0.0
        %1354 = vmatprep.subr.mxu0 0.0
        %1355 = vmatpush1.xpose.msra.mxu0 0.0
        %1356 = vmatprep.subr.mxu0 0.0
        %1357 = vmatpush1.xpose.msra.mxu0 0.0
        %1358 = vmatprep.subr.mxu0 0.0
        %1359 = vmatpush1.xpose.msra.mxu0 0.0
        %1360 = vmatprep.subr.mxu0 0.0
        %1361 = vmatpush1.xpose.msra.mxu0 0.0
        %1362 = vmatprep.subr.mxu0 0.0
        %1363 = vmatpush1.xpose.msra.mxu0 0.0
        %1364 = vmatprep.subr.mxu0 0.0
        %1365 = vmatpush1.xpose.msra.mxu0 0.0
        %1366 = vmatprep.subr.mxu0 0.0
        %1367 = vmatpush1.xpose.msra.mxu0 0.0
        %1368 = vmatprep.subr.mxu0 0.0
        %1369 = vmatpush1.xpose.msra.mxu0 0.0
        %1370 = vmatprep.subr.mxu0 0.0
        %1371 = vmatpush1.xpose.msra.mxu0 0.0
        %1372 = vmatprep.subr.mxu0 0.0
        %1373 = vmatpush1.xpose.msra.mxu0 0.0
        %1374 = vmatprep.subr.mxu0 0.0
        %1375 = vmatpush1.xpose.msra.mxu0 0.0
        %1376 = vmatprep.subr.mxu0 0.0
        %1377 = vmatpush1.xpose.msra.mxu0 0.0
        %1378 = vmatprep.subr.mxu0 0.0
        %1379 = vmatpush1.xpose.msra.mxu0 0.0
        %1380 = vmatprep.subr.mxu0 0.0
        %1381 = vmatpush1.xpose.msra.mxu0 0.0
        %1382 = vmatprep.subr.mxu0 0.0
        %1383 = vmatpush1.xpose.msra.mxu0 0.0
        %1384 = vmatprep.subr.mxu0 0.0
        %1385 = vmatpush1.xpose.msra.mxu0 0.0
        %1386 = vmatprep.subr.mxu0 0.0
        %1387 = vmatpush1.xpose.msra.mxu0 0.0
        %1388 = vmatprep.subr.mxu0 0.0
        %1389 = vmatpush1.xpose.msra.mxu0 0.0
        %1390 = vmatprep.mubr.f32.mxu0 0.0
        %1391 = vmatmul.mubr.f32.gmra.mrb[0].mxu0 %v1321
        %v1392 = vpop.f32.mrb[0].mxu0
        %v1393 = vadd.f32 0.0, %v1392
        %v1394 = vpop.f32.mrb[0].mxu0
        %1395 = vmatprep.mubr.f32.mxu0 0.0
        %1396 = vmatmul.mubr.f32.gmra.mrb[0].mxu0 %v1324
        %v1397 = vpop.f32.mrb[0].mxu0
        %v1398 = vadd.f32 0.0, %v1397
        %v1399 = vpop.f32.mrb[0].mxu0
        %1400 = vdwg.mxu0
        %v1402 = vsel %vm263, %v959, 0
        %v1405 = vsel %vm263, %v964, 0
        %1407 = vmatprep.subr.mxu0 0.0
        %1408 = vmatpush1.xpose.msra.mxu0 %v781
        %1409 = vmatprep.subr.mxu0 0.0
        %1410 = vmatpush1.xpose.msra.mxu0 %v784
        %1411 = vmatprep.subr.mxu0 0.0
        %1412 = vmatpush1.xpose.msra.mxu0 0.0
        %1413 = vmatprep.subr.mxu0 0.0
        %1414 = vmatpush1.xpose.msra.mxu0 0.0
        %1415 = vmatprep.subr.mxu0 0.0
        %1416 = vmatpush1.xpose.msra.mxu0 0.0
        %1417 = vmatprep.subr.mxu0 0.0
        %1418 = vmatpush1.xpose.msra.mxu0 0.0
        %1419 = vmatprep.subr.mxu0 0.0
        %1420 = vmatpush1.xpose.msra.mxu0 0.0
        %1421 = vmatprep.subr.mxu0 0.0
        %1422 = vmatpush1.xpose.msra.mxu0 0.0
        %1423 = vmatprep.subr.mxu0 0.0
        %1424 = vmatpush1.xpose.msra.mxu0 0.0
        %1425 = vmatprep.subr.mxu0 0.0
        %1426 = vmatpush1.xpose.msra.mxu0 0.0
        %1427 = vmatprep.subr.mxu0 0.0
        %1428 = vmatpush1.xpose.msra.mxu0 0.0
        %1429 = vmatprep.subr.mxu0 0.0
        %1430 = vmatpush1.xpose.msra.mxu0 0.0
        %1431 = vmatprep.subr.mxu0 0.0
        %1432 = vmatpush1.xpose.msra.mxu0 0.0
        %1433 = vmatprep.subr.mxu0 0.0
        %1434 = vmatpush1.xpose.msra.mxu0 0.0
        %1435 = vmatprep.subr.mxu0 0.0
        %1436 = vmatpush1.xpose.msra.mxu0 0.0
        %1437 = vmatprep.subr.mxu0 0.0
        %1438 = vmatpush1.xpose.msra.mxu0 0.0
        %1439 = vmatprep.subr.mxu0 0.0
        %1440 = vmatpush1.xpose.msra.mxu0 0.0
        %1441 = vmatprep.subr.mxu0 0.0
        %1442 = vmatpush1.xpose.msra.mxu0 0.0
        %1443 = vmatprep.subr.mxu0 0.0
        %1444 = vmatpush1.xpose.msra.mxu0 0.0
        %1445 = vmatprep.subr.mxu0 0.0
        %1446 = vmatpush1.xpose.msra.mxu0 0.0
        %1447 = vmatprep.subr.mxu0 0.0
        %1448 = vmatpush1.xpose.msra.mxu0 0.0
        %1449 = vmatprep.subr.mxu0 0.0
        %1450 = vmatpush1.xpose.msra.mxu0 0.0
        %1451 = vmatprep.subr.mxu0 0.0
        %1452 = vmatpush1.xpose.msra.mxu0 0.0
        %1453 = vmatprep.subr.mxu0 0.0
        %1454 = vmatpush1.xpose.msra.mxu0 0.0
        %1455 = vmatprep.subr.mxu0 0.0
        %1456 = vmatpush1.xpose.msra.mxu0 0.0
        %1457 = vmatprep.subr.mxu0 0.0
        %1458 = vmatpush1.xpose.msra.mxu0 0.0
        %1459 = vmatprep.subr.mxu0 0.0
        %1460 = vmatpush1.xpose.msra.mxu0 0.0
        %1461 = vmatprep.subr.mxu0 0.0
        %1462 = vmatpush1.xpose.msra.mxu0 0.0
        %1463 = vmatprep.subr.mxu0 0.0
        %1464 = vmatpush1.xpose.msra.mxu0 0.0
        %1465 = vmatprep.subr.mxu0 0.0
        %1466 = vmatpush1.xpose.msra.mxu0 0.0
        %1467 = vmatprep.subr.mxu0 0.0
        %1468 = vmatpush1.xpose.msra.mxu0 0.0
        %1469 = vmatprep.subr.mxu0 0.0
        %1470 = vmatpush1.xpose.msra.mxu0 0.0
        %1471 = vmatprep.mubr.f32.mxu0 0.0
        %1472 = vmatmul.mubr.f32.gmra.mrb[0].mxu0 %v1402
        %v1473 = vpop.f32.mrb[0].mxu0
        %v1474 = vadd.f32 0.0, %v1473
        %v1475 = vpop.f32.mrb[0].mxu0
        %1476 = vmatprep.mubr.f32.mxu0 0.0
        %1477 = vmatmul.mubr.f32.gmra.mrb[0].mxu0 %v1405
        %v1478 = vpop.f32.mrb[0].mxu0
        %v1479 = vadd.f32 0.0, %v1478
        %v1480 = vpop.f32.mrb[0].mxu0
        %1481 = vdwg.mxu0
        %v1483 = vsel %vm263, %v969, 0
        %v1486 = vsel %vm263, %v974, 0
        %1488 = vmatprep.subr.mxu0 0.0
        %1489 = vmatpush1.xpose.msra.mxu0 %v787
        %1490 = vmatprep.subr.mxu0 0.0
        %1491 = vmatpush1.xpose.msra.mxu0 %v790
        %1492 = vmatprep.subr.mxu0 0.0
        %1493 = vmatpush1.xpose.msra.mxu0 0.0
        %1494 = vmatprep.subr.mxu0 0.0
        %1495 = vmatpush1.xpose.msra.mxu0 0.0
        %1496 = vmatprep.subr.mxu0 0.0
        %1497 = vmatpush1.xpose.msra.mxu0 0.0
        %1498 = vmatprep.subr.mxu0 0.0
        %1499 = vmatpush1.xpose.msra.mxu0 0.0
        %1500 = vmatprep.subr.mxu0 0.0
        %1501 = vmatpush1.xpose.msra.mxu0 0.0
        %1502 = vmatprep.subr.mxu0 0.0
        %1503 = vmatpush1.xpose.msra.mxu0 0.0
        %1504 = vmatprep.subr.mxu0 0.0
        %1505 = vmatpush1.xpose.msra.mxu0 0.0
        %1506 = vmatprep.subr.mxu0 0.0
        %1507 = vmatpush1.xpose.msra.mxu0 0.0
        %1508 = vmatprep.subr.mxu0 0.0
        %1509 = vmatpush1.xpose.msra.mxu0 0.0
        %1510 = vmatprep.subr.mxu0 0.0
        %1511 = vmatpush1.xpose.msra.mxu0 0.0
        %1512 = vmatprep.subr.mxu0 0.0
        %1513 = vmatpush1.xpose.msra.mxu0 0.0
        %1514 = vmatprep.subr.mxu0 0.0
        %1515 = vmatpush1.xpose.msra.mxu0 0.0
        %1516 = vmatprep.subr.mxu0 0.0
        %1517 = vmatpush1.xpose.msra.mxu0 0.0
        %1518 = vmatprep.subr.mxu0 0.0
        %1519 = vmatpush1.xpose.msra.mxu0 0.0
        %1520 = vmatprep.subr.mxu0 0.0
        %1521 = vmatpush1.xpose.msra.mxu0 0.0
        %1522 = vmatprep.subr.mxu0 0.0
        %1523 = vmatpush1.xpose.msra.mxu0 0.0
        %1524 = vmatprep.subr.mxu0 0.0
        %1525 = vmatpush1.xpose.msra.mxu0 0.0
        %1526 = vmatprep.subr.mxu0 0.0
        %1527 = vmatpush1.xpose.msra.mxu0 0.0
        %1528 = vmatprep.subr.mxu0 0.0
        %1529 = vmatpush1.xpose.msra.mxu0 0.0
        %1530 = vmatprep.subr.mxu0 0.0
        %1531 = vmatpush1.xpose.msra.mxu0 0.0
        %1532 = vmatprep.subr.mxu0 0.0
        %1533 = vmatpush1.xpose.msra.mxu0 0.0
        %1534 = vmatprep.subr.mxu0 0.0
        %1535 = vmatpush1.xpose.msra.mxu0 0.0
        %1536 = vmatprep.subr.mxu0 0.0
        %1537 = vmatpush1.xpose.msra.mxu0 0.0
        %1538 = vmatprep.subr.mxu0 0.0
        %1539 = vmatpush1.xpose.msra.mxu0 0.0
        %1540 = vmatprep.subr.mxu0 0.0
        %1541 = vmatpush1.xpose.msra.mxu0 0.0
        %1542 = vmatprep.subr.mxu0 0.0
        %1543 = vmatpush1.xpose.msra.mxu0 0.0
        %1544 = vmatprep.subr.mxu0 0.0
        %1545 = vmatpush1.xpose.msra.mxu0 0.0
        %1546 = vmatprep.subr.mxu0 0.0
        %1547 = vmatpush1.xpose.msra.mxu0 0.0
        %1548 = vmatprep.subr.mxu0 0.0
        %1549 = vmatpush1.xpose.msra.mxu0 0.0
        %1550 = vmatprep.subr.mxu0 0.0
        %1551 = vmatpush1.xpose.msra.mxu0 0.0
        %1552 = vmatprep.mubr.f32.mxu0 0.0
        %1553 = vmatmul.mubr.f32.gmra.mrb[0].mxu0 %v1483
        %v1554 = vpop.f32.mrb[0].mxu0
        %v1555 = vadd.f32 0.0, %v1554
        %v1556 = vpop.f32.mrb[0].mxu0
        %1557 = vmatprep.mubr.f32.mxu0 0.0
        %1558 = vmatmul.mubr.f32.gmra.mrb[0].mxu0 %v1486
        %v1559 = vpop.f32.mrb[0].mxu0
        %v1560 = vadd.f32 0.0, %v1559
        %v1561 = vpop.f32.mrb[0].mxu0
        %1562 = vdwg.mxu0
        %v1564 = vsel %vm263, %v979, 0
        %v1567 = vsel %vm263, %v984, 0
        %1569 = vmatprep.subr.mxu0 0.0
        %1570 = vmatpush1.xpose.msra.mxu0 %v793
        %1571 = vmatprep.subr.mxu0 0.0
        %1572 = vmatpush1.xpose.msra.mxu0 %v796
        %1573 = vmatprep.subr.mxu0 0.0
        %1574 = vmatpush1.xpose.msra.mxu0 0.0
        %1575 = vmatprep.subr.mxu0 0.0
        %1576 = vmatpush1.xpose.msra.mxu0 0.0
        %1577 = vmatprep.subr.mxu0 0.0
        %1578 = vmatpush1.xpose.msra.mxu0 0.0
        %1579 = vmatprep.subr.mxu0 0.0
        %1580 = vmatpush1.xpose.msra.mxu0 0.0
        %1581 = vmatprep.subr.mxu0 0.0
        %1582 = vmatpush1.xpose.msra.mxu0 0.0
        %1583 = vmatprep.subr.mxu0 0.0
        %1584 = vmatpush1.xpose.msra.mxu0 0.0
        %1585 = vmatprep.subr.mxu0 0.0
        %1586 = vmatpush1.xpose.msra.mxu0 0.0
        %1587 = vmatprep.subr.mxu0 0.0
        %1588 = vmatpush1.xpose.msra.mxu0 0.0
        %1589 = vmatprep.subr.mxu0 0.0
        %1590 = vmatpush1.xpose.msra.mxu0 0.0
        %1591 = vmatprep.subr.mxu0 0.0
        %1592 = vmatpush1.xpose.msra.mxu0 0.0
        %1593 = vmatprep.subr.mxu0 0.0
        %1594 = vmatpush1.xpose.msra.mxu0 0.0
        %1595 = vmatprep.subr.mxu0 0.0
        %1596 = vmatpush1.xpose.msra.mxu0 0.0
        %1597 = vmatprep.subr.mxu0 0.0
        %1598 = vmatpush1.xpose.msra.mxu0 0.0
        %1599 = vmatprep.subr.mxu0 0.0
        %1600 = vmatpush1.xpose.msra.mxu0 0.0
        %1601 = vmatprep.subr.mxu0 0.0
        %1602 = vmatpush1.xpose.msra.mxu0 0.0
        %1603 = vmatprep.subr.mxu0 0.0
        %1604 = vmatpush1.xpose.msra.mxu0 0.0
        %1605 = vmatprep.subr.mxu0 0.0
        %1606 = vmatpush1.xpose.msra.mxu0 0.0
        %1607 = vmatprep.subr.mxu0 0.0
        %1608 = vmatpush1.xpose.msra.mxu0 0.0
        %1609 = vmatprep.subr.mxu0 0.0
        %1610 = vmatpush1.xpose.msra.mxu0 0.0
        %1611 = vmatprep.subr.mxu0 0.0
        %1612 = vmatpush1.xpose.msra.mxu0 0.0
        %1613 = vmatprep.subr.mxu0 0.0
        %1614 = vmatpush1.xpose.msra.mxu0 0.0
        %1615 = vmatprep.subr.mxu0 0.0
        %1616 = vmatpush1.xpose.msra.mxu0 0.0
        %1617 = vmatprep.subr.mxu0 0.0
        %1618 = vmatpush1.xpose.msra.mxu0 0.0
        %1619 = vmatprep.subr.mxu0 0.0
        %1620 = vmatpush1.xpose.msra.mxu0 0.0
        %1621 = vmatprep.subr.mxu0 0.0
        %1622 = vmatpush1.xpose.msra.mxu0 0.0
        %1623 = vmatprep.subr.mxu0 0.0
        %1624 = vmatpush1.xpose.msra.mxu0 0.0
        %1625 = vmatprep.subr.mxu0 0.0
        %1626 = vmatpush1.xpose.msra.mxu0 0.0
        %1627 = vmatprep.subr.mxu0 0.0
        %1628 = vmatpush1.xpose.msra.mxu0 0.0
        %1629 = vmatprep.subr.mxu0 0.0
        %1630 = vmatpush1.xpose.msra.mxu0 0.0
        %1631 = vmatprep.subr.mxu0 0.0
        %1632 = vmatpush1.xpose.msra.mxu0 0.0
        %1633 = vmatprep.mubr.f32.mxu0 0.0
        %1634 = vmatmul.mubr.f32.gmra.mrb[0].mxu0 %v1564
        %v1635 = vpop.f32.mrb[0].mxu0
        %v1636 = vadd.f32 0.0, %v1635
        %v1637 = vpop.f32.mrb[0].mxu0
        %1638 = vmatprep.mubr.f32.mxu0 0.0
        %1639 = vmatmul.mubr.f32.gmra.mrb[0].mxu0 %v1567
        %v1640 = vpop.f32.mrb[0].mxu0
        %v1641 = vadd.f32 0.0, %v1640
        %v1642 = vpop.f32.mrb[0].mxu0
        %1643 = vdwg.mxu0
        %v1645 = vsel %vm263, %v989, 0
        %v1648 = vsel %vm263, %v994, 0
        %1650 = vmatprep.subr.mxu0 0.0
        %1651 = vmatpush1.xpose.msra.mxu0 %v799
        %1652 = vmatprep.subr.mxu0 0.0
        %1653 = vmatpush1.xpose.msra.mxu0 %v802
        %1654 = vmatprep.subr.mxu0 0.0
        %1655 = vmatpush1.xpose.msra.mxu0 0.0
        %1656 = vmatprep.subr.mxu0 0.0
        %1657 = vmatpush1.xpose.msra.mxu0 0.0
        %1658 = vmatprep.subr.mxu0 0.0
        %1659 = vmatpush1.xpose.msra.mxu0 0.0
        %1660 = vmatprep.subr.mxu0 0.0
        %1661 = vmatpush1.xpose.msra.mxu0 0.0
        %1662 = vmatprep.subr.mxu0 0.0
        %1663 = vmatpush1.xpose.msra.mxu0 0.0
        %1664 = vmatprep.subr.mxu0 0.0
        %1665 = vmatpush1.xpose.msra.mxu0 0.0
        %1666 = vmatprep.subr.mxu0 0.0
        %1667 = vmatpush1.xpose.msra.mxu0 0.0
        %1668 = vmatprep.subr.mxu0 0.0
        %1669 = vmatpush1.xpose.msra.mxu0 0.0
        %1670 = vmatprep.subr.mxu0 0.0
        %1671 = vmatpush1.xpose.msra.mxu0 0.0
        %1672 = vmatprep.subr.mxu0 0.0
        %1673 = vmatpush1.xpose.msra.mxu0 0.0
        %1674 = vmatprep.subr.mxu0 0.0
        %1675 = vmatpush1.xpose.msra.mxu0 0.0
        %1676 = vmatprep.subr.mxu0 0.0
        %1677 = vmatpush1.xpose.msra.mxu0 0.0
        %1678 = vmatprep.subr.mxu0 0.0
        %1679 = vmatpush1.xpose.msra.mxu0 0.0
        %1680 = vmatprep.subr.mxu0 0.0
        %1681 = vmatpush1.xpose.msra.mxu0 0.0
        %1682 = vmatprep.subr.mxu0 0.0
        %1683 = vmatpush1.xpose.msra.mxu0 0.0
        %1684 = vmatprep.subr.mxu0 0.0
        %1685 = vmatpush1.xpose.msra.mxu0 0.0
        %1686 = vmatprep.subr.mxu0 0.0
        %1687 = vmatpush1.xpose.msra.mxu0 0.0
        %1688 = vmatprep.subr.mxu0 0.0
        %1689 = vmatpush1.xpose.msra.mxu0 0.0
        %1690 = vmatprep.subr.mxu0 0.0
        %1691 = vmatpush1.xpose.msra.mxu0 0.0
        %1692 = vmatprep.subr.mxu0 0.0
        %1693 = vmatpush1.xpose.msra.mxu0 0.0
        %1694 = vmatprep.subr.mxu0 0.0
        %1695 = vmatpush1.xpose.msra.mxu0 0.0
        %1696 = vmatprep.subr.mxu0 0.0
        %1697 = vmatpush1.xpose.msra.mxu0 0.0
        %1698 = vmatprep.subr.mxu0 0.0
        %1699 = vmatpush1.xpose.msra.mxu0 0.0
        %1700 = vmatprep.subr.mxu0 0.0
        %1701 = vmatpush1.xpose.msra.mxu0 0.0
        %1702 = vmatprep.subr.mxu0 0.0
        %1703 = vmatpush1.xpose.msra.mxu0 0.0
        %1704 = vmatprep.subr.mxu0 0.0
        %1705 = vmatpush1.xpose.msra.mxu0 0.0
        %1706 = vmatprep.subr.mxu0 0.0
        %1707 = vmatpush1.xpose.msra.mxu0 0.0
        %1708 = vmatprep.subr.mxu0 0.0
        %1709 = vmatpush1.xpose.msra.mxu0 0.0
        %1710 = vmatprep.subr.mxu0 0.0
        %1711 = vmatpush1.xpose.msra.mxu0 0.0
        %1712 = vmatprep.subr.mxu0 0.0
        %1713 = vmatpush1.xpose.msra.mxu0 0.0
        %1714 = vmatprep.mubr.f32.mxu0 0.0
        %1715 = vmatmul.mubr.f32.gmra.mrb[0].mxu0 %v1645
        %v1716 = vpop.f32.mrb[0].mxu0
        %v1717 = vadd.f32 0.0, %v1716
        %v1718 = vpop.f32.mrb[0].mxu0
        %1719 = vmatprep.mubr.f32.mxu0 0.0
        %1720 = vmatmul.mubr.f32.gmra.mrb[0].mxu0 %v1648
        %v1721 = vpop.f32.mrb[0].mxu0
        %v1722 = vadd.f32 0.0, %v1721
        %v1723 = vpop.f32.mrb[0].mxu0
        %1724 = vdwg.mxu0
        %v1726 = vsel %vm263, %v999, 0
        %v1729 = vsel %vm263, %v1004, 0
        %1731 = vmatprep.subr.mxu0 0.0
        %1732 = vmatpush1.xpose.msra.mxu0 %v805
        %1733 = vmatprep.subr.mxu0 0.0
        %1734 = vmatpush1.xpose.msra.mxu0 %v808
        %1735 = vmatprep.subr.mxu0 0.0
        %1736 = vmatpush1.xpose.msra.mxu0 0.0
        %1737 = vmatprep.subr.mxu0 0.0
        %1738 = vmatpush1.xpose.msra.mxu0 0.0
        %1739 = vmatprep.subr.mxu0 0.0
        %1740 = vmatpush1.xpose.msra.mxu0 0.0
        %1741 = vmatprep.subr.mxu0 0.0
        %1742 = vmatpush1.xpose.msra.mxu0 0.0
        %1743 = vmatprep.subr.mxu0 0.0
        %1744 = vmatpush1.xpose.msra.mxu0 0.0
        %1745 = vmatprep.subr.mxu0 0.0
        %1746 = vmatpush1.xpose.msra.mxu0 0.0
        %1747 = vmatprep.subr.mxu0 0.0
        %1748 = vmatpush1.xpose.msra.mxu0 0.0
        %1749 = vmatprep.subr.mxu0 0.0
        %1750 = vmatpush1.xpose.msra.mxu0 0.0
        %1751 = vmatprep.subr.mxu0 0.0
        %1752 = vmatpush1.xpose.msra.mxu0 0.0
        %1753 = vmatprep.subr.mxu0 0.0
        %1754 = vmatpush1.xpose.msra.mxu0 0.0
        %1755 = vmatprep.subr.mxu0 0.0
        %1756 = vmatpush1.xpose.msra.mxu0 0.0
        %1757 = vmatprep.subr.mxu0 0.0
        %1758 = vmatpush1.xpose.msra.mxu0 0.0
        %1759 = vmatprep.subr.mxu0 0.0
        %1760 = vmatpush1.xpose.msra.mxu0 0.0
        %1761 = vmatprep.subr.mxu0 0.0
        %1762 = vmatpush1.xpose.msra.mxu0 0.0
        %1763 = vmatprep.subr.mxu0 0.0
        %1764 = vmatpush1.xpose.msra.mxu0 0.0
        %1765 = vmatprep.subr.mxu0 0.0
        %1766 = vmatpush1.xpose.msra.mxu0 0.0
        %1767 = vmatprep.subr.mxu0 0.0
        %1768 = vmatpush1.xpose.msra.mxu0 0.0
        %1769 = vmatprep.subr.mxu0 0.0
        %1770 = vmatpush1.xpose.msra.mxu0 0.0
        %1771 = vmatprep.subr.mxu0 0.0
        %1772 = vmatpush1.xpose.msra.mxu0 0.0
        %1773 = vmatprep.subr.mxu0 0.0
        %1774 = vmatpush1.xpose.msra.mxu0 0.0
        %1775 = vmatprep.subr.mxu0 0.0
        %1776 = vmatpush1.xpose.msra.mxu0 0.0
        %1777 = vmatprep.subr.mxu0 0.0
        %1778 = vmatpush1.xpose.msra.mxu0 0.0
        %1779 = vmatprep.subr.mxu0 0.0
        %1780 = vmatpush1.xpose.msra.mxu0 0.0
        %1781 = vmatprep.subr.mxu0 0.0
        %1782 = vmatpush1.xpose.msra.mxu0 0.0
        %1783 = vmatprep.subr.mxu0 0.0
        %1784 = vmatpush1.xpose.msra.mxu0 0.0
        %1785 = vmatprep.subr.mxu0 0.0
        %1786 = vmatpush1.xpose.msra.mxu0 0.0
        %1787 = vmatprep.subr.mxu0 0.0
        %1788 = vmatpush1.xpose.msra.mxu0 0.0
        %1789 = vmatprep.subr.mxu0 0.0
        %1790 = vmatpush1.xpose.msra.mxu0 0.0
        %1791 = vmatprep.subr.mxu0 0.0
        %1792 = vmatpush1.xpose.msra.mxu0 0.0
        %1793 = vmatprep.subr.mxu0 0.0
        %1794 = vmatpush1.xpose.msra.mxu0 0.0
        %1795 = vmatprep.mubr.f32.mxu0 0.0
        %1796 = vmatmul.mubr.f32.gmra.mrb[0].mxu0 %v1726
        %v1797 = vpop.f32.mrb[0].mxu0
        %v1798 = vadd.f32 0.0, %v1797
        %v1799 = vpop.f32.mrb[0].mxu0
        %1800 = vmatprep.mubr.f32.mxu0 0.0
        %1801 = vmatmul.mubr.f32.gmra.mrb[0].mxu0 %v1729
        %v1802 = vpop.f32.mrb[0].mxu0
        %v1803 = vadd.f32 0.0, %v1802
        %v1804 = vpop.f32.mrb[0].mxu0
        %1805 = vdwg.mxu0
        %v1807 = vsel %vm263, %v1009, 0
        %v1810 = vsel %vm263, %v1014, 0
        %1812 = vmatprep.subr.mxu0 0.0
        %1813 = vmatpush1.xpose.msra.mxu0 %v811
        %1814 = vmatprep.subr.mxu0 0.0
        %1815 = vmatpush1.xpose.msra.mxu0 %v814
        %1816 = vmatprep.subr.mxu0 0.0
        %1817 = vmatpush1.xpose.msra.mxu0 0.0
        %1818 = vmatprep.subr.mxu0 0.0
        %1819 = vmatpush1.xpose.msra.mxu0 0.0
        %1820 = vmatprep.subr.mxu0 0.0
        %1821 = vmatpush1.xpose.msra.mxu0 0.0
        %1822 = vmatprep.subr.mxu0 0.0
        %1823 = vmatpush1.xpose.msra.mxu0 0.0
        %1824 = vmatprep.subr.mxu0 0.0
        %1825 = vmatpush1.xpose.msra.mxu0 0.0
        %1826 = vmatprep.subr.mxu0 0.0
        %1827 = vmatpush1.xpose.msra.mxu0 0.0
        %1828 = vmatprep.subr.mxu0 0.0
        %1829 = vmatpush1.xpose.msra.mxu0 0.0
        %1830 = vmatprep.subr.mxu0 0.0
        %1831 = vmatpush1.xpose.msra.mxu0 0.0
        %1832 = vmatprep.subr.mxu0 0.0
        %1833 = vmatpush1.xpose.msra.mxu0 0.0
        %1834 = vmatprep.subr.mxu0 0.0
        %1835 = vmatpush1.xpose.msra.mxu0 0.0
        %1836 = vmatprep.subr.mxu0 0.0
        %1837 = vmatpush1.xpose.msra.mxu0 0.0
        %1838 = vmatprep.subr.mxu0 0.0
        %1839 = vmatpush1.xpose.msra.mxu0 0.0
        %1840 = vmatprep.subr.mxu0 0.0
        %1841 = vmatpush1.xpose.msra.mxu0 0.0
        %1842 = vmatprep.subr.mxu0 0.0
        %1843 = vmatpush1.xpose.msra.mxu0 0.0
        %1844 = vmatprep.subr.mxu0 0.0
        %1845 = vmatpush1.xpose.msra.mxu0 0.0
        %1846 = vmatprep.subr.mxu0 0.0
        %1847 = vmatpush1.xpose.msra.mxu0 0.0
        %1848 = vmatprep.subr.mxu0 0.0
        %1849 = vmatpush1.xpose.msra.mxu0 0.0
        %1850 = vmatprep.subr.mxu0 0.0
        %1851 = vmatpush1.xpose.msra.mxu0 0.0
        %1852 = vmatprep.subr.mxu0 0.0
        %1853 = vmatpush1.xpose.msra.mxu0 0.0
        %1854 = vmatprep.subr.mxu0 0.0
        %1855 = vmatpush1.xpose.msra.mxu0 0.0
        %1856 = vmatprep.subr.mxu0 0.0
        %1857 = vmatpush1.xpose.msra.mxu0 0.0
        %1858 = vmatprep.subr.mxu0 0.0
        %1859 = vmatpush1.xpose.msra.mxu0 0.0
        %1860 = vmatprep.subr.mxu0 0.0
        %1861 = vmatpush1.xpose.msra.mxu0 0.0
        %1862 = vmatprep.subr.mxu0 0.0
        %1863 = vmatpush1.xpose.msra.mxu0 0.0
        %1864 = vmatprep.subr.mxu0 0.0
        %1865 = vmatpush1.xpose.msra.mxu0 0.0
        %1866 = vmatprep.subr.mxu0 0.0
        %1867 = vmatpush1.xpose.msra.mxu0 0.0
        %1868 = vmatprep.subr.mxu0 0.0
        %1869 = vmatpush1.xpose.msra.mxu0 0.0
        %1870 = vmatprep.subr.mxu0 0.0
        %1871 = vmatpush1.xpose.msra.mxu0 0.0
        %1872 = vmatprep.subr.mxu0 0.0
        %1873 = vmatpush1.xpose.msra.mxu0 0.0
        %1874 = vmatprep.subr.mxu0 0.0
        %1875 = vmatpush1.xpose.msra.mxu0 0.0
        %1876 = vmatprep.mubr.f32.mxu0 0.0
        %1877 = vmatmul.mubr.f32.gmra.mrb[0].mxu0 %v1807
        %v1878 = vpop.f32.mrb[0].mxu0
        %v1879 = vadd.f32 0.0, %v1878
        %v1880 = vpop.f32.mrb[0].mxu0
        %1881 = vmatprep.mubr.f32.mxu0 0.0
        %1882 = vmatmul.mubr.f32.gmra.mrb[0].mxu0 %v1810
        %v1883 = vpop.f32.mrb[0].mxu0
        %v1884 = vadd.f32 0.0, %v1883
        %v1885 = vpop.f32.mrb[0].mxu0
        %1886 = vdwg.mxu0
        %v1888 = vsel %vm263, %v1019, 0
        %v1891 = vsel %vm263, %v1024, 0
        %1893 = vmatprep.subr.mxu0 0.0
        %1894 = vmatpush1.xpose.msra.mxu0 %v817
        %1895 = vmatprep.subr.mxu0 0.0
        %1896 = vmatpush1.xpose.msra.mxu0 %v820
        %1897 = vmatprep.subr.mxu0 0.0
        %1898 = vmatpush1.xpose.msra.mxu0 0.0
        %1899 = vmatprep.subr.mxu0 0.0
        %1900 = vmatpush1.xpose.msra.mxu0 0.0
        %1901 = vmatprep.subr.mxu0 0.0
        %1902 = vmatpush1.xpose.msra.mxu0 0.0
        %1903 = vmatprep.subr.mxu0 0.0
        %1904 = vmatpush1.xpose.msra.mxu0 0.0
        %1905 = vmatprep.subr.mxu0 0.0
        %1906 = vmatpush1.xpose.msra.mxu0 0.0
        %1907 = vmatprep.subr.mxu0 0.0
        %1908 = vmatpush1.xpose.msra.mxu0 0.0
        %1909 = vmatprep.subr.mxu0 0.0
        %1910 = vmatpush1.xpose.msra.mxu0 0.0
        %1911 = vmatprep.subr.mxu0 0.0
        %1912 = vmatpush1.xpose.msra.mxu0 0.0
        %1913 = vmatprep.subr.mxu0 0.0
        %1914 = vmatpush1.xpose.msra.mxu0 0.0
        %1915 = vmatprep.subr.mxu0 0.0
        %1916 = vmatpush1.xpose.msra.mxu0 0.0
        %1917 = vmatprep.subr.mxu0 0.0
        %1918 = vmatpush1.xpose.msra.mxu0 0.0
        %1919 = vmatprep.subr.mxu0 0.0
        %1920 = vmatpush1.xpose.msra.mxu0 0.0
        %1921 = vmatprep.subr.mxu0 0.0
        %1922 = vmatpush1.xpose.msra.mxu0 0.0
        %1923 = vmatprep.subr.mxu0 0.0
        %1924 = vmatpush1.xpose.msra.mxu0 0.0
        %1925 = vmatprep.subr.mxu0 0.0
        %1926 = vmatpush1.xpose.msra.mxu0 0.0
        %1927 = vmatprep.subr.mxu0 0.0
        %1928 = vmatpush1.xpose.msra.mxu0 0.0
        %1929 = vmatprep.subr.mxu0 0.0
        %1930 = vmatpush1.xpose.msra.mxu0 0.0
        %1931 = vmatprep.subr.mxu0 0.0
        %1932 = vmatpush1.xpose.msra.mxu0 0.0
        %1933 = vmatprep.subr.mxu0 0.0
        %1934 = vmatpush1.xpose.msra.mxu0 0.0
        %1935 = vmatprep.subr.mxu0 0.0
        %1936 = vmatpush1.xpose.msra.mxu0 0.0
        %1937 = vmatprep.subr.mxu0 0.0
        %1938 = vmatpush1.xpose.msra.mxu0 0.0
        %1939 = vmatprep.subr.mxu0 0.0
        %1940 = vmatpush1.xpose.msra.mxu0 0.0
        %1941 = vmatprep.subr.mxu0 0.0
        %1942 = vmatpush1.xpose.msra.mxu0 0.0
        %1943 = vmatprep.subr.mxu0 0.0
        %1944 = vmatpush1.xpose.msra.mxu0 0.0
        %1945 = vmatprep.subr.mxu0 0.0
        %1946 = vmatpush1.xpose.msra.mxu0 0.0
        %1947 = vmatprep.subr.mxu0 0.0
        %1948 = vmatpush1.xpose.msra.mxu0 0.0
        %1949 = vmatprep.subr.mxu0 0.0
        %1950 = vmatpush1.xpose.msra.mxu0 0.0
        %1951 = vmatprep.subr.mxu0 0.0
        %1952 = vmatpush1.xpose.msra.mxu0 0.0
        %1953 = vmatprep.subr.mxu0 0.0
        %1954 = vmatpush1.xpose.msra.mxu0 0.0
        %1955 = vmatprep.subr.mxu0 0.0
        %1956 = vmatpush1.xpose.msra.mxu0 0.0
        %1957 = vmatprep.mubr.f32.mxu0 0.0
        %1958 = vmatmul.mubr.f32.gmra.mrb[0].mxu0 %v1888
        %v1959 = vpop.f32.mrb[0].mxu0
        %v1960 = vadd.f32 0.0, %v1959
        %v1961 = vpop.f32.mrb[0].mxu0
        %1962 = vmatprep.mubr.f32.mxu0 0.0
        %1963 = vmatmul.mubr.f32.gmra.mrb[0].mxu0 %v1891
        %v1964 = vpop.f32.mrb[0].mxu0
        %v1965 = vadd.f32 0.0, %v1964
        %v1966 = vpop.f32.mrb[0].mxu0
        %1967 = vdwg.mxu0
        %v1969 = vsel %vm263, %v1029, 0
        %v1972 = vsel %vm263, %v1034, 0
        %1974 = vmatprep.subr.mxu0 0.0
        %1975 = vmatpush1.xpose.msra.mxu0 %v823
        %1976 = vmatprep.subr.mxu0 0.0
        %1977 = vmatpush1.xpose.msra.mxu0 %v826
        %1978 = vmatprep.subr.mxu0 0.0
        %1979 = vmatpush1.xpose.msra.mxu0 0.0
        %1980 = vmatprep.subr.mxu0 0.0
        %1981 = vmatpush1.xpose.msra.mxu0 0.0
        %1982 = vmatprep.subr.mxu0 0.0
        %1983 = vmatpush1.xpose.msra.mxu0 0.0
        %1984 = vmatprep.subr.mxu0 0.0
        %1985 = vmatpush1.xpose.msra.mxu0 0.0
        %1986 = vmatprep.subr.mxu0 0.0
        %1987 = vmatpush1.xpose.msra.mxu0 0.0
        %1988 = vmatprep.subr.mxu0 0.0
        %1989 = vmatpush1.xpose.msra.mxu0 0.0
        %1990 = vmatprep.subr.mxu0 0.0
        %1991 = vmatpush1.xpose.msra.mxu0 0.0
        %1992 = vmatprep.subr.mxu0 0.0
        %1993 = vmatpush1.xpose.msra.mxu0 0.0
        %1994 = vmatprep.subr.mxu0 0.0
        %1995 = vmatpush1.xpose.msra.mxu0 0.0
        %1996 = vmatprep.subr.mxu0 0.0
        %1997 = vmatpush1.xpose.msra.mxu0 0.0
        %1998 = vmatprep.subr.mxu0 0.0
        %1999 = vmatpush1.xpose.msra.mxu0 0.0
        %2000 = vmatprep.subr.mxu0 0.0
        %2001 = vmatpush1.xpose.msra.mxu0 0.0
        %2002 = vmatprep.subr.mxu0 0.0
        %2003 = vmatpush1.xpose.msra.mxu0 0.0
        %2004 = vmatprep.subr.mxu0 0.0
        %2005 = vmatpush1.xpose.msra.mxu0 0.0
        %2006 = vmatprep.subr.mxu0 0.0
        %2007 = vmatpush1.xpose.msra.mxu0 0.0
        %2008 = vmatprep.subr.mxu0 0.0
        %2009 = vmatpush1.xpose.msra.mxu0 0.0
        %2010 = vmatprep.subr.mxu0 0.0
        %2011 = vmatpush1.xpose.msra.mxu0 0.0
        %2012 = vmatprep.subr.mxu0 0.0
        %2013 = vmatpush1.xpose.msra.mxu0 0.0
        %2014 = vmatprep.subr.mxu0 0.0
        %2015 = vmatpush1.xpose.msra.mxu0 0.0
        %2016 = vmatprep.subr.mxu0 0.0
        %2017 = vmatpush1.xpose.msra.mxu0 0.0
        %2018 = vmatprep.subr.mxu0 0.0
        %2019 = vmatpush1.xpose.msra.mxu0 0.0
        %2020 = vmatprep.subr.mxu0 0.0
        %2021 = vmatpush1.xpose.msra.mxu0 0.0
        %2022 = vmatprep.subr.mxu0 0.0
        %2023 = vmatpush1.xpose.msra.mxu0 0.0
        %2024 = vmatprep.subr.mxu0 0.0
        %2025 = vmatpush1.xpose.msra.mxu0 0.0
        %2026 = vmatprep.subr.mxu0 0.0
        %2027 = vmatpush1.xpose.msra.mxu0 0.0
        %2028 = vmatprep.subr.mxu0 0.0
        %2029 = vmatpush1.xpose.msra.mxu0 0.0
        %2030 = vmatprep.subr.mxu0 0.0
        %2031 = vmatpush1.xpose.msra.mxu0 0.0
        %2032 = vmatprep.subr.mxu0 0.0
        %2033 = vmatpush1.xpose.msra.mxu0 0.0
        %2034 = vmatprep.subr.mxu0 0.0
        %2035 = vmatpush1.xpose.msra.mxu0 0.0
        %2036 = vmatprep.subr.mxu0 0.0
        %2037 = vmatpush1.xpose.msra.mxu0 0.0
        %2038 = vmatprep.mubr.f32.mxu0 0.0
        %2039 = vmatmul.mubr.f32.gmra.mrb[0].mxu0 %v1969
        %v2040 = vpop.f32.mrb[0].mxu0
        %v2041 = vadd.f32 0.0, %v2040
        %v2042 = vpop.f32.mrb[0].mxu0
        %2043 = vmatprep.mubr.f32.mxu0 0.0
        %2044 = vmatmul.mubr.f32.gmra.mrb[0].mxu0 %v1972
        %v2045 = vpop.f32.mrb[0].mxu0
        %v2046 = vadd.f32 0.0, %v2045
        %v2047 = vpop.f32.mrb[0].mxu0
        %2048 = vdwg.mxu0
        %v2050 = vsel %vm263, %v1039, 0
        %v2053 = vsel %vm263, %v1044, 0
        %2055 = vmatprep.subr.mxu0 0.0
        %2056 = vmatpush1.xpose.msra.mxu0 %v829
        %2057 = vmatprep.subr.mxu0 0.0
        %2058 = vmatpush1.xpose.msra.mxu0 %v832
        %2059 = vmatprep.subr.mxu0 0.0
        %2060 = vmatpush1.xpose.msra.mxu0 0.0
        %2061 = vmatprep.subr.mxu0 0.0
        %2062 = vmatpush1.xpose.msra.mxu0 0.0
        %2063 = vmatprep.subr.mxu0 0.0
        %2064 = vmatpush1.xpose.msra.mxu0 0.0
        %2065 = vmatprep.subr.mxu0 0.0
        %2066 = vmatpush1.xpose.msra.mxu0 0.0
        %2067 = vmatprep.subr.mxu0 0.0
        %2068 = vmatpush1.xpose.msra.mxu0 0.0
        %2069 = vmatprep.subr.mxu0 0.0
        %2070 = vmatpush1.xpose.msra.mxu0 0.0
        %2071 = vmatprep.subr.mxu0 0.0
        %2072 = vmatpush1.xpose.msra.mxu0 0.0
        %2073 = vmatprep.subr.mxu0 0.0
        %2074 = vmatpush1.xpose.msra.mxu0 0.0
        %2075 = vmatprep.subr.mxu0 0.0
        %2076 = vmatpush1.xpose.msra.mxu0 0.0
        %2077 = vmatprep.subr.mxu0 0.0
        %2078 = vmatpush1.xpose.msra.mxu0 0.0
        %2079 = vmatprep.subr.mxu0 0.0
        %2080 = vmatpush1.xpose.msra.mxu0 0.0
        %2081 = vmatprep.subr.mxu0 0.0
        %2082 = vmatpush1.xpose.msra.mxu0 0.0
        %2083 = vmatprep.subr.mxu0 0.0
        %2084 = vmatpush1.xpose.msra.mxu0 0.0
        %2085 = vmatprep.subr.mxu0 0.0
        %2086 = vmatpush1.xpose.msra.mxu0 0.0
        %2087 = vmatprep.subr.mxu0 0.0
        %2088 = vmatpush1.xpose.msra.mxu0 0.0
        %2089 = vmatprep.subr.mxu0 0.0
        %2090 = vmatpush1.xpose.msra.mxu0 0.0
        %2091 = vmatprep.subr.mxu0 0.0
        %2092 = vmatpush1.xpose.msra.mxu0 0.0
        %2093 = vmatprep.subr.mxu0 0.0
        %2094 = vmatpush1.xpose.msra.mxu0 0.0
        %2095 = vmatprep.subr.mxu0 0.0
        %2096 = vmatpush1.xpose.msra.mxu0 0.0
        %2097 = vmatprep.subr.mxu0 0.0
        %2098 = vmatpush1.xpose.msra.mxu0 0.0
        %2099 = vmatprep.subr.mxu0 0.0
        %2100 = vmatpush1.xpose.msra.mxu0 0.0
        %2101 = vmatprep.subr.mxu0 0.0
        %2102 = vmatpush1.xpose.msra.mxu0 0.0
        %2103 = vmatprep.subr.mxu0 0.0
        %2104 = vmatpush1.xpose.msra.mxu0 0.0
        %2105 = vmatprep.subr.mxu0 0.0
        %2106 = vmatpush1.xpose.msra.mxu0 0.0
        %2107 = vmatprep.subr.mxu0 0.0
        %2108 = vmatpush1.xpose.msra.mxu0 0.0
        %2109 = vmatprep.subr.mxu0 0.0
        %2110 = vmatpush1.xpose.msra.mxu0 0.0
        %2111 = vmatprep.subr.mxu0 0.0
        %2112 = vmatpush1.xpose.msra.mxu0 0.0
        %2113 = vmatprep.subr.mxu0 0.0
        %2114 = vmatpush1.xpose.msra.mxu0 0.0
        %2115 = vmatprep.subr.mxu0 0.0
        %2116 = vmatpush1.xpose.msra.mxu0 0.0
        %2117 = vmatprep.subr.mxu0 0.0
        %2118 = vmatpush1.xpose.msra.mxu0 0.0
        %2119 = vmatprep.mubr.f32.mxu0 0.0
        %2120 = vmatmul.mubr.f32.gmra.mrb[0].mxu0 %v2050
        %v2121 = vpop.f32.mrb[0].mxu0
        %v2122 = vadd.f32 0.0, %v2121
        %v2123 = vpop.f32.mrb[0].mxu0
        %2124 = vmatprep.mubr.f32.mxu0 0.0
        %2125 = vmatmul.mubr.f32.gmra.mrb[0].mxu0 %v2053
        %v2126 = vpop.f32.mrb[0].mxu0
        %v2127 = vadd.f32 0.0, %v2126
        %v2128 = vpop.f32.mrb[0].mxu0
        %2129 = vdwg.mxu0
        %v2131 = vsel %vm263, %v1049, 0
        %v2134 = vsel %vm263, %v1054, 0
        %2136 = vmatprep.subr.mxu0 0.0
        %2137 = vmatpush1.xpose.msra.mxu0 %v835
        %2138 = vmatprep.subr.mxu0 0.0
        %2139 = vmatpush1.xpose.msra.mxu0 %v838
        %2140 = vmatprep.subr.mxu0 0.0
        %2141 = vmatpush1.xpose.msra.mxu0 0.0
        %2142 = vmatprep.subr.mxu0 0.0
        %2143 = vmatpush1.xpose.msra.mxu0 0.0
        %2144 = vmatprep.subr.mxu0 0.0
        %2145 = vmatpush1.xpose.msra.mxu0 0.0
        %2146 = vmatprep.subr.mxu0 0.0
        %2147 = vmatpush1.xpose.msra.mxu0 0.0
        %2148 = vmatprep.subr.mxu0 0.0
        %2149 = vmatpush1.xpose.msra.mxu0 0.0
        %2150 = vmatprep.subr.mxu0 0.0
        %2151 = vmatpush1.xpose.msra.mxu0 0.0
        %2152 = vmatprep.subr.mxu0 0.0
        %2153 = vmatpush1.xpose.msra.mxu0 0.0
        %2154 = vmatprep.subr.mxu0 0.0
        %2155 = vmatpush1.xpose.msra.mxu0 0.0
        %2156 = vmatprep.subr.mxu0 0.0
        %2157 = vmatpush1.xpose.msra.mxu0 0.0
        %2158 = vmatprep.subr.mxu0 0.0
        %2159 = vmatpush1.xpose.msra.mxu0 0.0
        %2160 = vmatprep.subr.mxu0 0.0
        %2161 = vmatpush1.xpose.msra.mxu0 0.0
        %2162 = vmatprep.subr.mxu0 0.0
        %2163 = vmatpush1.xpose.msra.mxu0 0.0
        %2164 = vmatprep.subr.mxu0 0.0
        %2165 = vmatpush1.xpose.msra.mxu0 0.0
        %2166 = vmatprep.subr.mxu0 0.0
        %2167 = vmatpush1.xpose.msra.mxu0 0.0
        %2168 = vmatprep.subr.mxu0 0.0
        %2169 = vmatpush1.xpose.msra.mxu0 0.0
        %2170 = vmatprep.subr.mxu0 0.0
        %2171 = vmatpush1.xpose.msra.mxu0 0.0
        %2172 = vmatprep.subr.mxu0 0.0
        %2173 = vmatpush1.xpose.msra.mxu0 0.0
        %2174 = vmatprep.subr.mxu0 0.0
        %2175 = vmatpush1.xpose.msra.mxu0 0.0
        %2176 = vmatprep.subr.mxu0 0.0
        %2177 = vmatpush1.xpose.msra.mxu0 0.0
        %2178 = vmatprep.subr.mxu0 0.0
        %2179 = vmatpush1.xpose.msra.mxu0 0.0
        %2180 = vmatprep.subr.mxu0 0.0
        %2181 = vmatpush1.xpose.msra.mxu0 0.0
        %2182 = vmatprep.subr.mxu0 0.0
        %2183 = vmatpush1.xpose.msra.mxu0 0.0
        %2184 = vmatprep.subr.mxu0 0.0
        %2185 = vmatpush1.xpose.msra.mxu0 0.0
        %2186 = vmatprep.subr.mxu0 0.0
        %2187 = vmatpush1.xpose.msra.mxu0 0.0
        %2188 = vmatprep.subr.mxu0 0.0
        %2189 = vmatpush1.xpose.msra.mxu0 0.0
        %2190 = vmatprep.subr.mxu0 0.0
        %2191 = vmatpush1.xpose.msra.mxu0 0.0
        %2192 = vmatprep.subr.mxu0 0.0
        %2193 = vmatpush1.xpose.msra.mxu0 0.0
        %2194 = vmatprep.subr.mxu0 0.0
        %2195 = vmatpush1.xpose.msra.mxu0 0.0
        %2196 = vmatprep.subr.mxu0 0.0
        %2197 = vmatpush1.xpose.msra.mxu0 0.0
        %2198 = vmatprep.subr.mxu0 0.0
        %2199 = vmatpush1.xpose.msra.mxu0 0.0
        %2200 = vmatprep.mubr.f32.mxu0 0.0
        %2201 = vmatmul.mubr.f32.gmra.mrb[0].mxu0 %v2131
        %v2202 = vpop.f32.mrb[0].mxu0
        %v2203 = vadd.f32 0.0, %v2202
        %v2204 = vpop.f32.mrb[0].mxu0
        %2205 = vmatprep.mubr.f32.mxu0 0.0
        %2206 = vmatmul.mubr.f32.gmra.mrb[0].mxu0 %v2134
        %v2207 = vpop.f32.mrb[0].mxu0
        %v2208 = vadd.f32 0.0, %v2207
        %v2209 = vpop.f32.mrb[0].mxu0
        %2210 = vdwg.mxu0
        %v2212 = vsel %vm263, %v1059, 0
        %v2215 = vsel %vm263, %v1064, 0
        %2217 = vmatprep.subr.mxu0 0.0
        %2218 = vmatpush1.xpose.msra.mxu0 %v841
        %2219 = vmatprep.subr.mxu0 0.0
        %2220 = vmatpush1.xpose.msra.mxu0 %v844
        %2221 = vmatprep.subr.mxu0 0.0
        %2222 = vmatpush1.xpose.msra.mxu0 0.0
        %2223 = vmatprep.subr.mxu0 0.0
        %2224 = vmatpush1.xpose.msra.mxu0 0.0
        %2225 = vmatprep.subr.mxu0 0.0
        %2226 = vmatpush1.xpose.msra.mxu0 0.0
        %2227 = vmatprep.subr.mxu0 0.0
        %2228 = vmatpush1.xpose.msra.mxu0 0.0
        %2229 = vmatprep.subr.mxu0 0.0
        %2230 = vmatpush1.xpose.msra.mxu0 0.0
        %2231 = vmatprep.subr.mxu0 0.0
        %2232 = vmatpush1.xpose.msra.mxu0 0.0
        %2233 = vmatprep.subr.mxu0 0.0
        %2234 = vmatpush1.xpose.msra.mxu0 0.0
        %2235 = vmatprep.subr.mxu0 0.0
        %2236 = vmatpush1.xpose.msra.mxu0 0.0
        %2237 = vmatprep.subr.mxu0 0.0
        %2238 = vmatpush1.xpose.msra.mxu0 0.0
        %2239 = vmatprep.subr.mxu0 0.0
        %2240 = vmatpush1.xpose.msra.mxu0 0.0
        %2241 = vmatprep.subr.mxu0 0.0
        %2242 = vmatpush1.xpose.msra.mxu0 0.0
        %2243 = vmatprep.subr.mxu0 0.0
        %2244 = vmatpush1.xpose.msra.mxu0 0.0
        %2245 = vmatprep.subr.mxu0 0.0
        %2246 = vmatpush1.xpose.msra.mxu0 0.0
        %2247 = vmatprep.subr.mxu0 0.0
        %2248 = vmatpush1.xpose.msra.mxu0 0.0
        %2249 = vmatprep.subr.mxu0 0.0
        %2250 = vmatpush1.xpose.msra.mxu0 0.0
        %2251 = vmatprep.subr.mxu0 0.0
        %2252 = vmatpush1.xpose.msra.mxu0 0.0
        %2253 = vmatprep.subr.mxu0 0.0
        %2254 = vmatpush1.xpose.msra.mxu0 0.0
        %2255 = vmatprep.subr.mxu0 0.0
        %2256 = vmatpush1.xpose.msra.mxu0 0.0
        %2257 = vmatprep.subr.mxu0 0.0
        %2258 = vmatpush1.xpose.msra.mxu0 0.0
        %2259 = vmatprep.subr.mxu0 0.0
        %2260 = vmatpush1.xpose.msra.mxu0 0.0
        %2261 = vmatprep.subr.mxu0 0.0
        %2262 = vmatpush1.xpose.msra.mxu0 0.0
        %2263 = vmatprep.subr.mxu0 0.0
        %2264 = vmatpush1.xpose.msra.mxu0 0.0
        %2265 = vmatprep.subr.mxu0 0.0
        %2266 = vmatpush1.xpose.msra.mxu0 0.0
        %2267 = vmatprep.subr.mxu0 0.0
        %2268 = vmatpush1.xpose.msra.mxu0 0.0
        %2269 = vmatprep.subr.mxu0 0.0
        %2270 = vmatpush1.xpose.msra.mxu0 0.0
        %2271 = vmatprep.subr.mxu0 0.0
        %2272 = vmatpush1.xpose.msra.mxu0 0.0
        %2273 = vmatprep.subr.mxu0 0.0
        %2274 = vmatpush1.xpose.msra.mxu0 0.0
        %2275 = vmatprep.subr.mxu0 0.0
        %2276 = vmatpush1.xpose.msra.mxu0 0.0
        %2277 = vmatprep.subr.mxu0 0.0
        %2278 = vmatpush1.xpose.msra.mxu0 0.0
        %2279 = vmatprep.subr.mxu0 0.0
        %2280 = vmatpush1.xpose.msra.mxu0 0.0
        %2281 = vmatprep.mubr.f32.mxu0 0.0
        %2282 = vmatmul.mubr.f32.gmra.mrb[0].mxu0 %v2212
        %v2283 = vpop.f32.mrb[0].mxu0
        %v2284 = vadd.f32 0.0, %v2283
        %v2285 = vpop.f32.mrb[0].mxu0
        %2286 = vmatprep.mubr.f32.mxu0 0.0
        %2287 = vmatmul.mubr.f32.gmra.mrb[0].mxu0 %v2215
        %v2288 = vpop.f32.mrb[0].mxu0
        %v2289 = vadd.f32 0.0, %v2288
        %v2290 = vpop.f32.mrb[0].mxu0
        %2291 = vdwg.mxu0
        %v2293 = vsel %vm263, %v1069, 0
        %v2296 = vsel %vm263, %v1074, 0
        %2298 = vmatprep.subr.mxu0 0.0
        %2299 = vmatpush1.xpose.msra.mxu0 %v847
        %2300 = vmatprep.subr.mxu0 0.0
        %2301 = vmatpush1.xpose.msra.mxu0 %v850
        %2302 = vmatprep.subr.mxu0 0.0
        %2303 = vmatpush1.xpose.msra.mxu0 0.0
        %2304 = vmatprep.subr.mxu0 0.0
        %2305 = vmatpush1.xpose.msra.mxu0 0.0
        %2306 = vmatprep.subr.mxu0 0.0
        %2307 = vmatpush1.xpose.msra.mxu0 0.0
        %2308 = vmatprep.subr.mxu0 0.0
        %2309 = vmatpush1.xpose.msra.mxu0 0.0
        %2310 = vmatprep.subr.mxu0 0.0
        %2311 = vmatpush1.xpose.msra.mxu0 0.0
        %2312 = vmatprep.subr.mxu0 0.0
        %2313 = vmatpush1.xpose.msra.mxu0 0.0
        %2314 = vmatprep.subr.mxu0 0.0
        %2315 = vmatpush1.xpose.msra.mxu0 0.0
        %2316 = vmatprep.subr.mxu0 0.0
        %2317 = vmatpush1.xpose.msra.mxu0 0.0
        %2318 = vmatprep.subr.mxu0 0.0
        %2319 = vmatpush1.xpose.msra.mxu0 0.0
        %2320 = vmatprep.subr.mxu0 0.0
        %2321 = vmatpush1.xpose.msra.mxu0 0.0
        %2322 = vmatprep.subr.mxu0 0.0
        %2323 = vmatpush1.xpose.msra.mxu0 0.0
        %2324 = vmatprep.subr.mxu0 0.0
        %2325 = vmatpush1.xpose.msra.mxu0 0.0
        %2326 = vmatprep.subr.mxu0 0.0
        %2327 = vmatpush1.xpose.msra.mxu0 0.0
        %2328 = vmatprep.subr.mxu0 0.0
        %2329 = vmatpush1.xpose.msra.mxu0 0.0
        %2330 = vmatprep.subr.mxu0 0.0
        %2331 = vmatpush1.xpose.msra.mxu0 0.0
        %2332 = vmatprep.subr.mxu0 0.0
        %2333 = vmatpush1.xpose.msra.mxu0 0.0
        %2334 = vmatprep.subr.mxu0 0.0
        %2335 = vmatpush1.xpose.msra.mxu0 0.0
        %2336 = vmatprep.subr.mxu0 0.0
        %2337 = vmatpush1.xpose.msra.mxu0 0.0
        %2338 = vmatprep.subr.mxu0 0.0
        %2339 = vmatpush1.xpose.msra.mxu0 0.0
        %2340 = vmatprep.subr.mxu0 0.0
        %2341 = vmatpush1.xpose.msra.mxu0 0.0
        %2342 = vmatprep.subr.mxu0 0.0
        %2343 = vmatpush1.xpose.msra.mxu0 0.0
        %2344 = vmatprep.subr.mxu0 0.0
        %2345 = vmatpush1.xpose.msra.mxu0 0.0
        %2346 = vmatprep.subr.mxu0 0.0
        %2347 = vmatpush1.xpose.msra.mxu0 0.0
        %2348 = vmatprep.subr.mxu0 0.0
        %2349 = vmatpush1.xpose.msra.mxu0 0.0
        %2350 = vmatprep.subr.mxu0 0.0
        %2351 = vmatpush1.xpose.msra.mxu0 0.0
        %2352 = vmatprep.subr.mxu0 0.0
        %2353 = vmatpush1.xpose.msra.mxu0 0.0
        %2354 = vmatprep.subr.mxu0 0.0
        %2355 = vmatpush1.xpose.msra.mxu0 0.0
        %2356 = vmatprep.subr.mxu0 0.0
        %2357 = vmatpush1.xpose.msra.mxu0 0.0
        %2358 = vmatprep.subr.mxu0 0.0
        %2359 = vmatpush1.xpose.msra.mxu0 0.0
        %2360 = vmatprep.subr.mxu0 0.0
        %2361 = vmatpush1.xpose.msra.mxu0 0.0
        %2362 = vmatprep.mubr.f32.mxu0 0.0
        %2363 = vmatmul.mubr.f32.gmra.mrb[0].mxu0 %v2293
        %v2364 = vpop.f32.mrb[0].mxu0
        %v2365 = vadd.f32 0.0, %v2364
        %v2366 = vpop.f32.mrb[0].mxu0
        %2367 = vmatprep.mubr.f32.mxu0 0.0
        %2368 = vmatmul.mubr.f32.gmra.mrb[0].mxu0 %v2296
        %v2369 = vpop.f32.mrb[0].mxu0
        %v2370 = vadd.f32 0.0, %v2369
        %v2371 = vpop.f32.mrb[0].mxu0
        %2372 = vdwg.mxu0
        %v2373 = vmax.f32 %v1150, 0.0
        %v2374 = vmax.f32 %v1155, 0.0
        %v2375 = vmax.f32 %v1231, 0.0
        %v2376 = vmax.f32 %v1236, 0.0
        %v2377 = vmax.f32 %v1312, 0.0
        %v2378 = vmax.f32 %v1317, 0.0
        %v2379 = vmax.f32 %v1393, 0.0
        %v2380 = vmax.f32 %v1398, 0.0
        %v2381 = vmax.f32 %v1474, 0.0
        %v2382 = vmax.f32 %v1479, 0.0
        %v2383 = vmax.f32 %v1555, 0.0
        %v2384 = vmax.f32 %v1560, 0.0
        %v2385 = vmax.f32 %v1636, 0.0
        %v2386 = vmax.f32 %v1641, 0.0
        %v2387 = vmax.f32 %v1717, 0.0
        %v2388 = vmax.f32 %v1722, 0.0
        %v2389 = vmax.f32 %v1798, 0.0
        %v2390 = vmax.f32 %v1803, 0.0
        %v2391 = vmax.f32 %v1879, 0.0
        %v2392 = vmax.f32 %v1884, 0.0
        %v2393 = vmax.f32 %v1960, 0.0
        %v2394 = vmax.f32 %v1965, 0.0
        %v2395 = vmax.f32 %v2041, 0.0
        %v2396 = vmax.f32 %v2046, 0.0
        %v2397 = vmax.f32 %v2122, 0.0
        %v2398 = vmax.f32 %v2127, 0.0
        %v2399 = vmax.f32 %v2203, 0.0
        %v2400 = vmax.f32 %v2208, 0.0
        %v2401 = vmax.f32 %v2284, 0.0
        %v2402 = vmax.f32 %v2289, 0.0
        %v2403 = vmax.f32 %v2365, 0.0
        %v2404 = vmax.f32 %v2370, 0.0
        %v2405 = vsub.f32 0.0, %v1150
        %v2406 = vsub.f32 0.0, %v1155
        %v2407 = vsub.f32 0.0, %v1231
        %v2408 = vsub.f32 0.0, %v1236
        %v2409 = vsub.f32 0.0, %v1312
        %v2410 = vsub.f32 0.0, %v1317
        %v2411 = vsub.f32 0.0, %v1393
        %v2412 = vsub.f32 0.0, %v1398
        %v2413 = vsub.f32 0.0, %v1474
        %v2414 = vsub.f32 0.0, %v1479
        %v2415 = vsub.f32 0.0, %v1555
        %v2416 = vsub.f32 0.0, %v1560
        %v2417 = vsub.f32 0.0, %v1636
        %v2418 = vsub.f32 0.0, %v1641
        %v2419 = vsub.f32 0.0, %v1717
        %v2420 = vsub.f32 0.0, %v1722
        %v2421 = vsub.f32 0.0, %v1798
        %v2422 = vsub.f32 0.0, %v1803
        %v2423 = vsub.f32 0.0, %v1879
        %v2424 = vsub.f32 0.0, %v1884
        %v2425 = vsub.f32 0.0, %v1960
        %v2426 = vsub.f32 0.0, %v1965
        %v2427 = vsub.f32 0.0, %v2041
        %v2428 = vsub.f32 0.0, %v2046
        %v2429 = vsub.f32 0.0, %v2122
        %v2430 = vsub.f32 0.0, %v2127
        %v2431 = vsub.f32 0.0, %v2203
        %v2432 = vsub.f32 0.0, %v2208
        %v2433 = vsub.f32 0.0, %v2284
        %v2434 = vsub.f32 0.0, %v2289
        %v2435 = vsub.f32 0.0, %v2365
        %v2436 = vsub.f32 0.0, %v2370
        %v2437 = vmax.f32 %v2405, 0.0
        %v2438 = vmax.f32 %v2406, 0.0
        %v2439 = vmax.f32 %v2407, 0.0
        %v2440 = vmax.f32 %v2408, 0.0
        %v2441 = vmax.f32 %v2409, 0.0
        %v2442 = vmax.f32 %v2410, 0.0
        %v2443 = vmax.f32 %v2411, 0.0
        %v2444 = vmax.f32 %v2412, 0.0
        %v2445 = vmax.f32 %v2413, 0.0
        %v2446 = vmax.f32 %v2414, 0.0
        %v2447 = vmax.f32 %v2415, 0.0
        %v2448 = vmax.f32 %v2416, 0.0
        %v2449 = vmax.f32 %v2417, 0.0
        %v2450 = vmax.f32 %v2418, 0.0
        %v2451 = vmax.f32 %v2419, 0.0
        %v2452 = vmax.f32 %v2420, 0.0
        %v2453 = vmax.f32 %v2421, 0.0
        %v2454 = vmax.f32 %v2422, 0.0
        %v2455 = vmax.f32 %v2423, 0.0
        %v2456 = vmax.f32 %v2424, 0.0
        %v2457 = vmax.f32 %v2425, 0.0
        %v2458 = vmax.f32 %v2426, 0.0
        %v2459 = vmax.f32 %v2427, 0.0
        %v2460 = vmax.f32 %v2428, 0.0
        %v2461 = vmax.f32 %v2429, 0.0
        %v2462 = vmax.f32 %v2430, 0.0
        %v2463 = vmax.f32 %v2431, 0.0
        %v2464 = vmax.f32 %v2432, 0.0
        %v2465 = vmax.f32 %v2433, 0.0
        %v2466 = vmax.f32 %v2434, 0.0
        %v2467 = vmax.f32 %v2435, 0.0
        %v2468 = vmax.f32 %v2436, 0.0
        %v2469 = vld [vmem:[%s220] sm:$0xff]
        %v2470 = vld [vmem:[%s220 + $0x8] sm:$0xff]
        %v2471 = vld [vmem:[%s220 + $0x10] sm:$0xff]
        %v2472 = vld [vmem:[%s220 + $0x18] sm:$0xff]
        %v2473 = vld [vmem:[%s220 + $0x20] sm:$0xff]
        %v2474 = vld [vmem:[%s220 + $0x28] sm:$0xff]
        %v2475 = vld [vmem:[%s220 + $0x30] sm:$0xff]
        %v2476 = vld [vmem:[%s220 + $0x38] sm:$0xff]
        %v2477 = vld [vmem:[%s220 + $0x40] sm:$0xff]
        %v2478 = vld [vmem:[%s220 + $0x48] sm:$0xff]
        %v2479 = vld [vmem:[%s220 + $0x50] sm:$0xff]
        %v2480 = vld [vmem:[%s220 + $0x58] sm:$0xff]
        %v2481 = vld [vmem:[%s220 + $0x60] sm:$0xff]
        %v2482 = vld [vmem:[%s220 + $0x68] sm:$0xff]
        %v2483 = vld [vmem:[%s220 + $0x70] sm:$0xff]
        %v2484 = vld [vmem:[%s220 + $0x78] sm:$0xff]
        %v2485 = vld [vmem:[%s220 + $0x80] sm:$0xff]
        %v2486 = vld [vmem:[%s220 + $0x88] sm:$0xff]
        %v2487 = vld [vmem:[%s220 + $0x90] sm:$0xff]
        %v2488 = vld [vmem:[%s220 + $0x98] sm:$0xff]
        %v2489 = vld [vmem:[%s220 + $0xa0] sm:$0xff]
        %v2490 = vld [vmem:[%s220 + $0xa8] sm:$0xff]
        %v2491 = vld [vmem:[%s220 + $0xb0] sm:$0xff]
        %v2492 = vld [vmem:[%s220 + $0xb8] sm:$0xff]
        %v2493 = vld [vmem:[%s220 + $0xc0] sm:$0xff]
        %v2494 = vld [vmem:[%s220 + $0xc8] sm:$0xff]
        %v2495 = vld [vmem:[%s220 + $0xd0] sm:$0xff]
        %v2496 = vld [vmem:[%s220 + $0xd8] sm:$0xff]
        %v2497 = vld [vmem:[%s220 + $0xe0] sm:$0xff]
        %v2498 = vld [vmem:[%s220 + $0xe8] sm:$0xff]
        %v2499 = vld [vmem:[%s220 + $0xf0] sm:$0xff]
        %v2500 = vld [vmem:[%s220 + $0xf8] sm:$0xff]
        %v2501 = vmul.f32 %v2437, %v2469
        %v2502 = vmul.f32 %v2438, %v2470
        %v2503 = vmul.f32 %v2439, %v2471
        %v2504 = vmul.f32 %v2440, %v2472
        %v2505 = vmul.f32 %v2441, %v2473
        %v2506 = vmul.f32 %v2442, %v2474
        %v2507 = vmul.f32 %v2443, %v2475
        %v2508 = vmul.f32 %v2444, %v2476
        %v2509 = vmul.f32 %v2445, %v2477
        %v2510 = vmul.f32 %v2446, %v2478
        %v2511 = vmul.f32 %v2447, %v2479
        %v2512 = vmul.f32 %v2448, %v2480
        %v2513 = vmul.f32 %v2449, %v2481
        %v2514 = vmul.f32 %v2450, %v2482
        %v2515 = vmul.f32 %v2451, %v2483
        %v2516 = vmul.f32 %v2452, %v2484
        %v2517 = vmul.f32 %v2453, %v2485
        %v2518 = vmul.f32 %v2454, %v2486
        %v2519 = vmul.f32 %v2455, %v2487
        %v2520 = vmul.f32 %v2456, %v2488
        %v2521 = vmul.f32 %v2457, %v2489
        %v2522 = vmul.f32 %v2458, %v2490
        %v2523 = vmul.f32 %v2459, %v2491
        %v2524 = vmul.f32 %v2460, %v2492
        %v2525 = vmul.f32 %v2461, %v2493
        %v2526 = vmul.f32 %v2462, %v2494
        %v2527 = vmul.f32 %v2463, %v2495
        %v2528 = vmul.f32 %v2464, %v2496
        %v2529 = vmul.f32 %v2465, %v2497
        %v2530 = vmul.f32 %v2466, %v2498
        %v2531 = vmul.f32 %v2467, %v2499
        %v2532 = vmul.f32 %v2468, %v2500
        %v2533 = vmax.f32 %v2501, 0.0
        %v2534 = vmax.f32 %v2502, 0.0
        %v2535 = vmax.f32 %v2503, 0.0
        %v2536 = vmax.f32 %v2504, 0.0
        %v2537 = vmax.f32 %v2505, 0.0
        %v2538 = vmax.f32 %v2506, 0.0
        %v2539 = vmax.f32 %v2507, 0.0
        %v2540 = vmax.f32 %v2508, 0.0
        %v2541 = vmax.f32 %v2509, 0.0
        %v2542 = vmax.f32 %v2510, 0.0
        %v2543 = vmax.f32 %v2511, 0.0
        %v2544 = vmax.f32 %v2512, 0.0
        %v2545 = vmax.f32 %v2513, 0.0
        %v2546 = vmax.f32 %v2514, 0.0
        %v2547 = vmax.f32 %v2515, 0.0
        %v2548 = vmax.f32 %v2516, 0.0
        %v2549 = vmax.f32 %v2517, 0.0
        %v2550 = vmax.f32 %v2518, 0.0
        %v2551 = vmax.f32 %v2519, 0.0
        %v2552 = vmax.f32 %v2520, 0.0
        %v2553 = vmax.f32 %v2521, 0.0
        %v2554 = vmax.f32 %v2522, 0.0
        %v2555 = vmax.f32 %v2523, 0.0
        %v2556 = vmax.f32 %v2524, 0.0
        %v2557 = vmax.f32 %v2525, 0.0
        %v2558 = vmax.f32 %v2526, 0.0
        %v2559 = vmax.f32 %v2527, 0.0
        %v2560 = vmax.f32 %v2528, 0.0
        %v2561 = vmax.f32 %v2529, 0.0
        %v2562 = vmax.f32 %v2530, 0.0
        %v2563 = vmax.f32 %v2531, 0.0
        %v2564 = vmax.f32 %v2532, 0.0
        %vm2565 = vcmask 130048
        %2566 = vst.msk [vmem:[%s207] sm:$0xff] %vm2565, %v2373
        %2567 = vst.msk [vmem:[%s207 + $0x8] sm:$0xff] %vm2565, %v2374
        %2568 = vst.msk [vmem:[%s207 + $0x10] sm:$0xff] %vm2565, %v2375
        %2569 = vst.msk [vmem:[%s207 + $0x18] sm:$0xff] %vm2565, %v2376
        %2570 = vst.msk [vmem:[%s207 + $0x20] sm:$0xff] %vm2565, %v2377
        %2571 = vst.msk [vmem:[%s207 + $0x28] sm:$0xff] %vm2565, %v2378
        %2572 = vst.msk [vmem:[%s207 + $0x30] sm:$0xff] %vm2565, %v2379
        %2573 = vst.msk [vmem:[%s207 + $0x38] sm:$0xff] %vm2565, %v2380
        %2574 = vst.msk [vmem:[%s207 + $0x40] sm:$0xff] %vm2565, %v2381
        %2575 = vst.msk [vmem:[%s207 + $0x48] sm:$0xff] %vm2565, %v2382
        %2576 = vst.msk [vmem:[%s207 + $0x50] sm:$0xff] %vm2565, %v2383
        %2577 = vst.msk [vmem:[%s207 + $0x58] sm:$0xff] %vm2565, %v2384
        %2578 = vst.msk [vmem:[%s207 + $0x60] sm:$0xff] %vm2565, %v2385
        %2579 = vst.msk [vmem:[%s207 + $0x68] sm:$0xff] %vm2565, %v2386
        %2580 = vst.msk [vmem:[%s207 + $0x70] sm:$0xff] %vm2565, %v2387
        %2581 = vst.msk [vmem:[%s207 + $0x78] sm:$0xff] %vm2565, %v2388
        %2582 = vst.msk [vmem:[%s207 + $0x80] sm:$0xff] %vm2565, %v2389
        %2583 = vst.msk [vmem:[%s207 + $0x88] sm:$0xff] %vm2565, %v2390
        %2584 = vst.msk [vmem:[%s207 + $0x90] sm:$0xff] %vm2565, %v2391
        %2585 = vst.msk [vmem:[%s207 + $0x98] sm:$0xff] %vm2565, %v2392
        %2586 = vst.msk [vmem:[%s207 + $0xa0] sm:$0xff] %vm2565, %v2393
        %2587 = vst.msk [vmem:[%s207 + $0xa8] sm:$0xff] %vm2565, %v2394
        %2588 = vst.msk [vmem:[%s207 + $0xb0] sm:$0xff] %vm2565, %v2395
        %2589 = vst.msk [vmem:[%s207 + $0xb8] sm:$0xff] %vm2565, %v2396
        %2590 = vst.msk [vmem:[%s207 + $0xc0] sm:$0xff] %vm2565, %v2397
        %2591 = vst.msk [vmem:[%s207 + $0xc8] sm:$0xff] %vm2565, %v2398
        %2592 = vst.msk [vmem:[%s207 + $0xd0] sm:$0xff] %vm2565, %v2399
        %2593 = vst.msk [vmem:[%s207 + $0xd8] sm:$0xff] %vm2565, %v2400
        %2594 = vst.msk [vmem:[%s207 + $0xe0] sm:$0xff] %vm2565, %v2401
        %2595 = vst.msk [vmem:[%s207 + $0xe8] sm:$0xff] %vm2565, %v2402
        %2596 = vst.msk [vmem:[%s207 + $0xf0] sm:$0xff] %vm2565, %v2403
        %2597 = vst.msk [vmem:[%s207 + $0xf8] sm:$0xff] %vm2565, %v2404
        %s2598 = scalar_lea.vmem %s207, 256 [#allocation2]
        %2599 = vst.msk [vmem:[%s2598] sm:$0xff] %vm2565, %v2533
        %2600 = vst.msk [vmem:[%s2598 + $0x8] sm:$0xff] %vm2565, %v2534
        %2601 = vst.msk [vmem:[%s2598 + $0x10] sm:$0xff] %vm2565, %v2535
        %2602 = vst.msk [vmem:[%s2598 + $0x18] sm:$0xff] %vm2565, %v2536
        %2603 = vst.msk [vmem:[%s2598 + $0x20] sm:$0xff] %vm2565, %v2537
        %2604 = vst.msk [vmem:[%s2598 + $0x28] sm:$0xff] %vm2565, %v2538
        %2605 = vst.msk [vmem:[%s2598 + $0x30] sm:$0xff] %vm2565, %v2539
        %2606 = vst.msk [vmem:[%s2598 + $0x38] sm:$0xff] %vm2565, %v2540
        %2607 = vst.msk [vmem:[%s2598 + $0x40] sm:$0xff] %vm2565, %v2541
        %2608 = vst.msk [vmem:[%s2598 + $0x48] sm:$0xff] %vm2565, %v2542
        %2609 = vst.msk [vmem:[%s2598 + $0x50] sm:$0xff] %vm2565, %v2543
        %2610 = vst.msk [vmem:[%s2598 + $0x58] sm:$0xff] %vm2565, %v2544
        %2611 = vst.msk [vmem:[%s2598 + $0x60] sm:$0xff] %vm2565, %v2545
        %2612 = vst.msk [vmem:[%s2598 + $0x68] sm:$0xff] %vm2565, %v2546
        %2613 = vst.msk [vmem:[%s2598 + $0x70] sm:$0xff] %vm2565, %v2547
        %2614 = vst.msk [vmem:[%s2598 + $0x78] sm:$0xff] %vm2565, %v2548
        %2615 = vst.msk [vmem:[%s2598 + $0x80] sm:$0xff] %vm2565, %v2549
        %2616 = vst.msk [vmem:[%s2598 + $0x88] sm:$0xff] %vm2565, %v2550
        %2617 = vst.msk [vmem:[%s2598 + $0x90] sm:$0xff] %vm2565, %v2551
        %2618 = vst.msk [vmem:[%s2598 + $0x98] sm:$0xff] %vm2565, %v2552
        %2619 = vst.msk [vmem:[%s2598 + $0xa0] sm:$0xff] %vm2565, %v2553
        %2620 = vst.msk [vmem:[%s2598 + $0xa8] sm:$0xff] %vm2565, %v2554
        %2621 = vst.msk [vmem:[%s2598 + $0xb0] sm:$0xff] %vm2565, %v2555
        %2622 = vst.msk [vmem:[%s2598 + $0xb8] sm:$0xff] %vm2565, %v2556
        %2623 = vst.msk [vmem:[%s2598 + $0xc0] sm:$0xff] %vm2565, %v2557
        %2624 = vst.msk [vmem:[%s2598 + $0xc8] sm:$0xff] %vm2565, %v2558
        %2625 = vst.msk [vmem:[%s2598 + $0xd0] sm:$0xff] %vm2565, %v2559
        %2626 = vst.msk [vmem:[%s2598 + $0xd8] sm:$0xff] %vm2565, %v2560
        %2627 = vst.msk [vmem:[%s2598 + $0xe0] sm:$0xff] %vm2565, %v2561
        %2628 = vst.msk [vmem:[%s2598 + $0xe8] sm:$0xff] %vm2565, %v2562
        %2629 = vst.msk [vmem:[%s2598 + $0xf0] sm:$0xff] %vm2565, %v2563
        %2630 = vst.msk [vmem:[%s2598 + $0xf8] sm:$0xff] %vm2565, %v2564
        %s2631 = sand.u32 %s117, 1
        %s2632 = sand.u32 %s117, 1
        %s2633 = smul.addr %s2632, 512
        %s2634 = scalar_lea.vmem [#allocation2], %s2633
        // Predicated region
        $region37: #{unidire_adj_forward.1} parent=35 // pred_check
          %p2635 = pneg %p127
        $region38: #{unidire_adj_forward.1} parent=35 // pred_check_branch
          %2637 = sbr.rel (%p2635) target = $region40
        $region39: #{unidire_adj_forward.1} parent=35 // pred_region
          %s2638 = smul.u32 16, %s15
          %s2639 = smul.addr %s2638, 2
          %s2640 = smul.addr %s2639, 8
          %s2641 = scalar_lea.vmem %s4, %s2640
          // Predicated region
          $region41: #{unidire_adj_forward.1} parent=39 // pred_check
            _
          $region42: #{unidire_adj_forward.1} parent=39 // pred_check_branch
            %2643 = sbr.rel (0) target = $region44
          $region43: #{unidire_adj_forward.1} parent=39 // pred_region
            // Predicated region
            $region45: #{unidire_adj_forward.1} parent=43 // pred_check
              _
            $region46: #{unidire_adj_forward.1} parent=43 // pred_check_branch
              %2645 = sbr.rel (0) target = $region48
            $region47: #{unidire_adj_forward.1} parent=43 // pred_region
              // Predicated region
              $region60: #{unidire_adj_forward.1} parent=47 // pred_check
                _
              $region61: #{unidire_adj_forward.1} parent=47 // pred_check_branch
                %2786 = sbr.rel (0) target = $region63
              $region62: #{unidire_adj_forward.1} parent=47 // pred_region
                loop: start=0, step=1, limit=1
                $region64: #{unidire_adj_forward.1} parent=62 // loop_pre_header
                  _
                $region65: #{unidire_adj_forward.1} parent=62 // loop_header
                  %s2788 = sphi 0, %s2792
                  %p2789 = scmp.ge.s32.totalorder %s2788, 1
                  %s2793 = sphi %s2634, %s2634
                  %s2794 = sphi %s2641, %s2641
                $region66: #{unidire_adj_forward.1} parent=62 // loop_header_branch
                  %2791 = sbr.rel (%p2789) target = $region70
                $region67: #{unidire_adj_forward.1} parent=62 // loop_body
                  %v2795 = vld [vmem:[%s2793] sm:$0xff]
                  %2796 = vst [vmem:[%s2794] sm:$0xff] %v2795
                  %v2797 = vld [vmem:[%s2793 + $0x8] sm:$0xff]
                  %2798 = vst [vmem:[%s2794 + $0x8] sm:$0xff] %v2797
                  %v2799 = vld [vmem:[%s2793 + $0x10] sm:$0xff]
                  %2800 = vst [vmem:[%s2794 + $0x10] sm:$0xff] %v2799
                  %v2801 = vld [vmem:[%s2793 + $0x18] sm:$0xff]
                  %2802 = vst [vmem:[%s2794 + $0x18] sm:$0xff] %v2801
                  %v2803 = vld [vmem:[%s2793 + $0x20] sm:$0xff]
                  %2804 = vst [vmem:[%s2794 + $0x20] sm:$0xff] %v2803
                  %v2805 = vld [vmem:[%s2793 + $0x28] sm:$0xff]
                  %2806 = vst [vmem:[%s2794 + $0x28] sm:$0xff] %v2805
                  %v2807 = vld [vmem:[%s2793 + $0x30] sm:$0xff]
                  %2808 = vst [vmem:[%s2794 + $0x30] sm:$0xff] %v2807
                  %v2809 = vld [vmem:[%s2793 + $0x38] sm:$0xff]
                  %2810 = vst [vmem:[%s2794 + $0x38] sm:$0xff] %v2809
                  %v2811 = vld [vmem:[%s2793 + $0x40] sm:$0xff]
                  %2812 = vst [vmem:[%s2794 + $0x40] sm:$0xff] %v2811
                  %v2813 = vld [vmem:[%s2793 + $0x48] sm:$0xff]
                  %2814 = vst [vmem:[%s2794 + $0x48] sm:$0xff] %v2813
                  %v2815 = vld [vmem:[%s2793 + $0x50] sm:$0xff]
                  %2816 = vst [vmem:[%s2794 + $0x50] sm:$0xff] %v2815
                  %v2817 = vld [vmem:[%s2793 + $0x58] sm:$0xff]
                  %2818 = vst [vmem:[%s2794 + $0x58] sm:$0xff] %v2817
                  %v2819 = vld [vmem:[%s2793 + $0x60] sm:$0xff]
                  %2820 = vst [vmem:[%s2794 + $0x60] sm:$0xff] %v2819
                  %v2821 = vld [vmem:[%s2793 + $0x68] sm:$0xff]
                  %2822 = vst [vmem:[%s2794 + $0x68] sm:$0xff] %v2821
                  %v2823 = vld [vmem:[%s2793 + $0x70] sm:$0xff]
                  %2824 = vst [vmem:[%s2794 + $0x70] sm:$0xff] %v2823
                  %v2825 = vld [vmem:[%s2793 + $0x78] sm:$0xff]
                  %2826 = vst [vmem:[%s2794 + $0x78] sm:$0xff] %v2825
                  %v2827 = vld [vmem:[%s2793 + $0x80] sm:$0xff]
                  %2828 = vst [vmem:[%s2794 + $0x80] sm:$0xff] %v2827
                  %v2829 = vld [vmem:[%s2793 + $0x88] sm:$0xff]
                  %2830 = vst [vmem:[%s2794 + $0x88] sm:$0xff] %v2829
                  %v2831 = vld [vmem:[%s2793 + $0x90] sm:$0xff]
                  %2832 = vst [vmem:[%s2794 + $0x90] sm:$0xff] %v2831
                  %v2833 = vld [vmem:[%s2793 + $0x98] sm:$0xff]
                  %2834 = vst [vmem:[%s2794 + $0x98] sm:$0xff] %v2833
                  %v2835 = vld [vmem:[%s2793 + $0xa0] sm:$0xff]
                  %2836 = vst [vmem:[%s2794 + $0xa0] sm:$0xff] %v2835
                  %v2837 = vld [vmem:[%s2793 + $0xa8] sm:$0xff]
                  %2838 = vst [vmem:[%s2794 + $0xa8] sm:$0xff] %v2837
                  %v2839 = vld [vmem:[%s2793 + $0xb0] sm:$0xff]
                  %2840 = vst [vmem:[%s2794 + $0xb0] sm:$0xff] %v2839
                  %v2841 = vld [vmem:[%s2793 + $0xb8] sm:$0xff]
                  %2842 = vst [vmem:[%s2794 + $0xb8] sm:$0xff] %v2841
                  %v2843 = vld [vmem:[%s2793 + $0xc0] sm:$0xff]
                  %2844 = vst [vmem:[%s2794 + $0xc0] sm:$0xff] %v2843
                  %v2845 = vld [vmem:[%s2793 + $0xc8] sm:$0xff]
                  %2846 = vst [vmem:[%s2794 + $0xc8] sm:$0xff] %v2845
                  %v2847 = vld [vmem:[%s2793 + $0xd0] sm:$0xff]
                  %2848 = vst [vmem:[%s2794 + $0xd0] sm:$0xff] %v2847
                  %v2849 = vld [vmem:[%s2793 + $0xd8] sm:$0xff]
                  %2850 = vst [vmem:[%s2794 + $0xd8] sm:$0xff] %v2849
                  %v2851 = vld [vmem:[%s2793 + $0xe0] sm:$0xff]
                  %2852 = vst [vmem:[%s2794 + $0xe0] sm:$0xff] %v2851
                  %v2853 = vld [vmem:[%s2793 + $0xe8] sm:$0xff]
                  %2854 = vst [vmem:[%s2794 + $0xe8] sm:$0xff] %v2853
                  %v2855 = vld [vmem:[%s2793 + $0xf0] sm:$0xff]
                  %2856 = vst [vmem:[%s2794 + $0xf0] sm:$0xff] %v2855
                  %v2857 = vld [vmem:[%s2793 + $0xf8] sm:$0xff]
                  %2858 = vst [vmem:[%s2794 + $0xf8] sm:$0xff] %v2857
                  %v2859 = vld [vmem:[%s2793 + $0x100] sm:$0xff]
                  %2860 = vst [vmem:[%s2794 + $0x200] sm:$0xff] %v2859
                  %v2861 = vld [vmem:[%s2793 + $0x108] sm:$0xff]
                  %2862 = vst [vmem:[%s2794 + $0x208] sm:$0xff] %v2861
                  %v2863 = vld [vmem:[%s2793 + $0x110] sm:$0xff]
                  %2864 = vst [vmem:[%s2794 + $0x210] sm:$0xff] %v2863
                  %v2865 = vld [vmem:[%s2793 + $0x118] sm:$0xff]
                  %2866 = vst [vmem:[%s2794 + $0x218] sm:$0xff] %v2865
                  %v2867 = vld [vmem:[%s2793 + $0x120] sm:$0xff]
                  %2868 = vst [vmem:[%s2794 + $0x220] sm:$0xff] %v2867
                  %v2869 = vld [vmem:[%s2793 + $0x128] sm:$0xff]
                  %2870 = vst [vmem:[%s2794 + $0x228] sm:$0xff] %v2869
                  %v2871 = vld [vmem:[%s2793 + $0x130] sm:$0xff]
                  %2872 = vst [vmem:[%s2794 + $0x230] sm:$0xff] %v2871
                  %v2873 = vld [vmem:[%s2793 + $0x138] sm:$0xff]
                  %2874 = vst [vmem:[%s2794 + $0x238] sm:$0xff] %v2873
                  %v2875 = vld [vmem:[%s2793 + $0x140] sm:$0xff]
                  %2876 = vst [vmem:[%s2794 + $0x240] sm:$0xff] %v2875
                  %v2877 = vld [vmem:[%s2793 + $0x148] sm:$0xff]
                  %2878 = vst [vmem:[%s2794 + $0x248] sm:$0xff] %v2877
                  %v2879 = vld [vmem:[%s2793 + $0x150] sm:$0xff]
                  %2880 = vst [vmem:[%s2794 + $0x250] sm:$0xff] %v2879
                  %v2881 = vld [vmem:[%s2793 + $0x158] sm:$0xff]
                  %2882 = vst [vmem:[%s2794 + $0x258] sm:$0xff] %v2881
                  %v2883 = vld [vmem:[%s2793 + $0x160] sm:$0xff]
                  %2884 = vst [vmem:[%s2794 + $0x260] sm:$0xff] %v2883
                  %v2885 = vld [vmem:[%s2793 + $0x168] sm:$0xff]
                  %2886 = vst [vmem:[%s2794 + $0x268] sm:$0xff] %v2885
                  %v2887 = vld [vmem:[%s2793 + $0x170] sm:$0xff]
                  %2888 = vst [vmem:[%s2794 + $0x270] sm:$0xff] %v2887
                  %v2889 = vld [vmem:[%s2793 + $0x178] sm:$0xff]
                  %2890 = vst [vmem:[%s2794 + $0x278] sm:$0xff] %v2889
                  %v2891 = vld [vmem:[%s2793 + $0x180] sm:$0xff]
                  %2892 = vst [vmem:[%s2794 + $0x280] sm:$0xff] %v2891
                  %v2893 = vld [vmem:[%s2793 + $0x188] sm:$0xff]
                  %2894 = vst [vmem:[%s2794 + $0x288] sm:$0xff] %v2893
                  %v2895 = vld [vmem:[%s2793 + $0x190] sm:$0xff]
                  %2896 = vst [vmem:[%s2794 + $0x290] sm:$0xff] %v2895
                  %v2897 = vld [vmem:[%s2793 + $0x198] sm:$0xff]
                  %2898 = vst [vmem:[%s2794 + $0x298] sm:$0xff] %v2897
                  %v2899 = vld [vmem:[%s2793 + $0x1a0] sm:$0xff]
                  %2900 = vst [vmem:[%s2794 + $0x2a0] sm:$0xff] %v2899
                  %v2901 = vld [vmem:[%s2793 + $0x1a8] sm:$0xff]
                  %2902 = vst [vmem:[%s2794 + $0x2a8] sm:$0xff] %v2901
                  %v2903 = vld [vmem:[%s2793 + $0x1b0] sm:$0xff]
                  %2904 = vst [vmem:[%s2794 + $0x2b0] sm:$0xff] %v2903
                  %v2905 = vld [vmem:[%s2793 + $0x1b8] sm:$0xff]
                  %2906 = vst [vmem:[%s2794 + $0x2b8] sm:$0xff] %v2905
                  %v2907 = vld [vmem:[%s2793 + $0x1c0] sm:$0xff]
                  %2908 = vst [vmem:[%s2794 + $0x2c0] sm:$0xff] %v2907
                  %v2909 = vld [vmem:[%s2793 + $0x1c8] sm:$0xff]
                  %2910 = vst [vmem:[%s2794 + $0x2c8] sm:$0xff] %v2909
                  %v2911 = vld [vmem:[%s2793 + $0x1d0] sm:$0xff]
                  %2912 = vst [vmem:[%s2794 + $0x2d0] sm:$0xff] %v2911
                  %v2913 = vld [vmem:[%s2793 + $0x1d8] sm:$0xff]
                  %2914 = vst [vmem:[%s2794 + $0x2d8] sm:$0xff] %v2913
                  %v2915 = vld [vmem:[%s2793 + $0x1e0] sm:$0xff]
                  %2916 = vst [vmem:[%s2794 + $0x2e0] sm:$0xff] %v2915
                  %v2917 = vld [vmem:[%s2793 + $0x1e8] sm:$0xff]
                  %2918 = vst [vmem:[%s2794 + $0x2e8] sm:$0xff] %v2917
                  %v2919 = vld [vmem:[%s2793 + $0x1f0] sm:$0xff]
                  %2920 = vst [vmem:[%s2794 + $0x2f0] sm:$0xff] %v2919
                  %v2921 = vld [vmem:[%s2793 + $0x1f8] sm:$0xff]
                  %2922 = vst [vmem:[%s2794 + $0x2f8] sm:$0xff] %v2921
                $region68: #{unidire_adj_forward.1} parent=62 // loop_footer
                  %s2792 = sadd.s32 1, %s2788
                $region69: #{unidire_adj_forward.1} parent=62 // loop_footer_branch
                  %2787 = sbr.rel target = $region65
                $region70: #{unidire_adj_forward.1} parent=62 // loop_exit
                  _
              $region63: #{unidire_adj_forward.1} parent=47 // pred_fallthru
                _
              // Predicated region
              $region71: #{unidire_adj_forward.1} parent=47 // pred_check
                _
              $region72: #{unidire_adj_forward.1} parent=47 // pred_check_branch
                %2924 = sbr.rel target = $region74
              $region73: #{unidire_adj_forward.1} parent=47 // pred_region
                _
              $region74: #{unidire_adj_forward.1} parent=47 // pred_fallthru
                _
            $region48: #{unidire_adj_forward.1} parent=43 // pred_fallthru
              _
            // Predicated region
            $region49: #{unidire_adj_forward.1} parent=43 // pred_check
              _
            $region50: #{unidire_adj_forward.1} parent=43 // pred_check_branch
              %2647 = sbr.rel target = $region52
            $region51: #{unidire_adj_forward.1} parent=43 // pred_region
              loop: start=0, step=1, limit=1
              $region53: #{unidire_adj_forward.1} parent=51 // loop_pre_header
                _
              $region54: #{unidire_adj_forward.1} parent=51 // loop_header
                %s2650 = sphi 0, %s2654
                %p2651 = scmp.ge.s32.totalorder %s2650, 1
                %s2655 = sphi %s2634, %s2634
                %s2656 = sphi %s2641, %s2641
              $region55: #{unidire_adj_forward.1} parent=51 // loop_header_branch
                %2653 = sbr.rel (%p2651) target = $region59
              $region56: #{unidire_adj_forward.1} parent=51 // loop_body
                %v2657 = vld [vmem:[%s2655] sm:$0xff]
                %2658 = vst [vmem:[%s2656] sm:$0xff] %v2657
                %v2659 = vld [vmem:[%s2655 + $0x8] sm:$0xff]
                %2660 = vst [vmem:[%s2656 + $0x8] sm:$0xff] %v2659
                %v2661 = vld [vmem:[%s2655 + $0x10] sm:$0xff]
                %2662 = vst [vmem:[%s2656 + $0x10] sm:$0xff] %v2661
                %v2663 = vld [vmem:[%s2655 + $0x18] sm:$0xff]
                %2664 = vst [vmem:[%s2656 + $0x18] sm:$0xff] %v2663
                %v2665 = vld [vmem:[%s2655 + $0x20] sm:$0xff]
                %2666 = vst [vmem:[%s2656 + $0x20] sm:$0xff] %v2665
                %v2667 = vld [vmem:[%s2655 + $0x28] sm:$0xff]
                %2668 = vst [vmem:[%s2656 + $0x28] sm:$0xff] %v2667
                %v2669 = vld [vmem:[%s2655 + $0x30] sm:$0xff]
                %2670 = vst [vmem:[%s2656 + $0x30] sm:$0xff] %v2669
                %v2671 = vld [vmem:[%s2655 + $0x38] sm:$0xff]
                %2672 = vst [vmem:[%s2656 + $0x38] sm:$0xff] %v2671
                %v2673 = vld [vmem:[%s2655 + $0x40] sm:$0xff]
                %2674 = vst [vmem:[%s2656 + $0x40] sm:$0xff] %v2673
                %v2675 = vld [vmem:[%s2655 + $0x48] sm:$0xff]
                %2676 = vst [vmem:[%s2656 + $0x48] sm:$0xff] %v2675
                %v2677 = vld [vmem:[%s2655 + $0x50] sm:$0xff]
                %2678 = vst [vmem:[%s2656 + $0x50] sm:$0xff] %v2677
                %v2679 = vld [vmem:[%s2655 + $0x58] sm:$0xff]
                %2680 = vst [vmem:[%s2656 + $0x58] sm:$0xff] %v2679
                %v2681 = vld [vmem:[%s2655 + $0x60] sm:$0xff]
                %2682 = vst [vmem:[%s2656 + $0x60] sm:$0xff] %v2681
                %v2683 = vld [vmem:[%s2655 + $0x68] sm:$0xff]
                %2684 = vst [vmem:[%s2656 + $0x68] sm:$0xff] %v2683
                %v2685 = vld [vmem:[%s2655 + $0x70] sm:$0xff]
                %2686 = vst [vmem:[%s2656 + $0x70] sm:$0xff] %v2685
                %v2687 = vld [vmem:[%s2655 + $0x78] sm:$0xff]
                %2688 = vst [vmem:[%s2656 + $0x78] sm:$0xff] %v2687
                %v2689 = vld [vmem:[%s2655 + $0x80] sm:$0xff]
                %2690 = vst [vmem:[%s2656 + $0x80] sm:$0xff] %v2689
                %v2691 = vld [vmem:[%s2655 + $0x88] sm:$0xff]
                %2692 = vst [vmem:[%s2656 + $0x88] sm:$0xff] %v2691
                %v2693 = vld [vmem:[%s2655 + $0x90] sm:$0xff]
                %2694 = vst [vmem:[%s2656 + $0x90] sm:$0xff] %v2693
                %v2695 = vld [vmem:[%s2655 + $0x98] sm:$0xff]
                %2696 = vst [vmem:[%s2656 + $0x98] sm:$0xff] %v2695
                %v2697 = vld [vmem:[%s2655 + $0xa0] sm:$0xff]
                %2698 = vst [vmem:[%s2656 + $0xa0] sm:$0xff] %v2697
                %v2699 = vld [vmem:[%s2655 + $0xa8] sm:$0xff]
                %2700 = vst [vmem:[%s2656 + $0xa8] sm:$0xff] %v2699
                %v2701 = vld [vmem:[%s2655 + $0xb0] sm:$0xff]
                %2702 = vst [vmem:[%s2656 + $0xb0] sm:$0xff] %v2701
                %v2703 = vld [vmem:[%s2655 + $0xb8] sm:$0xff]
                %2704 = vst [vmem:[%s2656 + $0xb8] sm:$0xff] %v2703
                %v2705 = vld [vmem:[%s2655 + $0xc0] sm:$0xff]
                %2706 = vst [vmem:[%s2656 + $0xc0] sm:$0xff] %v2705
                %v2707 = vld [vmem:[%s2655 + $0xc8] sm:$0xff]
                %2708 = vst [vmem:[%s2656 + $0xc8] sm:$0xff] %v2707
                %v2709 = vld [vmem:[%s2655 + $0xd0] sm:$0xff]
                %2710 = vst [vmem:[%s2656 + $0xd0] sm:$0xff] %v2709
                %v2711 = vld [vmem:[%s2655 + $0xd8] sm:$0xff]
                %2712 = vst [vmem:[%s2656 + $0xd8] sm:$0xff] %v2711
                %v2713 = vld [vmem:[%s2655 + $0xe0] sm:$0xff]
                %2714 = vst [vmem:[%s2656 + $0xe0] sm:$0xff] %v2713
                %v2715 = vld [vmem:[%s2655 + $0xe8] sm:$0xff]
                %2716 = vst [vmem:[%s2656 + $0xe8] sm:$0xff] %v2715
                %v2717 = vld [vmem:[%s2655 + $0xf0] sm:$0xff]
                %2718 = vst [vmem:[%s2656 + $0xf0] sm:$0xff] %v2717
                %v2719 = vld [vmem:[%s2655 + $0xf8] sm:$0xff]
                %2720 = vst [vmem:[%s2656 + $0xf8] sm:$0xff] %v2719
                %v2721 = vld [vmem:[%s2655 + $0x100] sm:$0xff]
                %2722 = vst [vmem:[%s2656 + $0x200] sm:$0xff] %v2721
                %v2723 = vld [vmem:[%s2655 + $0x108] sm:$0xff]
                %2724 = vst [vmem:[%s2656 + $0x208] sm:$0xff] %v2723
                %v2725 = vld [vmem:[%s2655 + $0x110] sm:$0xff]
                %2726 = vst [vmem:[%s2656 + $0x210] sm:$0xff] %v2725
                %v2727 = vld [vmem:[%s2655 + $0x118] sm:$0xff]
                %2728 = vst [vmem:[%s2656 + $0x218] sm:$0xff] %v2727
                %v2729 = vld [vmem:[%s2655 + $0x120] sm:$0xff]
                %2730 = vst [vmem:[%s2656 + $0x220] sm:$0xff] %v2729
                %v2731 = vld [vmem:[%s2655 + $0x128] sm:$0xff]
                %2732 = vst [vmem:[%s2656 + $0x228] sm:$0xff] %v2731
                %v2733 = vld [vmem:[%s2655 + $0x130] sm:$0xff]
                %2734 = vst [vmem:[%s2656 + $0x230] sm:$0xff] %v2733
                %v2735 = vld [vmem:[%s2655 + $0x138] sm:$0xff]
                %2736 = vst [vmem:[%s2656 + $0x238] sm:$0xff] %v2735
                %v2737 = vld [vmem:[%s2655 + $0x140] sm:$0xff]
                %2738 = vst [vmem:[%s2656 + $0x240] sm:$0xff] %v2737
                %v2739 = vld [vmem:[%s2655 + $0x148] sm:$0xff]
                %2740 = vst [vmem:[%s2656 + $0x248] sm:$0xff] %v2739
                %v2741 = vld [vmem:[%s2655 + $0x150] sm:$0xff]
                %2742 = vst [vmem:[%s2656 + $0x250] sm:$0xff] %v2741
                %v2743 = vld [vmem:[%s2655 + $0x158] sm:$0xff]
                %2744 = vst [vmem:[%s2656 + $0x258] sm:$0xff] %v2743
                %v2745 = vld [vmem:[%s2655 + $0x160] sm:$0xff]
                %2746 = vst [vmem:[%s2656 + $0x260] sm:$0xff] %v2745
                %v2747 = vld [vmem:[%s2655 + $0x168] sm:$0xff]
                %2748 = vst [vmem:[%s2656 + $0x268] sm:$0xff] %v2747
                %v2749 = vld [vmem:[%s2655 + $0x170] sm:$0xff]
                %2750 = vst [vmem:[%s2656 + $0x270] sm:$0xff] %v2749
                %v2751 = vld [vmem:[%s2655 + $0x178] sm:$0xff]
                %2752 = vst [vmem:[%s2656 + $0x278] sm:$0xff] %v2751
                %v2753 = vld [vmem:[%s2655 + $0x180] sm:$0xff]
                %2754 = vst [vmem:[%s2656 + $0x280] sm:$0xff] %v2753
                %v2755 = vld [vmem:[%s2655 + $0x188] sm:$0xff]
                %2756 = vst [vmem:[%s2656 + $0x288] sm:$0xff] %v2755
                %v2757 = vld [vmem:[%s2655 + $0x190] sm:$0xff]
                %2758 = vst [vmem:[%s2656 + $0x290] sm:$0xff] %v2757
                %v2759 = vld [vmem:[%s2655 + $0x198] sm:$0xff]
                %2760 = vst [vmem:[%s2656 + $0x298] sm:$0xff] %v2759
                %v2761 = vld [vmem:[%s2655 + $0x1a0] sm:$0xff]
                %2762 = vst [vmem:[%s2656 + $0x2a0] sm:$0xff] %v2761
                %v2763 = vld [vmem:[%s2655 + $0x1a8] sm:$0xff]
                %2764 = vst [vmem:[%s2656 + $0x2a8] sm:$0xff] %v2763
                %v2765 = vld [vmem:[%s2655 + $0x1b0] sm:$0xff]
                %2766 = vst [vmem:[%s2656 + $0x2b0] sm:$0xff] %v2765
                %v2767 = vld [vmem:[%s2655 + $0x1b8] sm:$0xff]
                %2768 = vst [vmem:[%s2656 + $0x2b8] sm:$0xff] %v2767
                %v2769 = vld [vmem:[%s2655 + $0x1c0] sm:$0xff]
                %2770 = vst [vmem:[%s2656 + $0x2c0] sm:$0xff] %v2769
                %v2771 = vld [vmem:[%s2655 + $0x1c8] sm:$0xff]
                %2772 = vst [vmem:[%s2656 + $0x2c8] sm:$0xff] %v2771
                %v2773 = vld [vmem:[%s2655 + $0x1d0] sm:$0xff]
                %2774 = vst [vmem:[%s2656 + $0x2d0] sm:$0xff] %v2773
                %v2775 = vld [vmem:[%s2655 + $0x1d8] sm:$0xff]
                %2776 = vst [vmem:[%s2656 + $0x2d8] sm:$0xff] %v2775
                %v2777 = vld [vmem:[%s2655 + $0x1e0] sm:$0xff]
                %2778 = vst [vmem:[%s2656 + $0x2e0] sm:$0xff] %v2777
                %v2779 = vld [vmem:[%s2655 + $0x1e8] sm:$0xff]
                %2780 = vst [vmem:[%s2656 + $0x2e8] sm:$0xff] %v2779
                %v2781 = vld [vmem:[%s2655 + $0x1f0] sm:$0xff]
                %2782 = vst [vmem:[%s2656 + $0x2f0] sm:$0xff] %v2781
                %v2783 = vld [vmem:[%s2655 + $0x1f8] sm:$0xff]
                %2784 = vst [vmem:[%s2656 + $0x2f8] sm:$0xff] %v2783
              $region57: #{unidire_adj_forward.1} parent=51 // loop_footer
                %s2654 = sadd.s32 1, %s2650
              $region58: #{unidire_adj_forward.1} parent=51 // loop_footer_branch
                %2649 = sbr.rel target = $region54
              $region59: #{unidire_adj_forward.1} parent=51 // loop_exit
                _
            $region52: #{unidire_adj_forward.1} parent=43 // pred_fallthru
              _
          $region44: #{unidire_adj_forward.1} parent=39 // pred_fallthru
            _
          %2925 = vnop
        $region40: #{unidire_adj_forward.1} parent=35 // pred_fallthru
          _
      $region36: #{unidire_adj_forward.1} parent=5 // pred_fallthru
        _
      %p2926 = scmp.le.s32.totalorder 2, %s10
      // Predicated region
      $region75: #{unidire_adj_forward.1} parent=5 // pred_check
        %p2927 = pneg %p2926
      $region76: #{unidire_adj_forward.1} parent=5 // pred_check_branch
        %2929 = sbr.rel (%p2927) target = $region78
      $region77: #{unidire_adj_forward.1} parent=5 // pred_region
        %s2930 = ssub.s32 %s10, 2
        // Predicated region
        $region79: #{unidire_adj_forward.1} parent=77 // pred_check
          %p2931 = pneg %p133
        $region80: #{unidire_adj_forward.1} parent=77 // pred_check_branch
          %2933 = sbr.rel (%p2931) target = $region82
        $region81: #{unidire_adj_forward.1} parent=77 // pred_region
          %s2934 = sand.u32 %s118, 1
          %s2935 = sand.u32 %s118, 1
          %s2936 = smul.addr %s2935, 512
          %s2937 = scalar_lea.vmem [#allocation2], %s2936
        $region82: #{unidire_adj_forward.1} parent=77 // pred_fallthru
          _
      $region78: #{unidire_adj_forward.1} parent=5 // pred_fallthru
        _
    $region6: #{unidire_adj_forward.1} parent=1 // loop_footer
      %s14 = sadd.s32 1, %s10
    $region7: #{unidire_adj_forward.1} parent=1 // loop_footer_branch
      %9 = sbr.rel target = $region3
    $region8: #{unidire_adj_forward.1} parent=1 // loop_exit
      _

</llo_original>
